<compile_context>
chip_gen: v7x
topology: tpu7x:2x2x1
jax: 0.10.0
libtpu: 0.0.40
codegen_flags: <defaults>
</compile_context>

<pallas_src>
import functools

import jax
import jax.numpy as jnp
from jax import lax
from jax.experimental import pallas as pl
from jax.experimental.pallas import tpu as pltpu


def _mlp_kernel(x_ref, w1_ref, b1_ref, w2_ref, b2_ref, o_ref, acc_ref, *, hidden, chunk):
    k = pl.program_id(1)

    @pl.when(k == 0)
    def _():
        # Fold fc2 bias into the accumulator init (no per-step broadcast add).
        acc_ref[...] = jnp.broadcast_to(b2_ref[...], acc_ref.shape)

    # fc1 chunk: (tb, D_in) x (th, D_in)^T on the MXU, f32 accumulation.
    h = lax.dot_general(
        x_ref[...].astype(jnp.bfloat16),
        w1_ref[...].astype(jnp.bfloat16),
        dimension_numbers=(((1,), (1,)), ((), ())),
        preferred_element_type=jnp.float32,
    )
    # Bias + ReLU in f32 on the VPU.
    h = jnp.maximum(h + b1_ref[...], 0.0)

    # The last hidden chunk may be partial (H need not divide the chunk size); data in the
    # out-of-bounds part of the block is undefined.  Zero BOTH operands of the second
    # matmul past H so the padded contribution is exactly 0 (NaN-safe: 0*0, never 0*NaN).
    col = k * chunk + lax.broadcasted_iota(jnp.int32, (1, chunk), 1)
    valid = col < hidden
    h = jnp.where(valid, h, 0.0)
    w2c = jnp.where(valid, w2_ref[...], 0.0)

    # fc2 partial: (tb, th) x (O, th)^T, accumulate into the resident (tb, O) tile.
    acc_ref[...] += lax.dot_general(
        h.astype(jnp.bfloat16),
        w2c.astype(jnp.bfloat16),
        dimension_numbers=(((1,), (1,)), ((), ())),
        preferred_element_type=jnp.float32,
    )

    @pl.when(k == pl.num_programs(1) - 1)
    def _():
        o_ref[...] = acc_ref[...].astype(o_ref.dtype)


@functools.partial(jax.jit, static_argnames=("tile_b", "tile_h"))
def base_model_forward(x, w1, b1, w2, b2, *, tile_b=256, tile_h=2560):
    """Forward pass of baseModel.

    x:  (B, D_in) f32
    w1: (H, D_in) f32  (PyTorch fc1.weight layout)    b1: (H,) f32
    w2: (O, H)    f32  (PyTorch fc2.weight layout)    b2: (O,) f32
    Returns (B, O) f32.
    """
    B, D_in = x.shape
    H = w1.shape[0]
    O = w2.shape[0]

    # Batch tile: one full-B tile for small batches (block dim == full dim is always
    # legal); otherwise 128-aligned tiles with a partial last tile (garbage batch rows
    # stay in their own rows/columns and are clipped on writeback).
    tb = B if B <= tile_b else max((tile_b // 128) * 128, 128)
    grid_b = pl.cdiv(B, tb)

    # Hidden chunk: multiple of 128 lanes, or the full (odd) H when it fits in one chunk.
    th = H if tile_h >= H else max((tile_h // 128) * 128, 128)
    grid_h = pl.cdiv(H, th)

    # Only metadata-level reshapes in the wrapper — no pad/transpose/cast of the weights.
    b1r = b1.reshape(1, H)
    b2r = b2.reshape(1, O)

    kernel = functools.partial(_mlp_kernel, hidden=H, chunk=th)

    out = pl.pallas_call(
        kernel,
        out_shape=jax.ShapeDtypeStruct((B, O), jnp.float32),
        grid_spec=pltpu.PrefetchScalarGridSpec(
            num_scalar_prefetch=0,
            grid=(grid_b, grid_h),
            in_specs=[
                pl.BlockSpec((tb, D_in), lambda i, k: (i, 0)),   # x tile (resident over k)
                pl.BlockSpec((th, D_in), lambda i, k: (k, 0)),   # W1 chunk (PyTorch layout)
                pl.BlockSpec((1, th), lambda i, k: (0, k)),      # b1 chunk
                pl.BlockSpec((O, th), lambda i, k: (0, k)),      # W2 chunk (PyTorch layout)
                pl.BlockSpec((1, O), lambda i, k: (0, 0)),       # b2 (resident)
            ],
            out_specs=pl.BlockSpec((tb, O), lambda i, k: (i, 0)),
            scratch_shapes=[pltpu.VMEM((tb, O), jnp.float32)],   # f32 accumulator
        ),
        compiler_params=pltpu.CompilerParams(
            dimension_semantics=("parallel", "arbitrary"),
        ),
    )(x, w1, b1r, w2, b2r)

    return out


def init_params(key, input_dim, output_dim, hidden=5000):
    """Deterministic init mirroring the PyTorch module's __init__ (PyTorch layouts)."""
    k1, k2, k3, k4 = jax.random.split(key, 4)

    # fc1.weight: kaiming_uniform_(nonlinearity='relu') -> U(-sqrt(6/fan_in), sqrt(6/fan_in))
    bound1_w = (6.0 / input_dim) ** 0.5
    w1 = jax.random.uniform(k1, (hidden, input_dim), jnp.float32, -bound1_w, bound1_w)
    # fc1.bias: default Linear init U(-1/sqrt(fan_in), 1/sqrt(fan_in))
    bound1_b = 1.0 / (input_dim ** 0.5)
    b1 = jax.random.uniform(k2, (hidden,), jnp.float32, -bound1_b, bound1_b)

    # fc2: default Linear init, fan_in = hidden
    bound2 = 1.0 / (hidden ** 0.5)
    w2 = jax.random.uniform(k3, (output_dim, hidden), jnp.float32, -bound2, bound2)
    b2 = jax.random.uniform(k4, (output_dim,), jnp.float32, -bound2, bound2)
    return w1, b1, w2, b2


def ref_forward_bf16(x, w1, b1, w2, b2):
    """Pure-JAX reference with matching (bf16-operand, f32-accumulate) precision."""
    h = jnp.dot(
        x.astype(jnp.bfloat16), w1.T.astype(jnp.bfloat16),
        preferred_element_type=jnp.float32,
    ) + b1
    h = jnp.maximum(h, 0.0)
    y = jnp.dot(
        h.astype(jnp.bfloat16), w2.T.astype(jnp.bfloat16),
        preferred_element_type=jnp.float32,
    ) + b2
    return y


if __name__ == "__main__":
    INPUT_DIM = 32
    OUTPUT_DIM = 128
    HIDDEN = 5000       # fixed by the module definition
    BATCH = 8

    key = jax.random.PRNGKey(0)
    kx, kp = jax.random.split(key)

    x = jax.random.normal(kx, (BATCH, INPUT_DIM), jnp.float32)
    w1, b1, w2, b2 = init_params(kp, INPUT_DIM, OUTPUT_DIM, HIDDEN)

    out = base_model_forward(x, w1, b1, w2, b2)
    out = jax.block_until_ready(out)

    ref = ref_forward_bf16(x, w1, b1, w2, b2)
    assert out.shape == (BATCH, OUTPUT_DIM)
    assert jnp.allclose(out, ref, atol=1e-2, rtol=1e-2), "mismatch vs reference"

    print("KERNEL_OK")
</pallas_src>

<mosaic_0001>
module attributes {stable_mosaic.version = 11 : i64} {
  func.func @_mlp_kernel(%arg0: i32, %arg1: i32, %arg2: memref<8x32xf32, #tpu.memory_space<vmem>>, %arg3: memref<2560x32xf32, #tpu.memory_space<vmem>>, %arg4: memref<1x2560xf32, #tpu.memory_space<vmem>>, %arg5: memref<128x2560xf32, #tpu.memory_space<vmem>>, %arg6: memref<1x128xf32, #tpu.memory_space<vmem>>, %arg7: memref<8x128xf32, #tpu.memory_space<vmem>>, %arg8: memref<8x128xf32, #tpu.memory_space<vmem>>) attributes {dimension_semantics = [#tpu.dimension_semantics<parallel>, #tpu.dimension_semantics<arbitrary>], iteration_bounds = array<i64: 1, 2>, scalar_prefetch = 0 : i64, scratch_operands = 1 : i64, tpu.core_type = #tpu.core_type<tc>, window_params = [{transform_indices = @transform_0, window_bounds = array<i64: 8, 32>}, {transform_indices = @transform_1, window_bounds = array<i64: 2560, 32>}, {transform_indices = @transform_2, window_bounds = array<i64: 1, 2560>}, {transform_indices = @transform_3, window_bounds = array<i64: 128, 2560>}, {pipeline_mode = #tpu.pipeline_mode<synchronous>, transform_indices = @transform_4, window_bounds = array<i64: 1, 128>}, {transform_indices = @transform_5, window_bounds = array<i64: 8, 128>}]} {
    %c0_i32 = arith.constant 0 : i32
    %0 = arith.cmpi eq, %arg1, %c0_i32 : i32
    %1 = arith.extui %0 : i1 to i32
    %c0_i32_0 = arith.constant 0 : i32
    %2 = arith.cmpi ne, %1, %c0_i32_0 : i32
    scf.if %2 {
      %c0_17 = arith.constant 0 : index
      %c0_18 = arith.constant 0 : index
      %37 = vector.load %arg6[%c0_17, %c0_18] : memref<1x128xf32, #tpu.memory_space<vmem>>, vector<1x128xf32>
      %38 = vector.shape_cast %37 : vector<1x128xf32> to vector<1x128xf32>
      %39 = vector.broadcast %38 : vector<1x128xf32> to vector<8x128xf32>
      %c0_19 = arith.constant 0 : index
      %c0_20 = arith.constant 0 : index
      %40 = vector.load %arg8[%c0_19, %c0_20] : memref<8x128xf32, #tpu.memory_space<vmem>>, vector<8x128xf32>
      tpu.vector_store %arg8[%c0_19, %c0_20], %39 {strides = array<i32>} : memref<8x128xf32, #tpu.memory_space<vmem>>, vector<8x128xf32>,
    } else {
    }
    %c0 = arith.constant 0 : index
    %c0_1 = arith.constant 0 : index
    %3 = vector.load %arg2[%c0, %c0_1] : memref<8x32xf32, #tpu.memory_space<vmem>>, vector<8x32xf32>
    %4 = arith.truncf %3 : vector<8x32xf32> to vector<8x32xbf16>
    %c0_2 = arith.constant 0 : index
    %c0_3 = arith.constant 0 : index
    %5 = vector.load %arg3[%c0_2, %c0_3] : memref<2560x32xf32, #tpu.memory_space<vmem>>, vector<2560x32xf32>
    %6 = arith.truncf %5 : vector<2560x32xf32> to vector<2560x32xbf16>
    %cst = arith.constant dense<0.000000e+00> : vector<8x2560xf32>
    %7 = tpu.matmul %4, %6, %cst {dimension_numbers = #tpu.dot_dimension_numbers<[1], [1], [0], [0], [0, 0, 1, 0], [], []>} : vector<8x32xbf16>, vector<2560x32xbf16>, vector<8x2560xf32> -> vector<8x2560xf32>
    %c0_4 = arith.constant 0 : index
    %c0_5 = arith.constant 0 : index
    %8 = vector.load %arg4[%c0_4, %c0_5] : memref<1x2560xf32, #tpu.memory_space<vmem>>, vector<1x2560xf32>
    %9 = vector.broadcast %8 : vector<1x2560xf32> to vector<8x2560xf32>
    %10 = arith.addf %7, %9 : vector<8x2560xf32>
    %cst_6 = arith.constant 0.000000e+00 : f32
    %11 = vector.broadcast %cst_6 : f32 to vector<8x2560xf32>
    %12 = arith.maximumf %10, %11 : vector<8x2560xf32>
    %c2560_i32 = arith.constant 2560 : i32
    %13 = arith.muli %arg1, %c2560_i32 : i32
    %14 = tpu.iota {dimensions = array<i32: 1>} : vector<1x2560xi32>
    %15 = vector.broadcast %13 : i32 to vector<1x2560xi32>
    %16 = arith.addi %15, %14 : vector<1x2560xi32>
    %c5000_i32 = arith.constant 5000 : i32
    %17 = vector.broadcast %c5000_i32 : i32 to vector<1x2560xi32>
    %18 = arith.cmpi slt, %16, %17 : vector<1x2560xi32>
    %cst_7 = arith.constant 0.000000e+00 : f32
    %19 = vector.shape_cast %18 : vector<1x2560xi1> to vector<1x2560xi1>
    %20 = vector.broadcast %19 : vector<1x2560xi1> to vector<8x2560xi1>
    %21 = vector.broadcast %cst_7 : f32 to vector<8x2560xf32>
    %22 = arith.select %20, %12, %21 : vector<8x2560xi1>, vector<8x2560xf32>
    %c0_8 = arith.constant 0 : index
    %c0_9 = arith.constant 0 : index
    %23 = vector.load %arg5[%c0_8, %c0_9] : memref<128x2560xf32, #tpu.memory_space<vmem>>, vector<128x2560xf32>
    %cst_10 = arith.constant 0.000000e+00 : f32
    %24 = vector.shape_cast %18 : vector<1x2560xi1> to vector<1x2560xi1>
    %25 = vector.broadcast %24 : vector<1x2560xi1> to vector<128x2560xi1>
    %26 = vector.broadcast %cst_10 : f32 to vector<128x2560xf32>
    %27 = arith.select %25, %23, %26 : vector<128x2560xi1>, vector<128x2560xf32>
    %c0_11 = arith.constant 0 : index
    %c0_12 = arith.constant 0 : index
    %28 = vector.load %arg8[%c0_11, %c0_12] : memref<8x128xf32, #tpu.memory_space<vmem>>, vector<8x128xf32>
    %29 = arith.truncf %22 : vector<8x2560xf32> to vector<8x2560xbf16>
    %30 = arith.truncf %27 : vector<128x2560xf32> to vector<128x2560xbf16>
    %cst_13 = arith.constant dense<0.000000e+00> : vector<8x128xf32>
    %31 = tpu.matmul %29, %30, %cst_13 {dimension_numbers = #tpu.dot_dimension_numbers<[1], [1], [0], [0], [0, 0, 1, 0], [], []>} : vector<8x2560xbf16>, vector<128x2560xbf16>, vector<8x128xf32> -> vector<8x128xf32>
    %32 = arith.addf %28, %31 : vector<8x128xf32>
    %c0_14 = arith.constant 0 : index
    %c0_15 = arith.constant 0 : index
    %33 = vector.load %arg8[%c0_14, %c0_15] : memref<8x128xf32, #tpu.memory_space<vmem>>, vector<8x128xf32>
    tpu.vector_store %arg8[%c0_14, %c0_15], %32 {strides = array<i32>} : memref<8x128xf32, #tpu.memory_space<vmem>>, vector<8x128xf32>,
    %c1_i32 = arith.constant 1 : i32
    %34 = arith.cmpi eq, %arg1, %c1_i32 : i32
    %35 = arith.extui %34 : i1 to i32
    %c0_i32_16 = arith.constant 0 : i32
    %36 = arith.cmpi ne, %35, %c0_i32_16 : i32
    scf.if %36 {
      %c0_17 = arith.constant 0 : index
      %c0_18 = arith.constant 0 : index
      %37 = vector.load %arg8[%c0_17, %c0_18] : memref<8x128xf32, #tpu.memory_space<vmem>>, vector<8x128xf32>
      %c0_19 = arith.constant 0 : index
      %c0_20 = arith.constant 0 : index
      %38 = vector.load %arg7[%c0_19, %c0_20] : memref<8x128xf32, #tpu.memory_space<vmem>>, vector<8x128xf32>
      tpu.vector_store %arg7[%c0_19, %c0_20], %37 {strides = array<i32>} : memref<8x128xf32, #tpu.memory_space<vmem>>, vector<8x128xf32>,
    } else {
    }
    return
  }
  func.func @transform_0(%arg0: i32, %arg1: i32) -> (i32, i32) {
    %c0_i32 = arith.constant 0 : i32
    %c0_i32_0 = arith.constant 0 : i32
    return %arg0, %c0_i32 : i32, i32
  }
  func.func @transform_1(%arg0: i32, %arg1: i32) -> (i32, i32) {
    %c0_i32 = arith.constant 0 : i32
    %c0_i32_0 = arith.constant 0 : i32
    return %arg1, %c0_i32 : i32, i32
  }
  func.func @transform_2(%arg0: i32, %arg1: i32) -> (i32, i32) {
    %c0_i32 = arith.constant 0 : i32
    %c0_i32_0 = arith.constant 0 : i32
    return %c0_i32, %arg1 : i32, i32
  }
  func.func @transform_3(%arg0: i32, %arg1: i32) -> (i32, i32) {
    %c0_i32 = arith.constant 0 : i32
    %c0_i32_0 = arith.constant 0 : i32
    return %c0_i32, %arg1 : i32, i32
  }
  func.func @transform_4(%arg0: i32, %arg1: i32) -> (i32, i32) {
    %c0_i32 = arith.constant 0 : i32
    %c0_i32_0 = arith.constant 0 : i32
    %c0_i32_1 = arith.constant 0 : i32
    return %c0_i32, %c0_i32_0 : i32, i32
  }
  func.func @transform_5(%arg0: i32, %arg1: i32) -> (i32, i32) {
    %c0_i32 = arith.constant 0 : i32
    %c0_i32_0 = arith.constant 0 : i32
    return %arg0, %c0_i32 : i32, i32
  }
}

</mosaic_0001>

<llo_original>
// kernel: base_model_forward.1
$region0: #{base_model_forward.1}
  #allocation0 [shape = 'u32[]', space=smem, size = 0x4, offset = 0x4, fixed_abs, tag = 'smem constant byte address 0x4 - core index']
  #allocation1 [shape = 'u32[144,128]{1,0:T(1,128)}', space=vmem, size = 0x12000, scoped, tag = 'internal scratch']
  #allocation2 [shape = 'f32[8,128]{1,0:T(8,128)}', space=vmem, size = 0x1000, scoped, tag = 'scratch operand']
  %s0 = inlined_call_operand.vmem [shape: f32[8,32], index: 0, kind: input, shape index: {}]
  %s1 = inlined_call_operand.vmem [shape: f32[5000,32], index: 1, kind: input, shape index: {}]
  %s2 = inlined_call_operand.vmem [shape: f32[1,5000], index: 2, kind: input, shape index: {}]
  %s3 = inlined_call_operand.vmem [shape: f32[128,5000], index: 3, kind: input, shape index: {}]
  %s4 = inlined_call_operand.vmem [shape: f32[1,128], index: 4, kind: input, shape index: {}]
  %s5 = inlined_call_operand.hbm [shape: f32[8,128], index: 5, kind: output, shape index: {}]
  %s6 = sld [smem:[#allocation0]]
  $region84: #{base_model_forward.1} parent=0
    _
  %s8 = ssub.s32 1, %s6
  %s9 = scalar_select 0, %s8, %s6
  $region1: #{base_model_forward.1} parent=0
    #allocation3 [shape = 'u8[2621440]{0}', space=vmem, size = 0x280000, scoped, tag = 'input window, operand 3']
    #allocation4 [shape = 'u8[4096]{0}', space=vmem, size = 0x1000, scoped, tag = 'output window, operand 0, single buffered']
    #allocation5 [shape = 's32[2]{0}', space=sflag, size = 0x8, scoped, tag = 'scoped memory for base_model_forward.1']
    %10 = vsyncpa [#allocation5], 0
    loop: start=0, step=1, limit=4
    $region2: #{base_model_forward.1} parent=1 // loop_pre_header
      _
    $region3: #{base_model_forward.1} parent=1 // loop_header
      %s12 = sphi 0, %s16
      %p13 = scmp.ge.s32.totalorder %s12, 4
      %s19 = sphi 0, %s31
      %s20 = sphi 0, %s27
      %s21 = sphi 0, %s19
      %s22 = sphi 0, %s20
      %s23 = sphi 0, %s21
      %s24 = sphi 0, %s22
      %s34 = sphi 0, %s36
      %s37 = sphi 0, %s34
      %s38 = sphi 0, %s37
      %s54 = sphi 0, %s38
      %s60 = sphi 0, %s62
      %s63 = sphi 0, %s60
      %s64 = sphi 0, %s63
      %s80 = sphi 0, %s64
      %s86 = sphi 0, %s88
      %s89 = sphi 0, %s86
      %s90 = sphi 0, %s89
      %s106 = sphi 0, %s90
      %s112 = sphi 0, %s114
      %s115 = sphi 0, %s112
      %s116 = sphi 0, %s115
      %s132 = sphi 0, %s116
      %s136 = sphi 0, %s136
      %s138 = sphi 0, %s136
      %s139 = sphi 0, %s138
      %s153 = sphi 0, %s139
      %s159 = sphi 0, %s161
      %s162 = sphi 0, %s159
      %s163 = sphi 0, %s162
      %s179 = sphi 0, %s163
    $region4: #{base_model_forward.1} parent=1 // loop_header_branch
      %15 = sbr.rel (%p13) target = $region8
    $region5: #{base_model_forward.1} parent=1 // loop_body
      %s17 = ssub.s32 %s12, 1
      %s18 = ssub.s32 %s12, 2
      %s25 = sadd.s32 1, %s20
      %p26 = scmp.ge.s32.totalorder %s25, 2
      %s27 = scalar_select %p26, 0, %s25
      %s28 = sadd.s32 1, %s19
      %s29 = scalar_select %p26, %s28, %s19
      %p30 = scmp.ge.s32.totalorder %s29, 1
      %s31 = scalar_select %p30, 0, %s29
      %s32 = ssub.s32 %s19, %s31
      %p33 = scmp.eq.s32.totalorder %s32, 0
      %s35 = sadd.s32 %s34, 1
      %s36 = scalar_select %p33, %s34, %s35
      %p39 = pneg %p33
      %p40 = scmp.eq.s32.totalorder %s12, 1
      %p41 = por %p39, %p40
      %p42 = scmp.ne.s32.totalorder %s34, %s37
      %p43 = scmp.eq.s32.totalorder %s12, 0
      %p44 = por %p42, %p43
      %p45 = scmp.ne.s32.totalorder %s34, %s37
      %p46 = scmp.eq.s32.totalorder %s17, 1
      %p47 = por %p45, %p46
      %p48 = scmp.ne.s32.totalorder %s37, %s38
      %p49 = scmp.eq.s32.totalorder %s17, 0
      %p50 = por %p48, %p49
      %p51 = scmp.ne.s32.totalorder %s37, %s38
      %p52 = scmp.eq.s32.totalorder %s18, 1
      %p53 = por %p51, %p52
      %p55 = scmp.ne.s32.totalorder %s38, %s54
      %p56 = scmp.eq.s32.totalorder %s18, 0
      %p57 = por %p55, %p56
      %s58 = ssub.s32 %s20, %s27
      %p59 = scmp.eq.s32.totalorder %s58, 0
      %s61 = sadd.s32 %s60, 1
      %s62 = scalar_select %p59, %s60, %s61
      %p65 = pneg %p59
      %p66 = scmp.eq.s32.totalorder %s12, 1
      %p67 = por %p65, %p66
      %p68 = scmp.ne.s32.totalorder %s60, %s63
      %p69 = scmp.eq.s32.totalorder %s12, 0
      %p70 = por %p68, %p69
      %p71 = scmp.ne.s32.totalorder %s60, %s63
      %p72 = scmp.eq.s32.totalorder %s17, 1
      %p73 = por %p71, %p72
      %p74 = scmp.ne.s32.totalorder %s63, %s64
      %p75 = scmp.eq.s32.totalorder %s17, 0
      %p76 = por %p74, %p75
      %p77 = scmp.ne.s32.totalorder %s63, %s64
      %p78 = scmp.eq.s32.totalorder %s18, 1
      %p79 = por %p77, %p78
      %p81 = scmp.ne.s32.totalorder %s64, %s80
      %p82 = scmp.eq.s32.totalorder %s18, 0
      %p83 = por %p81, %p82
      %s84 = ssub.s32 %s20, %s27
      %p85 = scmp.eq.s32.totalorder %s84, 0
      %s87 = sadd.s32 %s86, 1
      %s88 = scalar_select %p85, %s86, %s87
      %p91 = pneg %p85
      %p92 = scmp.eq.s32.totalorder %s12, 1
      %p93 = por %p91, %p92
      %p94 = scmp.ne.s32.totalorder %s86, %s89
      %p95 = scmp.eq.s32.totalorder %s12, 0
      %p96 = por %p94, %p95
      %p97 = scmp.ne.s32.totalorder %s86, %s89
      %p98 = scmp.eq.s32.totalorder %s17, 1
      %p99 = por %p97, %p98
      %p100 = scmp.ne.s32.totalorder %s89, %s90
      %p101 = scmp.eq.s32.totalorder %s17, 0
      %p102 = por %p100, %p101
      %p103 = scmp.ne.s32.totalorder %s89, %s90
      %p104 = scmp.eq.s32.totalorder %s18, 1
      %p105 = por %p103, %p104
      %p107 = scmp.ne.s32.totalorder %s90, %s106
      %p108 = scmp.eq.s32.totalorder %s18, 0
      %p109 = por %p107, %p108
      %s110 = ssub.s32 %s20, %s27
      %p111 = scmp.eq.s32.totalorder %s110, 0
      %s113 = sadd.s32 %s112, 1
      %s114 = scalar_select %p111, %s112, %s113
      %p117 = pneg %p111
      %p118 = scmp.eq.s32.totalorder %s12, 1
      %p119 = por %p117, %p118
      %p120 = scmp.ne.s32.totalorder %s112, %s115
      %p121 = scmp.eq.s32.totalorder %s12, 0
      %p122 = por %p120, %p121
      %p123 = scmp.ne.s32.totalorder %s112, %s115
      %p124 = scmp.eq.s32.totalorder %s17, 1
      %p125 = por %p123, %p124
      %p126 = scmp.ne.s32.totalorder %s115, %s116
      %p127 = scmp.eq.s32.totalorder %s17, 0
      %p128 = por %p126, %p127
      %p129 = scmp.ne.s32.totalorder %s115, %s116
      %p130 = scmp.eq.s32.totalorder %s18, 1
      %p131 = por %p129, %p130
      %p133 = scmp.ne.s32.totalorder %s116, %s132
      %p134 = scmp.eq.s32.totalorder %s18, 0
      %p135 = por %p133, %p134
      %s137 = sadd.s32 %s136, 1
      %p140 = scmp.eq.s32.totalorder %s12, 1
      %p141 = scmp.ne.s32.totalorder %s136, %s138
      %p142 = scmp.eq.s32.totalorder %s12, 0
      %p143 = por %p141, %p142
      %p144 = scmp.ne.s32.totalorder %s136, %s138
      %p145 = scmp.eq.s32.totalorder %s17, 1
      %p146 = por %p144, %p145
      %p147 = scmp.ne.s32.totalorder %s138, %s139
      %p148 = scmp.eq.s32.totalorder %s17, 0
      %p149 = por %p147, %p148
      %p150 = scmp.ne.s32.totalorder %s138, %s139
      %p151 = scmp.eq.s32.totalorder %s18, 1
      %p152 = por %p150, %p151
      %p154 = scmp.ne.s32.totalorder %s139, %s153
      %p155 = scmp.eq.s32.totalorder %s18, 0
      %p156 = por %p154, %p155
      %s157 = ssub.s32 %s19, %s31
      %p158 = scmp.eq.s32.totalorder %s157, 0
      %s160 = sadd.s32 %s159, 1
      %s161 = scalar_select %p158, %s159, %s160
      %p164 = pneg %p158
      %p165 = scmp.eq.s32.totalorder %s12, 1
      %p166 = por %p164, %p165
      %p167 = scmp.ne.s32.totalorder %s159, %s162
      %p168 = scmp.eq.s32.totalorder %s12, 0
      %p169 = por %p167, %p168
      %p170 = scmp.ne.s32.totalorder %s159, %s162
      %p171 = scmp.eq.s32.totalorder %s17, 1
      %p172 = por %p170, %p171
      %p173 = scmp.ne.s32.totalorder %s162, %s163
      %p174 = scmp.eq.s32.totalorder %s17, 0
      %p175 = por %p173, %p174
      %p176 = scmp.ne.s32.totalorder %s162, %s163
      %p177 = scmp.eq.s32.totalorder %s18, 1
      %p178 = por %p176, %p177
      %p180 = scmp.ne.s32.totalorder %s163, %s179
      %p181 = scmp.eq.s32.totalorder %s18, 0
      %p182 = por %p180, %p181
      %p183 = scmp.le.s32.totalorder 1, %s12
      %p184 = scmp.lt.s32.totalorder %s12, 3
      %p185 = pnand %p183, %p184
      %p186 = pneg %p185
      // Predicated region
      $region9: #{base_model_forward.1} parent=5 // pred_check
        _
      $region10: #{base_model_forward.1} parent=5 // pred_check_branch
        %188 = sbr.rel (%p185) target = $region12
      $region11: #{base_model_forward.1} parent=5 // pred_region
        %s189 = ssub.s32 %s12, 1
        // Predicated region
        $region13: #{base_model_forward.1} parent=11 // pred_check
          %p190 = pneg %p50
        $region14: #{base_model_forward.1} parent=11 // pred_check_branch
          %192 = sbr.rel (%p190) target = $region16
        $region15: #{base_model_forward.1} parent=11 // pred_region
          %p193 = scmp.lt.s32.totalorder %s21, 0
          %s194 = scalar_select %p193, %s21, 0
          %s195 = smul.addr %s194, 8
          %s196 = scalar_lea.vmem %s0, %s195
        $region16: #{base_model_forward.1} parent=11 // pred_fallthru
          _
        // Predicated region
        $region17: #{base_model_forward.1} parent=11 // pred_check
          %p197 = pneg %p149
        $region18: #{base_model_forward.1} parent=11 // pred_check_branch
          %199 = sbr.rel (%p197) target = $region20
        $region19: #{base_model_forward.1} parent=11 // pred_region
          _
        $region20: #{base_model_forward.1} parent=11 // pred_fallthru
          _
      $region12: #{base_model_forward.1} parent=5 // pred_fallthru
        _
      %p200 = scmp.lt.s32.totalorder %s12, 2
      // Predicated region
      $region21: #{base_model_forward.1} parent=5 // pred_check
        %p201 = pneg %p200
      $region22: #{base_model_forward.1} parent=5 // pred_check_branch
        %203 = sbr.rel (%p201) target = $region24
      $region23: #{base_model_forward.1} parent=5 // pred_region
        // Predicated region
        $region25: #{base_model_forward.1} parent=23 // pred_check
          %p204 = pneg %p70
        $region26: #{base_model_forward.1} parent=23 // pred_check_branch
          %206 = sbr.rel (%p204) target = $region28
        $region27: #{base_model_forward.1} parent=23 // pred_region
          %s207 = smul.u32 320, %s20
          %s208 = ssub.s32 625, %s207
          %p209 = scmp.lt.s32.totalorder %s208, 320
          %s210 = scalar_select %p209, %s208, 320
          %s211 = smul.u32 128, %s210
          %p212 = scmp.lt.s32.totalorder %s207, 624
          %s213 = scalar_select %p212, %s207, 624
          %s214 = smul.addr %s213, 8
          %s215 = scalar_lea.vmem %s1, %s214
          %s216 = smul.u32 320, %s20
          %s217 = ssub.s32 625, %s216
          %p218 = scmp.lt.s32.totalorder %s217, 320
          %s219 = scalar_select %p218, %s217, 320
          %s220 = smul.u32 128, %s219
        $region28: #{base_model_forward.1} parent=23 // pred_fallthru
          _
        // Predicated region
        $region29: #{base_model_forward.1} parent=23 // pred_check
          %p221 = pneg %p96
        $region30: #{base_model_forward.1} parent=23 // pred_check_branch
          %223 = sbr.rel (%p221) target = $region32
        $region31: #{base_model_forward.1} parent=23 // pred_region
          %s224 = smul.u32 20, %s20
          %p225 = scmp.lt.s32.totalorder %s224, 39
          %s226 = scalar_select %p225, %s224, 39
          %s227 = scalar_lea.vmem %s2, %s226
          %s228 = smul.u32 20, %s20
        $region32: #{base_model_forward.1} parent=23 // pred_fallthru
          _
        // Predicated region
        $region33: #{base_model_forward.1} parent=23 // pred_check
          %p229 = pneg %p122
        $region34: #{base_model_forward.1} parent=23 // pred_check_branch
          %231 = sbr.rel (%p229) target = $region36
        $region35: #{base_model_forward.1} parent=23 // pred_region
          %s232 = sand.u32 %s112, 1
          %s233 = sand.u32 %s112, 1
          %s234 = smul.addr %s233, 2560
          %s235 = scalar_lea.vmem [#allocation3], %s234
          %s236 = smul.u32 20, %s20
          %s237 = smul.addr %s236, 8
          %s238 = scalar_lea.vmem %s3, %s237
          // Predicated region
          $region37: #{base_model_forward.1} parent=35 // pred_check
            _
          $region38: #{base_model_forward.1} parent=35 // pred_check_branch
            %240 = sbr.rel (0) target = $region40
          $region39: #{base_model_forward.1} parent=35 // pred_region
            // Predicated region
            $region41: #{base_model_forward.1} parent=39 // pred_check
              _
            $region42: #{base_model_forward.1} parent=39 // pred_check_branch
              %242 = sbr.rel (0) target = $region44
            $region43: #{base_model_forward.1} parent=39 // pred_region
              loop: start=0, step=1, limit=1
              $region45: #{base_model_forward.1} parent=43 // loop_pre_header
                _
              $region46: #{base_model_forward.1} parent=43 // loop_header
                %s244 = sphi 0, %s248
                %p245 = scmp.ge.s32.totalorder %s244, 1
                %s249 = sphi %s238, %s238
                %s250 = sphi %s235, %s235
              $region47: #{base_model_forward.1} parent=43 // loop_header_branch
                %247 = sbr.rel (%p245) target = $region51
              $region48: #{base_model_forward.1} parent=43 // loop_body
                %v251 = vld [vmem:[%s249] sm:$0xff]
                %252 = vst [vmem:[%s250] sm:$0xff] %v251
                %v253 = vld [vmem:[%s249 + $0x8] sm:$0xff]
                %254 = vst [vmem:[%s250 + $0x8] sm:$0xff] %v253
                %v255 = vld [vmem:[%s249 + $0x10] sm:$0xff]
                %256 = vst [vmem:[%s250 + $0x10] sm:$0xff] %v255
                %v257 = vld [vmem:[%s249 + $0x18] sm:$0xff]
                %258 = vst [vmem:[%s250 + $0x18] sm:$0xff] %v257
                %v259 = vld [vmem:[%s249 + $0x20] sm:$0xff]
                %260 = vst [vmem:[%s250 + $0x20] sm:$0xff] %v259
                %v261 = vld [vmem:[%s249 + $0x28] sm:$0xff]
                %262 = vst [vmem:[%s250 + $0x28] sm:$0xff] %v261
                %v263 = vld [vmem:[%s249 + $0x30] sm:$0xff]
                %264 = vst [vmem:[%s250 + $0x30] sm:$0xff] %v263
                %v265 = vld [vmem:[%s249 + $0x38] sm:$0xff]
                %266 = vst [vmem:[%s250 + $0x38] sm:$0xff] %v265
                %v267 = vld [vmem:[%s249 + $0x40] sm:$0xff]
                %268 = vst [vmem:[%s250 + $0x40] sm:$0xff] %v267
                %v269 = vld [vmem:[%s249 + $0x48] sm:$0xff]
                %270 = vst [vmem:[%s250 + $0x48] sm:$0xff] %v269
                %v271 = vld [vmem:[%s249 + $0x50] sm:$0xff]
                %272 = vst [vmem:[%s250 + $0x50] sm:$0xff] %v271
                %v273 = vld [vmem:[%s249 + $0x58] sm:$0xff]
                %274 = vst [vmem:[%s250 + $0x58] sm:$0xff] %v273
                %v275 = vld [vmem:[%s249 + $0x60] sm:$0xff]
                %276 = vst [vmem:[%s250 + $0x60] sm:$0xff] %v275
                %v277 = vld [vmem:[%s249 + $0x68] sm:$0xff]
                %278 = vst [vmem:[%s250 + $0x68] sm:$0xff] %v277
                %v279 = vld [vmem:[%s249 + $0x70] sm:$0xff]
                %280 = vst [vmem:[%s250 + $0x70] sm:$0xff] %v279
                %v281 = vld [vmem:[%s249 + $0x78] sm:$0xff]
                %282 = vst [vmem:[%s250 + $0x78] sm:$0xff] %v281
                %v283 = vld [vmem:[%s249 + $0x80] sm:$0xff]
                %284 = vst [vmem:[%s250 + $0x80] sm:$0xff] %v283
                %v285 = vld [vmem:[%s249 + $0x88] sm:$0xff]
                %286 = vst [vmem:[%s250 + $0x88] sm:$0xff] %v285
                %v287 = vld [vmem:[%s249 + $0x90] sm:$0xff]
                %288 = vst [vmem:[%s250 + $0x90] sm:$0xff] %v287
                %v289 = vld [vmem:[%s249 + $0x98] sm:$0xff]
                %290 = vst [vmem:[%s250 + $0x98] sm:$0xff] %v289
                %v291 = vld [vmem:[%s249 + $0x140] sm:$0xff]
                %292 = vst [vmem:[%s250 + $0xa0] sm:$0xff] %v291
                %v293 = vld [vmem:[%s249 + $0x148] sm:$0xff]
                %294 = vst [vmem:[%s250 + $0xa8] sm:$0xff] %v293
                %v295 = vld [vmem:[%s249 + $0x150] sm:$0xff]
                %296 = vst [vmem:[%s250 + $0xb0] sm:$0xff] %v295
                %v297 = vld [vmem:[%s249 + $0x158] sm:$0xff]
                %298 = vst [vmem:[%s250 + $0xb8] sm:$0xff] %v297
                %v299 = vld [vmem:[%s249 + $0x160] sm:$0xff]
                %300 = vst [vmem:[%s250 + $0xc0] sm:$0xff] %v299
                %v301 = vld [vmem:[%s249 + $0x168] sm:$0xff]
                %302 = vst [vmem:[%s250 + $0xc8] sm:$0xff] %v301
                %v303 = vld [vmem:[%s249 + $0x170] sm:$0xff]
                %304 = vst [vmem:[%s250 + $0xd0] sm:$0xff] %v303
                %v305 = vld [vmem:[%s249 + $0x178] sm:$0xff]
                %306 = vst [vmem:[%s250 + $0xd8] sm:$0xff] %v305
                %v307 = vld [vmem:[%s249 + $0x180] sm:$0xff]
                %308 = vst [vmem:[%s250 + $0xe0] sm:$0xff] %v307
                %v309 = vld [vmem:[%s249 + $0x188] sm:$0xff]
                %310 = vst [vmem:[%s250 + $0xe8] sm:$0xff] %v309
                %v311 = vld [vmem:[%s249 + $0x190] sm:$0xff]
                %312 = vst [vmem:[%s250 + $0xf0] sm:$0xff] %v311
                %v313 = vld [vmem:[%s249 + $0x198] sm:$0xff]
                %314 = vst [vmem:[%s250 + $0xf8] sm:$0xff] %v313
                %v315 = vld [vmem:[%s249 + $0x1a0] sm:$0xff]
                %316 = vst [vmem:[%s250 + $0x100] sm:$0xff] %v315
                %v317 = vld [vmem:[%s249 + $0x1a8] sm:$0xff]
                %318 = vst [vmem:[%s250 + $0x108] sm:$0xff] %v317
                %v319 = vld [vmem:[%s249 + $0x1b0] sm:$0xff]
                %320 = vst [vmem:[%s250 + $0x110] sm:$0xff] %v319
                %v321 = vld [vmem:[%s249 + $0x1b8] sm:$0xff]
                %322 = vst [vmem:[%s250 + $0x118] sm:$0xff] %v321
                %v323 = vld [vmem:[%s249 + $0x1c0] sm:$0xff]
                %324 = vst [vmem:[%s250 + $0x120] sm:$0xff] %v323
                %v325 = vld [vmem:[%s249 + $0x1c8] sm:$0xff]
                %326 = vst [vmem:[%s250 + $0x128] sm:$0xff] %v325
                %v327 = vld [vmem:[%s249 + $0x1d0] sm:$0xff]
                %328 = vst [vmem:[%s250 + $0x130] sm:$0xff] %v327
                %v329 = vld [vmem:[%s249 + $0x1d8] sm:$0xff]
                %330 = vst [vmem:[%s250 + $0x138] sm:$0xff] %v329
                %v331 = vld [vmem:[%s249 + $0x280] sm:$0xff]
                %332 = vst [vmem:[%s250 + $0x140] sm:$0xff] %v331
                %v333 = vld [vmem:[%s249 + $0x288] sm:$0xff]
                %334 = vst [vmem:[%s250 + $0x148] sm:$0xff] %v333
                %v335 = vld [vmem:[%s249 + $0x290] sm:$0xff]
                %336 = vst [vmem:[%s250 + $0x150] sm:$0xff] %v335
                %v337 = vld [vmem:[%s249 + $0x298] sm:$0xff]
                %338 = vst [vmem:[%s250 + $0x158] sm:$0xff] %v337
                %v339 = vld [vmem:[%s249 + $0x2a0] sm:$0xff]
                %340 = vst [vmem:[%s250 + $0x160] sm:$0xff] %v339
                %v341 = vld [vmem:[%s249 + $0x2a8] sm:$0xff]
                %342 = vst [vmem:[%s250 + $0x168] sm:$0xff] %v341
                %v343 = vld [vmem:[%s249 + $0x2b0] sm:$0xff]
                %344 = vst [vmem:[%s250 + $0x170] sm:$0xff] %v343
                %v345 = vld [vmem:[%s249 + $0x2b8] sm:$0xff]
                %346 = vst [vmem:[%s250 + $0x178] sm:$0xff] %v345
                %v347 = vld [vmem:[%s249 + $0x2c0] sm:$0xff]
                %348 = vst [vmem:[%s250 + $0x180] sm:$0xff] %v347
                %v349 = vld [vmem:[%s249 + $0x2c8] sm:$0xff]
                %350 = vst [vmem:[%s250 + $0x188] sm:$0xff] %v349
                %v351 = vld [vmem:[%s249 + $0x2d0] sm:$0xff]
                %352 = vst [vmem:[%s250 + $0x190] sm:$0xff] %v351
                %v353 = vld [vmem:[%s249 + $0x2d8] sm:$0xff]
                %354 = vst [vmem:[%s250 + $0x198] sm:$0xff] %v353
                %v355 = vld [vmem:[%s249 + $0x2e0] sm:$0xff]
                %356 = vst [vmem:[%s250 + $0x1a0] sm:$0xff] %v355
                %v357 = vld [vmem:[%s249 + $0x2e8] sm:$0xff]
                %358 = vst [vmem:[%s250 + $0x1a8] sm:$0xff] %v357
                %v359 = vld [vmem:[%s249 + $0x2f0] sm:$0xff]
                %360 = vst [vmem:[%s250 + $0x1b0] sm:$0xff] %v359
                %v361 = vld [vmem:[%s249 + $0x2f8] sm:$0xff]
                %362 = vst [vmem:[%s250 + $0x1b8] sm:$0xff] %v361
                %v363 = vld [vmem:[%s249 + $0x300] sm:$0xff]
                %364 = vst [vmem:[%s250 + $0x1c0] sm:$0xff] %v363
                %v365 = vld [vmem:[%s249 + $0x308] sm:$0xff]
                %366 = vst [vmem:[%s250 + $0x1c8] sm:$0xff] %v365
                %v367 = vld [vmem:[%s249 + $0x310] sm:$0xff]
                %368 = vst [vmem:[%s250 + $0x1d0] sm:$0xff] %v367
                %v369 = vld [vmem:[%s249 + $0x318] sm:$0xff]
                %370 = vst [vmem:[%s250 + $0x1d8] sm:$0xff] %v369
                %v371 = vld [vmem:[%s249 + $0x3c0] sm:$0xff]
                %372 = vst [vmem:[%s250 + $0x1e0] sm:$0xff] %v371
                %v373 = vld [vmem:[%s249 + $0x3c8] sm:$0xff]
                %374 = vst [vmem:[%s250 + $0x1e8] sm:$0xff] %v373
                %v375 = vld [vmem:[%s249 + $0x3d0] sm:$0xff]
                %376 = vst [vmem:[%s250 + $0x1f0] sm:$0xff] %v375
                %v377 = vld [vmem:[%s249 + $0x3d8] sm:$0xff]
                %378 = vst [vmem:[%s250 + $0x1f8] sm:$0xff] %v377
                %v379 = vld [vmem:[%s249 + $0x3e0] sm:$0xff]
                %380 = vst [vmem:[%s250 + $0x200] sm:$0xff] %v379
                %v381 = vld [vmem:[%s249 + $0x3e8] sm:$0xff]
                %382 = vst [vmem:[%s250 + $0x208] sm:$0xff] %v381
                %v383 = vld [vmem:[%s249 + $0x3f0] sm:$0xff]
                %384 = vst [vmem:[%s250 + $0x210] sm:$0xff] %v383
                %v385 = vld [vmem:[%s249 + $0x3f8] sm:$0xff]
                %386 = vst [vmem:[%s250 + $0x218] sm:$0xff] %v385
                %v387 = vld [vmem:[%s249 + $0x400] sm:$0xff]
                %388 = vst [vmem:[%s250 + $0x220] sm:$0xff] %v387
                %v389 = vld [vmem:[%s249 + $0x408] sm:$0xff]
                %390 = vst [vmem:[%s250 + $0x228] sm:$0xff] %v389
                %v391 = vld [vmem:[%s249 + $0x410] sm:$0xff]
                %392 = vst [vmem:[%s250 + $0x230] sm:$0xff] %v391
                %v393 = vld [vmem:[%s249 + $0x418] sm:$0xff]
                %394 = vst [vmem:[%s250 + $0x238] sm:$0xff] %v393
                %v395 = vld [vmem:[%s249 + $0x420] sm:$0xff]
                %396 = vst [vmem:[%s250 + $0x240] sm:$0xff] %v395
                %v397 = vld [vmem:[%s249 + $0x428] sm:$0xff]
                %398 = vst [vmem:[%s250 + $0x248] sm:$0xff] %v397
                %v399 = vld [vmem:[%s249 + $0x430] sm:$0xff]
                %400 = vst [vmem:[%s250 + $0x250] sm:$0xff] %v399
                %v401 = vld [vmem:[%s249 + $0x438] sm:$0xff]
                %402 = vst [vmem:[%s250 + $0x258] sm:$0xff] %v401
                %v403 = vld [vmem:[%s249 + $0x440] sm:$0xff]
                %404 = vst [vmem:[%s250 + $0x260] sm:$0xff] %v403
                %v405 = vld [vmem:[%s249 + $0x448] sm:$0xff]
                %406 = vst [vmem:[%s250 + $0x268] sm:$0xff] %v405
                %v407 = vld [vmem:[%s249 + $0x450] sm:$0xff]
                %408 = vst [vmem:[%s250 + $0x270] sm:$0xff] %v407
                %v409 = vld [vmem:[%s249 + $0x458] sm:$0xff]
                %410 = vst [vmem:[%s250 + $0x278] sm:$0xff] %v409
                %v411 = vld [vmem:[%s249 + $0x500] sm:$0xff]
                %412 = vst [vmem:[%s250 + $0x280] sm:$0xff] %v411
                %v413 = vld [vmem:[%s249 + $0x508] sm:$0xff]
                %414 = vst [vmem:[%s250 + $0x288] sm:$0xff] %v413
                %v415 = vld [vmem:[%s249 + $0x510] sm:$0xff]
                %416 = vst [vmem:[%s250 + $0x290] sm:$0xff] %v415
                %v417 = vld [vmem:[%s249 + $0x518] sm:$0xff]
                %418 = vst [vmem:[%s250 + $0x298] sm:$0xff] %v417
                %v419 = vld [vmem:[%s249 + $0x520] sm:$0xff]
                %420 = vst [vmem:[%s250 + $0x2a0] sm:$0xff] %v419
                %v421 = vld [vmem:[%s249 + $0x528] sm:$0xff]
                %422 = vst [vmem:[%s250 + $0x2a8] sm:$0xff] %v421
                %v423 = vld [vmem:[%s249 + $0x530] sm:$0xff]
                %424 = vst [vmem:[%s250 + $0x2b0] sm:$0xff] %v423
                %v425 = vld [vmem:[%s249 + $0x538] sm:$0xff]
                %426 = vst [vmem:[%s250 + $0x2b8] sm:$0xff] %v425
                %v427 = vld [vmem:[%s249 + $0x540] sm:$0xff]
                %428 = vst [vmem:[%s250 + $0x2c0] sm:$0xff] %v427
                %v429 = vld [vmem:[%s249 + $0x548] sm:$0xff]
                %430 = vst [vmem:[%s250 + $0x2c8] sm:$0xff] %v429
                %v431 = vld [vmem:[%s249 + $0x550] sm:$0xff]
                %432 = vst [vmem:[%s250 + $0x2d0] sm:$0xff] %v431
                %v433 = vld [vmem:[%s249 + $0x558] sm:$0xff]
                %434 = vst [vmem:[%s250 + $0x2d8] sm:$0xff] %v433
                %v435 = vld [vmem:[%s249 + $0x560] sm:$0xff]
                %436 = vst [vmem:[%s250 + $0x2e0] sm:$0xff] %v435
                %v437 = vld [vmem:[%s249 + $0x568] sm:$0xff]
                %438 = vst [vmem:[%s250 + $0x2e8] sm:$0xff] %v437
                %v439 = vld [vmem:[%s249 + $0x570] sm:$0xff]
                %440 = vst [vmem:[%s250 + $0x2f0] sm:$0xff] %v439
                %v441 = vld [vmem:[%s249 + $0x578] sm:$0xff]
                %442 = vst [vmem:[%s250 + $0x2f8] sm:$0xff] %v441
                %v443 = vld [vmem:[%s249 + $0x580] sm:$0xff]
                %444 = vst [vmem:[%s250 + $0x300] sm:$0xff] %v443
                %v445 = vld [vmem:[%s249 + $0x588] sm:$0xff]
                %446 = vst [vmem:[%s250 + $0x308] sm:$0xff] %v445
                %v447 = vld [vmem:[%s249 + $0x590] sm:$0xff]
                %448 = vst [vmem:[%s250 + $0x310] sm:$0xff] %v447
                %v449 = vld [vmem:[%s249 + $0x598] sm:$0xff]
                %450 = vst [vmem:[%s250 + $0x318] sm:$0xff] %v449
                %v451 = vld [vmem:[%s249 + $0x640] sm:$0xff]
                %452 = vst [vmem:[%s250 + $0x320] sm:$0xff] %v451
                %v453 = vld [vmem:[%s249 + $0x648] sm:$0xff]
                %454 = vst [vmem:[%s250 + $0x328] sm:$0xff] %v453
                %v455 = vld [vmem:[%s249 + $0x650] sm:$0xff]
                %456 = vst [vmem:[%s250 + $0x330] sm:$0xff] %v455
                %v457 = vld [vmem:[%s249 + $0x658] sm:$0xff]
                %458 = vst [vmem:[%s250 + $0x338] sm:$0xff] %v457
                %v459 = vld [vmem:[%s249 + $0x660] sm:$0xff]
                %460 = vst [vmem:[%s250 + $0x340] sm:$0xff] %v459
                %v461 = vld [vmem:[%s249 + $0x668] sm:$0xff]
                %462 = vst [vmem:[%s250 + $0x348] sm:$0xff] %v461
                %v463 = vld [vmem:[%s249 + $0x670] sm:$0xff]
                %464 = vst [vmem:[%s250 + $0x350] sm:$0xff] %v463
                %v465 = vld [vmem:[%s249 + $0x678] sm:$0xff]
                %466 = vst [vmem:[%s250 + $0x358] sm:$0xff] %v465
                %v467 = vld [vmem:[%s249 + $0x680] sm:$0xff]
                %468 = vst [vmem:[%s250 + $0x360] sm:$0xff] %v467
                %v469 = vld [vmem:[%s249 + $0x688] sm:$0xff]
                %470 = vst [vmem:[%s250 + $0x368] sm:$0xff] %v469
                %v471 = vld [vmem:[%s249 + $0x690] sm:$0xff]
                %472 = vst [vmem:[%s250 + $0x370] sm:$0xff] %v471
                %v473 = vld [vmem:[%s249 + $0x698] sm:$0xff]
                %474 = vst [vmem:[%s250 + $0x378] sm:$0xff] %v473
                %v475 = vld [vmem:[%s249 + $0x6a0] sm:$0xff]
                %476 = vst [vmem:[%s250 + $0x380] sm:$0xff] %v475
                %v477 = vld [vmem:[%s249 + $0x6a8] sm:$0xff]
                %478 = vst [vmem:[%s250 + $0x388] sm:$0xff] %v477
                %v479 = vld [vmem:[%s249 + $0x6b0] sm:$0xff]
                %480 = vst [vmem:[%s250 + $0x390] sm:$0xff] %v479
                %v481 = vld [vmem:[%s249 + $0x6b8] sm:$0xff]
                %482 = vst [vmem:[%s250 + $0x398] sm:$0xff] %v481
                %v483 = vld [vmem:[%s249 + $0x6c0] sm:$0xff]
                %484 = vst [vmem:[%s250 + $0x3a0] sm:$0xff] %v483
                %v485 = vld [vmem:[%s249 + $0x6c8] sm:$0xff]
                %486 = vst [vmem:[%s250 + $0x3a8] sm:$0xff] %v485
                %v487 = vld [vmem:[%s249 + $0x6d0] sm:$0xff]
                %488 = vst [vmem:[%s250 + $0x3b0] sm:$0xff] %v487
                %v489 = vld [vmem:[%s249 + $0x6d8] sm:$0xff]
                %490 = vst [vmem:[%s250 + $0x3b8] sm:$0xff] %v489
                %v491 = vld [vmem:[%s249 + $0x780] sm:$0xff]
                %492 = vst [vmem:[%s250 + $0x3c0] sm:$0xff] %v491
                %v493 = vld [vmem:[%s249 + $0x788] sm:$0xff]
                %494 = vst [vmem:[%s250 + $0x3c8] sm:$0xff] %v493
                %v495 = vld [vmem:[%s249 + $0x790] sm:$0xff]
                %496 = vst [vmem:[%s250 + $0x3d0] sm:$0xff] %v495
                %v497 = vld [vmem:[%s249 + $0x798] sm:$0xff]
                %498 = vst [vmem:[%s250 + $0x3d8] sm:$0xff] %v497
                %v499 = vld [vmem:[%s249 + $0x7a0] sm:$0xff]
                %500 = vst [vmem:[%s250 + $0x3e0] sm:$0xff] %v499
                %v501 = vld [vmem:[%s249 + $0x7a8] sm:$0xff]
                %502 = vst [vmem:[%s250 + $0x3e8] sm:$0xff] %v501
                %v503 = vld [vmem:[%s249 + $0x7b0] sm:$0xff]
                %504 = vst [vmem:[%s250 + $0x3f0] sm:$0xff] %v503
                %v505 = vld [vmem:[%s249 + $0x7b8] sm:$0xff]
                %506 = vst [vmem:[%s250 + $0x3f8] sm:$0xff] %v505
                %v507 = vld [vmem:[%s249 + $0x7c0] sm:$0xff]
                %508 = vst [vmem:[%s250 + $0x400] sm:$0xff] %v507
                %v509 = vld [vmem:[%s249 + $0x7c8] sm:$0xff]
                %510 = vst [vmem:[%s250 + $0x408] sm:$0xff] %v509
                %v511 = vld [vmem:[%s249 + $0x7d0] sm:$0xff]
                %512 = vst [vmem:[%s250 + $0x410] sm:$0xff] %v511
                %v513 = vld [vmem:[%s249 + $0x7d8] sm:$0xff]
                %514 = vst [vmem:[%s250 + $0x418] sm:$0xff] %v513
                %v515 = vld [vmem:[%s249 + $0x7e0] sm:$0xff]
                %516 = vst [vmem:[%s250 + $0x420] sm:$0xff] %v515
                %v517 = vld [vmem:[%s249 + $0x7e8] sm:$0xff]
                %518 = vst [vmem:[%s250 + $0x428] sm:$0xff] %v517
                %v519 = vld [vmem:[%s249 + $0x7f0] sm:$0xff]
                %520 = vst [vmem:[%s250 + $0x430] sm:$0xff] %v519
                %v521 = vld [vmem:[%s249 + $0x7f8] sm:$0xff]
                %522 = vst [vmem:[%s250 + $0x438] sm:$0xff] %v521
                %v523 = vld [vmem:[%s249 + $0x800] sm:$0xff]
                %524 = vst [vmem:[%s250 + $0x440] sm:$0xff] %v523
                %v525 = vld [vmem:[%s249 + $0x808] sm:$0xff]
                %526 = vst [vmem:[%s250 + $0x448] sm:$0xff] %v525
                %v527 = vld [vmem:[%s249 + $0x810] sm:$0xff]
                %528 = vst [vmem:[%s250 + $0x450] sm:$0xff] %v527
                %v529 = vld [vmem:[%s249 + $0x818] sm:$0xff]
                %530 = vst [vmem:[%s250 + $0x458] sm:$0xff] %v529
                %v531 = vld [vmem:[%s249 + $0x8c0] sm:$0xff]
                %532 = vst [vmem:[%s250 + $0x460] sm:$0xff] %v531
                %v533 = vld [vmem:[%s249 + $0x8c8] sm:$0xff]
                %534 = vst [vmem:[%s250 + $0x468] sm:$0xff] %v533
                %v535 = vld [vmem:[%s249 + $0x8d0] sm:$0xff]
                %536 = vst [vmem:[%s250 + $0x470] sm:$0xff] %v535
                %v537 = vld [vmem:[%s249 + $0x8d8] sm:$0xff]
                %538 = vst [vmem:[%s250 + $0x478] sm:$0xff] %v537
                %v539 = vld [vmem:[%s249 + $0x8e0] sm:$0xff]
                %540 = vst [vmem:[%s250 + $0x480] sm:$0xff] %v539
                %v541 = vld [vmem:[%s249 + $0x8e8] sm:$0xff]
                %542 = vst [vmem:[%s250 + $0x488] sm:$0xff] %v541
                %v543 = vld [vmem:[%s249 + $0x8f0] sm:$0xff]
                %544 = vst [vmem:[%s250 + $0x490] sm:$0xff] %v543
                %v545 = vld [vmem:[%s249 + $0x8f8] sm:$0xff]
                %546 = vst [vmem:[%s250 + $0x498] sm:$0xff] %v545
                %v547 = vld [vmem:[%s249 + $0x900] sm:$0xff]
                %548 = vst [vmem:[%s250 + $0x4a0] sm:$0xff] %v547
                %v549 = vld [vmem:[%s249 + $0x908] sm:$0xff]
                %550 = vst [vmem:[%s250 + $0x4a8] sm:$0xff] %v549
                %v551 = vld [vmem:[%s249 + $0x910] sm:$0xff]
                %552 = vst [vmem:[%s250 + $0x4b0] sm:$0xff] %v551
                %v553 = vld [vmem:[%s249 + $0x918] sm:$0xff]
                %554 = vst [vmem:[%s250 + $0x4b8] sm:$0xff] %v553
                %v555 = vld [vmem:[%s249 + $0x920] sm:$0xff]
                %556 = vst [vmem:[%s250 + $0x4c0] sm:$0xff] %v555
                %v557 = vld [vmem:[%s249 + $0x928] sm:$0xff]
                %558 = vst [vmem:[%s250 + $0x4c8] sm:$0xff] %v557
                %v559 = vld [vmem:[%s249 + $0x930] sm:$0xff]
                %560 = vst [vmem:[%s250 + $0x4d0] sm:$0xff] %v559
                %v561 = vld [vmem:[%s249 + $0x938] sm:$0xff]
                %562 = vst [vmem:[%s250 + $0x4d8] sm:$0xff] %v561
                %v563 = vld [vmem:[%s249 + $0x940] sm:$0xff]
                %564 = vst [vmem:[%s250 + $0x4e0] sm:$0xff] %v563
                %v565 = vld [vmem:[%s249 + $0x948] sm:$0xff]
                %566 = vst [vmem:[%s250 + $0x4e8] sm:$0xff] %v565
                %v567 = vld [vmem:[%s249 + $0x950] sm:$0xff]
                %568 = vst [vmem:[%s250 + $0x4f0] sm:$0xff] %v567
                %v569 = vld [vmem:[%s249 + $0x958] sm:$0xff]
                %570 = vst [vmem:[%s250 + $0x4f8] sm:$0xff] %v569
                %v571 = vld [vmem:[%s249 + $0xa00] sm:$0xff]
                %572 = vst [vmem:[%s250 + $0x500] sm:$0xff] %v571
                %v573 = vld [vmem:[%s249 + $0xa08] sm:$0xff]
                %574 = vst [vmem:[%s250 + $0x508] sm:$0xff] %v573
                %v575 = vld [vmem:[%s249 + $0xa10] sm:$0xff]
                %576 = vst [vmem:[%s250 + $0x510] sm:$0xff] %v575
                %v577 = vld [vmem:[%s249 + $0xa18] sm:$0xff]
                %578 = vst [vmem:[%s250 + $0x518] sm:$0xff] %v577
                %v579 = vld [vmem:[%s249 + $0xa20] sm:$0xff]
                %580 = vst [vmem:[%s250 + $0x520] sm:$0xff] %v579
                %v581 = vld [vmem:[%s249 + $0xa28] sm:$0xff]
                %582 = vst [vmem:[%s250 + $0x528] sm:$0xff] %v581
                %v583 = vld [vmem:[%s249 + $0xa30] sm:$0xff]
                %584 = vst [vmem:[%s250 + $0x530] sm:$0xff] %v583
                %v585 = vld [vmem:[%s249 + $0xa38] sm:$0xff]
                %586 = vst [vmem:[%s250 + $0x538] sm:$0xff] %v585
                %v587 = vld [vmem:[%s249 + $0xa40] sm:$0xff]
                %588 = vst [vmem:[%s250 + $0x540] sm:$0xff] %v587
                %v589 = vld [vmem:[%s249 + $0xa48] sm:$0xff]
                %590 = vst [vmem:[%s250 + $0x548] sm:$0xff] %v589
                %v591 = vld [vmem:[%s249 + $0xa50] sm:$0xff]
                %592 = vst [vmem:[%s250 + $0x550] sm:$0xff] %v591
                %v593 = vld [vmem:[%s249 + $0xa58] sm:$0xff]
                %594 = vst [vmem:[%s250 + $0x558] sm:$0xff] %v593
                %v595 = vld [vmem:[%s249 + $0xa60] sm:$0xff]
                %596 = vst [vmem:[%s250 + $0x560] sm:$0xff] %v595
                %v597 = vld [vmem:[%s249 + $0xa68] sm:$0xff]
                %598 = vst [vmem:[%s250 + $0x568] sm:$0xff] %v597
                %v599 = vld [vmem:[%s249 + $0xa70] sm:$0xff]
                %600 = vst [vmem:[%s250 + $0x570] sm:$0xff] %v599
                %v601 = vld [vmem:[%s249 + $0xa78] sm:$0xff]
                %602 = vst [vmem:[%s250 + $0x578] sm:$0xff] %v601
                %v603 = vld [vmem:[%s249 + $0xa80] sm:$0xff]
                %604 = vst [vmem:[%s250 + $0x580] sm:$0xff] %v603
                %v605 = vld [vmem:[%s249 + $0xa88] sm:$0xff]
                %606 = vst [vmem:[%s250 + $0x588] sm:$0xff] %v605
                %v607 = vld [vmem:[%s249 + $0xa90] sm:$0xff]
                %608 = vst [vmem:[%s250 + $0x590] sm:$0xff] %v607
                %v609 = vld [vmem:[%s249 + $0xa98] sm:$0xff]
                %610 = vst [vmem:[%s250 + $0x598] sm:$0xff] %v609
                %v611 = vld [vmem:[%s249 + $0xb40] sm:$0xff]
                %612 = vst [vmem:[%s250 + $0x5a0] sm:$0xff] %v611
                %v613 = vld [vmem:[%s249 + $0xb48] sm:$0xff]
                %614 = vst [vmem:[%s250 + $0x5a8] sm:$0xff] %v613
                %v615 = vld [vmem:[%s249 + $0xb50] sm:$0xff]
                %616 = vst [vmem:[%s250 + $0x5b0] sm:$0xff] %v615
                %v617 = vld [vmem:[%s249 + $0xb58] sm:$0xff]
                %618 = vst [vmem:[%s250 + $0x5b8] sm:$0xff] %v617
                %v619 = vld [vmem:[%s249 + $0xb60] sm:$0xff]
                %620 = vst [vmem:[%s250 + $0x5c0] sm:$0xff] %v619
                %v621 = vld [vmem:[%s249 + $0xb68] sm:$0xff]
                %622 = vst [vmem:[%s250 + $0x5c8] sm:$0xff] %v621
                %v623 = vld [vmem:[%s249 + $0xb70] sm:$0xff]
                %624 = vst [vmem:[%s250 + $0x5d0] sm:$0xff] %v623
                %v625 = vld [vmem:[%s249 + $0xb78] sm:$0xff]
                %626 = vst [vmem:[%s250 + $0x5d8] sm:$0xff] %v625
                %v627 = vld [vmem:[%s249 + $0xb80] sm:$0xff]
                %628 = vst [vmem:[%s250 + $0x5e0] sm:$0xff] %v627
                %v629 = vld [vmem:[%s249 + $0xb88] sm:$0xff]
                %630 = vst [vmem:[%s250 + $0x5e8] sm:$0xff] %v629
                %v631 = vld [vmem:[%s249 + $0xb90] sm:$0xff]
                %632 = vst [vmem:[%s250 + $0x5f0] sm:$0xff] %v631
                %v633 = vld [vmem:[%s249 + $0xb98] sm:$0xff]
                %634 = vst [vmem:[%s250 + $0x5f8] sm:$0xff] %v633
                %v635 = vld [vmem:[%s249 + $0xba0] sm:$0xff]
                %636 = vst [vmem:[%s250 + $0x600] sm:$0xff] %v635
                %v637 = vld [vmem:[%s249 + $0xba8] sm:$0xff]
                %638 = vst [vmem:[%s250 + $0x608] sm:$0xff] %v637
                %v639 = vld [vmem:[%s249 + $0xbb0] sm:$0xff]
                %640 = vst [vmem:[%s250 + $0x610] sm:$0xff] %v639
                %v641 = vld [vmem:[%s249 + $0xbb8] sm:$0xff]
                %642 = vst [vmem:[%s250 + $0x618] sm:$0xff] %v641
                %v643 = vld [vmem:[%s249 + $0xbc0] sm:$0xff]
                %644 = vst [vmem:[%s250 + $0x620] sm:$0xff] %v643
                %v645 = vld [vmem:[%s249 + $0xbc8] sm:$0xff]
                %646 = vst [vmem:[%s250 + $0x628] sm:$0xff] %v645
                %v647 = vld [vmem:[%s249 + $0xbd0] sm:$0xff]
                %648 = vst [vmem:[%s250 + $0x630] sm:$0xff] %v647
                %v649 = vld [vmem:[%s249 + $0xbd8] sm:$0xff]
                %650 = vst [vmem:[%s250 + $0x638] sm:$0xff] %v649
                %v651 = vld [vmem:[%s249 + $0xc80] sm:$0xff]
                %652 = vst [vmem:[%s250 + $0x640] sm:$0xff] %v651
                %v653 = vld [vmem:[%s249 + $0xc88] sm:$0xff]
                %654 = vst [vmem:[%s250 + $0x648] sm:$0xff] %v653
                %v655 = vld [vmem:[%s249 + $0xc90] sm:$0xff]
                %656 = vst [vmem:[%s250 + $0x650] sm:$0xff] %v655
                %v657 = vld [vmem:[%s249 + $0xc98] sm:$0xff]
                %658 = vst [vmem:[%s250 + $0x658] sm:$0xff] %v657
                %v659 = vld [vmem:[%s249 + $0xca0] sm:$0xff]
                %660 = vst [vmem:[%s250 + $0x660] sm:$0xff] %v659
                %v661 = vld [vmem:[%s249 + $0xca8] sm:$0xff]
                %662 = vst [vmem:[%s250 + $0x668] sm:$0xff] %v661
                %v663 = vld [vmem:[%s249 + $0xcb0] sm:$0xff]
                %664 = vst [vmem:[%s250 + $0x670] sm:$0xff] %v663
                %v665 = vld [vmem:[%s249 + $0xcb8] sm:$0xff]
                %666 = vst [vmem:[%s250 + $0x678] sm:$0xff] %v665
                %v667 = vld [vmem:[%s249 + $0xcc0] sm:$0xff]
                %668 = vst [vmem:[%s250 + $0x680] sm:$0xff] %v667
                %v669 = vld [vmem:[%s249 + $0xcc8] sm:$0xff]
                %670 = vst [vmem:[%s250 + $0x688] sm:$0xff] %v669
                %v671 = vld [vmem:[%s249 + $0xcd0] sm:$0xff]
                %672 = vst [vmem:[%s250 + $0x690] sm:$0xff] %v671
                %v673 = vld [vmem:[%s249 + $0xcd8] sm:$0xff]
                %674 = vst [vmem:[%s250 + $0x698] sm:$0xff] %v673
                %v675 = vld [vmem:[%s249 + $0xce0] sm:$0xff]
                %676 = vst [vmem:[%s250 + $0x6a0] sm:$0xff] %v675
                %v677 = vld [vmem:[%s249 + $0xce8] sm:$0xff]
                %678 = vst [vmem:[%s250 + $0x6a8] sm:$0xff] %v677
                %v679 = vld [vmem:[%s249 + $0xcf0] sm:$0xff]
                %680 = vst [vmem:[%s250 + $0x6b0] sm:$0xff] %v679
                %v681 = vld [vmem:[%s249 + $0xcf8] sm:$0xff]
                %682 = vst [vmem:[%s250 + $0x6b8] sm:$0xff] %v681
                %v683 = vld [vmem:[%s249 + $0xd00] sm:$0xff]
                %684 = vst [vmem:[%s250 + $0x6c0] sm:$0xff] %v683
                %v685 = vld [vmem:[%s249 + $0xd08] sm:$0xff]
                %686 = vst [vmem:[%s250 + $0x6c8] sm:$0xff] %v685
                %v687 = vld [vmem:[%s249 + $0xd10] sm:$0xff]
                %688 = vst [vmem:[%s250 + $0x6d0] sm:$0xff] %v687
                %v689 = vld [vmem:[%s249 + $0xd18] sm:$0xff]
                %690 = vst [vmem:[%s250 + $0x6d8] sm:$0xff] %v689
                %v691 = vld [vmem:[%s249 + $0xdc0] sm:$0xff]
                %692 = vst [vmem:[%s250 + $0x6e0] sm:$0xff] %v691
                %v693 = vld [vmem:[%s249 + $0xdc8] sm:$0xff]
                %694 = vst [vmem:[%s250 + $0x6e8] sm:$0xff] %v693
                %v695 = vld [vmem:[%s249 + $0xdd0] sm:$0xff]
                %696 = vst [vmem:[%s250 + $0x6f0] sm:$0xff] %v695
                %v697 = vld [vmem:[%s249 + $0xdd8] sm:$0xff]
                %698 = vst [vmem:[%s250 + $0x6f8] sm:$0xff] %v697
                %v699 = vld [vmem:[%s249 + $0xde0] sm:$0xff]
                %700 = vst [vmem:[%s250 + $0x700] sm:$0xff] %v699
                %v701 = vld [vmem:[%s249 + $0xde8] sm:$0xff]
                %702 = vst [vmem:[%s250 + $0x708] sm:$0xff] %v701
                %v703 = vld [vmem:[%s249 + $0xdf0] sm:$0xff]
                %704 = vst [vmem:[%s250 + $0x710] sm:$0xff] %v703
                %v705 = vld [vmem:[%s249 + $0xdf8] sm:$0xff]
                %706 = vst [vmem:[%s250 + $0x718] sm:$0xff] %v705
                %v707 = vld [vmem:[%s249 + $0xe00] sm:$0xff]
                %708 = vst [vmem:[%s250 + $0x720] sm:$0xff] %v707
                %v709 = vld [vmem:[%s249 + $0xe08] sm:$0xff]
                %710 = vst [vmem:[%s250 + $0x728] sm:$0xff] %v709
                %v711 = vld [vmem:[%s249 + $0xe10] sm:$0xff]
                %712 = vst [vmem:[%s250 + $0x730] sm:$0xff] %v711
                %v713 = vld [vmem:[%s249 + $0xe18] sm:$0xff]
                %714 = vst [vmem:[%s250 + $0x738] sm:$0xff] %v713
                %v715 = vld [vmem:[%s249 + $0xe20] sm:$0xff]
                %716 = vst [vmem:[%s250 + $0x740] sm:$0xff] %v715
                %v717 = vld [vmem:[%s249 + $0xe28] sm:$0xff]
                %718 = vst [vmem:[%s250 + $0x748] sm:$0xff] %v717
                %v719 = vld [vmem:[%s249 + $0xe30] sm:$0xff]
                %720 = vst [vmem:[%s250 + $0x750] sm:$0xff] %v719
                %v721 = vld [vmem:[%s249 + $0xe38] sm:$0xff]
                %722 = vst [vmem:[%s250 + $0x758] sm:$0xff] %v721
                %v723 = vld [vmem:[%s249 + $0xe40] sm:$0xff]
                %724 = vst [vmem:[%s250 + $0x760] sm:$0xff] %v723
                %v725 = vld [vmem:[%s249 + $0xe48] sm:$0xff]
                %726 = vst [vmem:[%s250 + $0x768] sm:$0xff] %v725
                %v727 = vld [vmem:[%s249 + $0xe50] sm:$0xff]
                %728 = vst [vmem:[%s250 + $0x770] sm:$0xff] %v727
                %v729 = vld [vmem:[%s249 + $0xe58] sm:$0xff]
                %730 = vst [vmem:[%s250 + $0x778] sm:$0xff] %v729
                %v731 = vld [vmem:[%s249 + $0xf00] sm:$0xff]
                %732 = vst [vmem:[%s250 + $0x780] sm:$0xff] %v731
                %v733 = vld [vmem:[%s249 + $0xf08] sm:$0xff]
                %734 = vst [vmem:[%s250 + $0x788] sm:$0xff] %v733
                %v735 = vld [vmem:[%s249 + $0xf10] sm:$0xff]
                %736 = vst [vmem:[%s250 + $0x790] sm:$0xff] %v735
                %v737 = vld [vmem:[%s249 + $0xf18] sm:$0xff]
                %738 = vst [vmem:[%s250 + $0x798] sm:$0xff] %v737
                %v739 = vld [vmem:[%s249 + $0xf20] sm:$0xff]
                %740 = vst [vmem:[%s250 + $0x7a0] sm:$0xff] %v739
                %v741 = vld [vmem:[%s249 + $0xf28] sm:$0xff]
                %742 = vst [vmem:[%s250 + $0x7a8] sm:$0xff] %v741
                %v743 = vld [vmem:[%s249 + $0xf30] sm:$0xff]
                %744 = vst [vmem:[%s250 + $0x7b0] sm:$0xff] %v743
                %v745 = vld [vmem:[%s249 + $0xf38] sm:$0xff]
                %746 = vst [vmem:[%s250 + $0x7b8] sm:$0xff] %v745
                %v747 = vld [vmem:[%s249 + $0xf40] sm:$0xff]
                %748 = vst [vmem:[%s250 + $0x7c0] sm:$0xff] %v747
                %v749 = vld [vmem:[%s249 + $0xf48] sm:$0xff]
                %750 = vst [vmem:[%s250 + $0x7c8] sm:$0xff] %v749
                %v751 = vld [vmem:[%s249 + $0xf50] sm:$0xff]
                %752 = vst [vmem:[%s250 + $0x7d0] sm:$0xff] %v751
                %v753 = vld [vmem:[%s249 + $0xf58] sm:$0xff]
                %754 = vst [vmem:[%s250 + $0x7d8] sm:$0xff] %v753
                %v755 = vld [vmem:[%s249 + $0xf60] sm:$0xff]
                %756 = vst [vmem:[%s250 + $0x7e0] sm:$0xff] %v755
                %v757 = vld [vmem:[%s249 + $0xf68] sm:$0xff]
                %758 = vst [vmem:[%s250 + $0x7e8] sm:$0xff] %v757
                %v759 = vld [vmem:[%s249 + $0xf70] sm:$0xff]
                %760 = vst [vmem:[%s250 + $0x7f0] sm:$0xff] %v759
                %v761 = vld [vmem:[%s249 + $0xf78] sm:$0xff]
                %762 = vst [vmem:[%s250 + $0x7f8] sm:$0xff] %v761
                %v763 = vld [vmem:[%s249 + $0xf80] sm:$0xff]
                %764 = vst [vmem:[%s250 + $0x800] sm:$0xff] %v763
                %v765 = vld [vmem:[%s249 + $0xf88] sm:$0xff]
                %766 = vst [vmem:[%s250 + $0x808] sm:$0xff] %v765
                %v767 = vld [vmem:[%s249 + $0xf90] sm:$0xff]
                %768 = vst [vmem:[%s250 + $0x810] sm:$0xff] %v767
                %v769 = vld [vmem:[%s249 + $0xf98] sm:$0xff]
                %770 = vst [vmem:[%s250 + $0x818] sm:$0xff] %v769
                %v771 = vld [vmem:[%s249 + $0x1040] sm:$0xff]
                %772 = vst [vmem:[%s250 + $0x820] sm:$0xff] %v771
                %v773 = vld [vmem:[%s249 + $0x1048] sm:$0xff]
                %774 = vst [vmem:[%s250 + $0x828] sm:$0xff] %v773
                %v775 = vld [vmem:[%s249 + $0x1050] sm:$0xff]
                %776 = vst [vmem:[%s250 + $0x830] sm:$0xff] %v775
                %v777 = vld [vmem:[%s249 + $0x1058] sm:$0xff]
                %778 = vst [vmem:[%s250 + $0x838] sm:$0xff] %v777
                %v779 = vld [vmem:[%s249 + $0x1060] sm:$0xff]
                %780 = vst [vmem:[%s250 + $0x840] sm:$0xff] %v779
                %v781 = vld [vmem:[%s249 + $0x1068] sm:$0xff]
                %782 = vst [vmem:[%s250 + $0x848] sm:$0xff] %v781
                %v783 = vld [vmem:[%s249 + $0x1070] sm:$0xff]
                %784 = vst [vmem:[%s250 + $0x850] sm:$0xff] %v783
                %v785 = vld [vmem:[%s249 + $0x1078] sm:$0xff]
                %786 = vst [vmem:[%s250 + $0x858] sm:$0xff] %v785
                %v787 = vld [vmem:[%s249 + $0x1080] sm:$0xff]
                %788 = vst [vmem:[%s250 + $0x860] sm:$0xff] %v787
                %v789 = vld [vmem:[%s249 + $0x1088] sm:$0xff]
                %790 = vst [vmem:[%s250 + $0x868] sm:$0xff] %v789
                %v791 = vld [vmem:[%s249 + $0x1090] sm:$0xff]
                %792 = vst [vmem:[%s250 + $0x870] sm:$0xff] %v791
                %v793 = vld [vmem:[%s249 + $0x1098] sm:$0xff]
                %794 = vst [vmem:[%s250 + $0x878] sm:$0xff] %v793
                %v795 = vld [vmem:[%s249 + $0x10a0] sm:$0xff]
                %796 = vst [vmem:[%s250 + $0x880] sm:$0xff] %v795
                %v797 = vld [vmem:[%s249 + $0x10a8] sm:$0xff]
                %798 = vst [vmem:[%s250 + $0x888] sm:$0xff] %v797
                %v799 = vld [vmem:[%s249 + $0x10b0] sm:$0xff]
                %800 = vst [vmem:[%s250 + $0x890] sm:$0xff] %v799
                %v801 = vld [vmem:[%s249 + $0x10b8] sm:$0xff]
                %802 = vst [vmem:[%s250 + $0x898] sm:$0xff] %v801
                %v803 = vld [vmem:[%s249 + $0x10c0] sm:$0xff]
                %804 = vst [vmem:[%s250 + $0x8a0] sm:$0xff] %v803
                %v805 = vld [vmem:[%s249 + $0x10c8] sm:$0xff]
                %806 = vst [vmem:[%s250 + $0x8a8] sm:$0xff] %v805
                %v807 = vld [vmem:[%s249 + $0x10d0] sm:$0xff]
                %808 = vst [vmem:[%s250 + $0x8b0] sm:$0xff] %v807
                %v809 = vld [vmem:[%s249 + $0x10d8] sm:$0xff]
                %810 = vst [vmem:[%s250 + $0x8b8] sm:$0xff] %v809
                %v811 = vld [vmem:[%s249 + $0x1180] sm:$0xff]
                %812 = vst [vmem:[%s250 + $0x8c0] sm:$0xff] %v811
                %v813 = vld [vmem:[%s249 + $0x1188] sm:$0xff]
                %814 = vst [vmem:[%s250 + $0x8c8] sm:$0xff] %v813
                %v815 = vld [vmem:[%s249 + $0x1190] sm:$0xff]
                %816 = vst [vmem:[%s250 + $0x8d0] sm:$0xff] %v815
                %v817 = vld [vmem:[%s249 + $0x1198] sm:$0xff]
                %818 = vst [vmem:[%s250 + $0x8d8] sm:$0xff] %v817
                %v819 = vld [vmem:[%s249 + $0x11a0] sm:$0xff]
                %820 = vst [vmem:[%s250 + $0x8e0] sm:$0xff] %v819
                %v821 = vld [vmem:[%s249 + $0x11a8] sm:$0xff]
                %822 = vst [vmem:[%s250 + $0x8e8] sm:$0xff] %v821
                %v823 = vld [vmem:[%s249 + $0x11b0] sm:$0xff]
                %824 = vst [vmem:[%s250 + $0x8f0] sm:$0xff] %v823
                %v825 = vld [vmem:[%s249 + $0x11b8] sm:$0xff]
                %826 = vst [vmem:[%s250 + $0x8f8] sm:$0xff] %v825
                %v827 = vld [vmem:[%s249 + $0x11c0] sm:$0xff]
                %828 = vst [vmem:[%s250 + $0x900] sm:$0xff] %v827
                %v829 = vld [vmem:[%s249 + $0x11c8] sm:$0xff]
                %830 = vst [vmem:[%s250 + $0x908] sm:$0xff] %v829
                %v831 = vld [vmem:[%s249 + $0x11d0] sm:$0xff]
                %832 = vst [vmem:[%s250 + $0x910] sm:$0xff] %v831
                %v833 = vld [vmem:[%s249 + $0x11d8] sm:$0xff]
                %834 = vst [vmem:[%s250 + $0x918] sm:$0xff] %v833
                %v835 = vld [vmem:[%s249 + $0x11e0] sm:$0xff]
                %836 = vst [vmem:[%s250 + $0x920] sm:$0xff] %v835
                %v837 = vld [vmem:[%s249 + $0x11e8] sm:$0xff]
                %838 = vst [vmem:[%s250 + $0x928] sm:$0xff] %v837
                %v839 = vld [vmem:[%s249 + $0x11f0] sm:$0xff]
                %840 = vst [vmem:[%s250 + $0x930] sm:$0xff] %v839
                %v841 = vld [vmem:[%s249 + $0x11f8] sm:$0xff]
                %842 = vst [vmem:[%s250 + $0x938] sm:$0xff] %v841
                %v843 = vld [vmem:[%s249 + $0x1200] sm:$0xff]
                %844 = vst [vmem:[%s250 + $0x940] sm:$0xff] %v843
                %v845 = vld [vmem:[%s249 + $0x1208] sm:$0xff]
                %846 = vst [vmem:[%s250 + $0x948] sm:$0xff] %v845
                %v847 = vld [vmem:[%s249 + $0x1210] sm:$0xff]
                %848 = vst [vmem:[%s250 + $0x950] sm:$0xff] %v847
                %v849 = vld [vmem:[%s249 + $0x1218] sm:$0xff]
                %850 = vst [vmem:[%s250 + $0x958] sm:$0xff] %v849
                %v851 = vld [vmem:[%s249 + $0x12c0] sm:$0xff]
                %852 = vst [vmem:[%s250 + $0x960] sm:$0xff] %v851
                %v853 = vld [vmem:[%s249 + $0x12c8] sm:$0xff]
                %854 = vst [vmem:[%s250 + $0x968] sm:$0xff] %v853
                %v855 = vld [vmem:[%s249 + $0x12d0] sm:$0xff]
                %856 = vst [vmem:[%s250 + $0x970] sm:$0xff] %v855
                %v857 = vld [vmem:[%s249 + $0x12d8] sm:$0xff]
                %858 = vst [vmem:[%s250 + $0x978] sm:$0xff] %v857
                %v859 = vld [vmem:[%s249 + $0x12e0] sm:$0xff]
                %860 = vst [vmem:[%s250 + $0x980] sm:$0xff] %v859
                %v861 = vld [vmem:[%s249 + $0x12e8] sm:$0xff]
                %862 = vst [vmem:[%s250 + $0x988] sm:$0xff] %v861
                %v863 = vld [vmem:[%s249 + $0x12f0] sm:$0xff]
                %864 = vst [vmem:[%s250 + $0x990] sm:$0xff] %v863
                %v865 = vld [vmem:[%s249 + $0x12f8] sm:$0xff]
                %866 = vst [vmem:[%s250 + $0x998] sm:$0xff] %v865
                %v867 = vld [vmem:[%s249 + $0x1300] sm:$0xff]
                %868 = vst [vmem:[%s250 + $0x9a0] sm:$0xff] %v867
                %v869 = vld [vmem:[%s249 + $0x1308] sm:$0xff]
                %870 = vst [vmem:[%s250 + $0x9a8] sm:$0xff] %v869
                %v871 = vld [vmem:[%s249 + $0x1310] sm:$0xff]
                %872 = vst [vmem:[%s250 + $0x9b0] sm:$0xff] %v871
                %v873 = vld [vmem:[%s249 + $0x1318] sm:$0xff]
                %874 = vst [vmem:[%s250 + $0x9b8] sm:$0xff] %v873
                %v875 = vld [vmem:[%s249 + $0x1320] sm:$0xff]
                %876 = vst [vmem:[%s250 + $0x9c0] sm:$0xff] %v875
                %v877 = vld [vmem:[%s249 + $0x1328] sm:$0xff]
                %878 = vst [vmem:[%s250 + $0x9c8] sm:$0xff] %v877
                %v879 = vld [vmem:[%s249 + $0x1330] sm:$0xff]
                %880 = vst [vmem:[%s250 + $0x9d0] sm:$0xff] %v879
                %v881 = vld [vmem:[%s249 + $0x1338] sm:$0xff]
                %882 = vst [vmem:[%s250 + $0x9d8] sm:$0xff] %v881
                %v883 = vld [vmem:[%s249 + $0x1340] sm:$0xff]
                %884 = vst [vmem:[%s250 + $0x9e0] sm:$0xff] %v883
                %v885 = vld [vmem:[%s249 + $0x1348] sm:$0xff]
                %886 = vst [vmem:[%s250 + $0x9e8] sm:$0xff] %v885
                %v887 = vld [vmem:[%s249 + $0x1350] sm:$0xff]
                %888 = vst [vmem:[%s250 + $0x9f0] sm:$0xff] %v887
                %v889 = vld [vmem:[%s249 + $0x1358] sm:$0xff]
                %890 = vst [vmem:[%s250 + $0x9f8] sm:$0xff] %v889
              $region49: #{base_model_forward.1} parent=43 // loop_footer
                %s248 = sadd.s32 1, %s244
              $region50: #{base_model_forward.1} parent=43 // loop_footer_branch
                %243 = sbr.rel target = $region46
              $region51: #{base_model_forward.1} parent=43 // loop_exit
                _
            $region44: #{base_model_forward.1} parent=39 // pred_fallthru
              _
            // Predicated region
            $region52: #{base_model_forward.1} parent=39 // pred_check
              _
            $region53: #{base_model_forward.1} parent=39 // pred_check_branch
              %892 = sbr.rel target = $region55
            $region54: #{base_model_forward.1} parent=39 // pred_region
              _
            $region55: #{base_model_forward.1} parent=39 // pred_fallthru
              _
          $region40: #{base_model_forward.1} parent=35 // pred_fallthru
            _
          %893 = vnop
        $region36: #{base_model_forward.1} parent=23 // pred_fallthru
          _
      $region24: #{base_model_forward.1} parent=5 // pred_fallthru
        _
      %p894 = scmp.le.s32.totalorder 1, %s12
      %p895 = scmp.lt.s32.totalorder %s12, 3
      %p896 = pnand %p894, %p895
      %p897 = pneg %p896
      // Predicated region
      $region56: #{base_model_forward.1} parent=5 // pred_check
        _
      $region57: #{base_model_forward.1} parent=5 // pred_check_branch
        %899 = sbr.rel (%p896) target = $region59
      $region58: #{base_model_forward.1} parent=5 // pred_region
        %s900 = ssub.s32 %s12, 1
        %s901 = sand.u32 %s115, 1
        %s902 = sand.u32 %s115, 1
        %s903 = smul.addr %s902, 2560
        %s904 = scalar_lea.vmem [#allocation3], %s903
        // Predicated region
        $region60: #{base_model_forward.1} parent=58 // pred_check
          %p905 = pneg %p128
        $region61: #{base_model_forward.1} parent=58 // pred_check_branch
          %907 = sbr.rel (%p905) target = $region63
        $region62: #{base_model_forward.1} parent=58 // pred_region
          _
        $region63: #{base_model_forward.1} parent=58 // pred_fallthru
          _
        %p908 = scmp.lt.s32.totalorder %s21, 0
        %s909 = scalar_select %p908, %s21, 0
        %s910 = smul.addr %s909, 8
        %s911 = scalar_lea.vmem %s0, %s910
        %p912 = pneg %p50
        %p913 = pneg %p47
        %s914 = smul.u32 320, %s22
        %s915 = ssub.s32 625, %s914
        %p916 = scmp.lt.s32.totalorder %s915, 320
        %s917 = scalar_select %p916, %s915, 320
        %s918 = smul.u32 128, %s917
        %p919 = scmp.lt.s32.totalorder %s914, 624
        %s920 = scalar_select %p919, %s914, 624
        %s921 = smul.addr %s920, 8
        %s922 = scalar_lea.vmem %s1, %s921
        %p923 = pneg %p76
        %p924 = pneg %p73
        %s925 = smul.u32 20, %s22
        %p926 = scmp.lt.s32.totalorder %s925, 39
        %s927 = scalar_select %p926, %s925, 39
        %s928 = scalar_lea.vmem %s2, %s927
        %p929 = pneg %p102
        %p930 = pneg %p99
        %s931 = sand.u32 %s115, 1
        %s932 = sand.u32 %s115, 1
        %s933 = smul.addr %s932, 2560
        %s934 = scalar_lea.vmem [#allocation3], %s933
        %p935 = pneg %p128
        %p936 = pneg %p125
        %p937 = pneg %p149
        %p938 = pneg %p146
        %p939 = pneg %p175
        %p940 = pneg %p172
        %p941 = scmp.lt.s32.totalorder %s21, 0
        %s942 = scalar_select %p941, %s21, 0
        %s943 = smul.addr %s942, 8
        %s944 = scalar_lea.vmem %s0, %s943
        %s945 = smul.u32 320, %s22
        %s946 = ssub.s32 625, %s945
        %p947 = scmp.lt.s32.totalorder %s946, 320
        %s948 = scalar_select %p947, %s946, 320
        %s949 = smul.u32 128, %s948
        %p950 = scmp.lt.s32.totalorder %s945, 624
        %s951 = scalar_select %p950, %s945, 624
        %s952 = smul.addr %s951, 8
        %s953 = scalar_lea.vmem %s1, %s952
        %s954 = smul.u32 320, %s22
        %s955 = ssub.s32 625, %s954
        %p956 = scmp.lt.s32.totalorder %s955, 320
        %s957 = scalar_select %p956, %s955, 320
        %s958 = smul.u32 128, %s957
        %s959 = smul.u32 20, %s22
        %p960 = scmp.lt.s32.totalorder %s959, 39
        %s961 = scalar_select %p960, %s959, 39
        %s962 = scalar_lea.vmem %s2, %s961
        %s963 = smul.u32 20, %s22
        %s964 = smul.u32 20, %s22
        %p966 = scmp.eq.s32.totalorder %s22, 0
        // Predicated region
        $region64: #{base_model_forward.1} parent=58 // pred_check
          %p967 = pneg %p966
        $region65: #{base_model_forward.1} parent=58 // pred_check_branch
          %969 = sbr.rel (%p967) target = $region67
        $region66: #{base_model_forward.1} parent=58 // pred_region
          %v970 = vld [vmem:[%s4] sm:$0x1]
          %v972 = vlaneseq
          %v973 = vshrl.u32 %v972, 7
          %v974 = vsub.s32 0, %v973
          %v975 = vrot.slane %v970, %v974
          %977 = vst [vmem:[#allocation2] sm:$0xff] %v975
        $region67: #{base_model_forward.1} parent=58 // pred_fallthru
          _
        %v978 = vld [vmem:[%s944] sm:$0xff]
        %v979 = vpack.c.bf16 %v978, %v978
        %v980 = vld [vmem:[%s953] sm:$0xff]
        %v981 = vld [vmem:[%s953 + $0x8] sm:$0xff]
        %v982 = vld [vmem:[%s953 + $0x10] sm:$0xff]
        %v983 = vld [vmem:[%s953 + $0x18] sm:$0xff]
        %v984 = vld [vmem:[%s953 + $0x20] sm:$0xff]
        %v985 = vld [vmem:[%s953 + $0x28] sm:$0xff]
        %v986 = vld [vmem:[%s953 + $0x30] sm:$0xff]
        %v987 = vld [vmem:[%s953 + $0x38] sm:$0xff]
        %v988 = vld [vmem:[%s953 + $0x40] sm:$0xff]
        %v989 = vld [vmem:[%s953 + $0x48] sm:$0xff]
        %v990 = vld [vmem:[%s953 + $0x50] sm:$0xff]
        %v991 = vld [vmem:[%s953 + $0x58] sm:$0xff]
        %v992 = vld [vmem:[%s953 + $0x60] sm:$0xff]
        %v993 = vld [vmem:[%s953 + $0x68] sm:$0xff]
        %v994 = vld [vmem:[%s953 + $0x70] sm:$0xff]
        %v995 = vld [vmem:[%s953 + $0x78] sm:$0xff]
        %v996 = vld [vmem:[%s953 + $0x80] sm:$0xff]
        %v997 = vld [vmem:[%s953 + $0x88] sm:$0xff]
        %v998 = vld [vmem:[%s953 + $0x90] sm:$0xff]
        %v999 = vld [vmem:[%s953 + $0x98] sm:$0xff]
        %v1000 = vld [vmem:[%s953 + $0xa0] sm:$0xff]
        %v1001 = vld [vmem:[%s953 + $0xa8] sm:$0xff]
        %v1002 = vld [vmem:[%s953 + $0xb0] sm:$0xff]
        %v1003 = vld [vmem:[%s953 + $0xb8] sm:$0xff]
        %v1004 = vld [vmem:[%s953 + $0xc0] sm:$0xff]
        %v1005 = vld [vmem:[%s953 + $0xc8] sm:$0xff]
        %v1006 = vld [vmem:[%s953 + $0xd0] sm:$0xff]
        %v1007 = vld [vmem:[%s953 + $0xd8] sm:$0xff]
        %v1008 = vld [vmem:[%s953 + $0xe0] sm:$0xff]
        %v1009 = vld [vmem:[%s953 + $0xe8] sm:$0xff]
        %v1010 = vld [vmem:[%s953 + $0xf0] sm:$0xff]
        %v1011 = vld [vmem:[%s953 + $0xf8] sm:$0xff]
        %v1012 = vld [vmem:[%s953 + $0x100] sm:$0xff]
        %v1013 = vld [vmem:[%s953 + $0x108] sm:$0xff]
        %v1014 = vld [vmem:[%s953 + $0x110] sm:$0xff]
        %v1015 = vld [vmem:[%s953 + $0x118] sm:$0xff]
        %v1016 = vld [vmem:[%s953 + $0x120] sm:$0xff]
        %v1017 = vld [vmem:[%s953 + $0x128] sm:$0xff]
        %v1018 = vld [vmem:[%s953 + $0x130] sm:$0xff]
        %v1019 = vld [vmem:[%s953 + $0x138] sm:$0xff]
        %v1020 = vld [vmem:[%s953 + $0x140] sm:$0xff]
        %v1021 = vld [vmem:[%s953 + $0x148] sm:$0xff]
        %v1022 = vld [vmem:[%s953 + $0x150] sm:$0xff]
        %v1023 = vld [vmem:[%s953 + $0x158] sm:$0xff]
        %v1024 = vld [vmem:[%s953 + $0x160] sm:$0xff]
        %v1025 = vld [vmem:[%s953 + $0x168] sm:$0xff]
        %v1026 = vld [vmem:[%s953 + $0x170] sm:$0xff]
        %v1027 = vld [vmem:[%s953 + $0x178] sm:$0xff]
        %v1028 = vld [vmem:[%s953 + $0x180] sm:$0xff]
        %v1029 = vld [vmem:[%s953 + $0x188] sm:$0xff]
        %v1030 = vld [vmem:[%s953 + $0x190] sm:$0xff]
        %v1031 = vld [vmem:[%s953 + $0x198] sm:$0xff]
        %v1032 = vld [vmem:[%s953 + $0x1a0] sm:$0xff]
        %v1033 = vld [vmem:[%s953 + $0x1a8] sm:$0xff]
        %v1034 = vld [vmem:[%s953 + $0x1b0] sm:$0xff]
        %v1035 = vld [vmem:[%s953 + $0x1b8] sm:$0xff]
        %v1036 = vld [vmem:[%s953 + $0x1c0] sm:$0xff]
        %v1037 = vld [vmem:[%s953 + $0x1c8] sm:$0xff]
        %v1038 = vld [vmem:[%s953 + $0x1d0] sm:$0xff]
        %v1039 = vld [vmem:[%s953 + $0x1d8] sm:$0xff]
        %v1040 = vld [vmem:[%s953 + $0x1e0] sm:$0xff]
        %v1041 = vld [vmem:[%s953 + $0x1e8] sm:$0xff]
        %v1042 = vld [vmem:[%s953 + $0x1f0] sm:$0xff]
        %v1043 = vld [vmem:[%s953 + $0x1f8] sm:$0xff]
        %v1044 = vld [vmem:[%s953 + $0x200] sm:$0xff]
        %v1045 = vld [vmem:[%s953 + $0x208] sm:$0xff]
        %v1046 = vld [vmem:[%s953 + $0x210] sm:$0xff]
        %v1047 = vld [vmem:[%s953 + $0x218] sm:$0xff]
        %v1048 = vld [vmem:[%s953 + $0x220] sm:$0xff]
        %v1049 = vld [vmem:[%s953 + $0x228] sm:$0xff]
        %v1050 = vld [vmem:[%s953 + $0x230] sm:$0xff]
        %v1051 = vld [vmem:[%s953 + $0x238] sm:$0xff]
        %v1052 = vld [vmem:[%s953 + $0x240] sm:$0xff]
        %v1053 = vld [vmem:[%s953 + $0x248] sm:$0xff]
        %v1054 = vld [vmem:[%s953 + $0x250] sm:$0xff]
        %v1055 = vld [vmem:[%s953 + $0x258] sm:$0xff]
        %v1056 = vld [vmem:[%s953 + $0x260] sm:$0xff]
        %v1057 = vld [vmem:[%s953 + $0x268] sm:$0xff]
        %v1058 = vld [vmem:[%s953 + $0x270] sm:$0xff]
        %v1059 = vld [vmem:[%s953 + $0x278] sm:$0xff]
        %v1060 = vld [vmem:[%s953 + $0x280] sm:$0xff]
        %v1061 = vld [vmem:[%s953 + $0x288] sm:$0xff]
        %v1062 = vld [vmem:[%s953 + $0x290] sm:$0xff]
        %v1063 = vld [vmem:[%s953 + $0x298] sm:$0xff]
        %v1064 = vld [vmem:[%s953 + $0x2a0] sm:$0xff]
        %v1065 = vld [vmem:[%s953 + $0x2a8] sm:$0xff]
        %v1066 = vld [vmem:[%s953 + $0x2b0] sm:$0xff]
        %v1067 = vld [vmem:[%s953 + $0x2b8] sm:$0xff]
        %v1068 = vld [vmem:[%s953 + $0x2c0] sm:$0xff]
        %v1069 = vld [vmem:[%s953 + $0x2c8] sm:$0xff]
        %v1070 = vld [vmem:[%s953 + $0x2d0] sm:$0xff]
        %v1071 = vld [vmem:[%s953 + $0x2d8] sm:$0xff]
        %v1072 = vld [vmem:[%s953 + $0x2e0] sm:$0xff]
        %v1073 = vld [vmem:[%s953 + $0x2e8] sm:$0xff]
        %v1074 = vld [vmem:[%s953 + $0x2f0] sm:$0xff]
        %v1075 = vld [vmem:[%s953 + $0x2f8] sm:$0xff]
        %v1076 = vld [vmem:[%s953 + $0x300] sm:$0xff]
        %v1077 = vld [vmem:[%s953 + $0x308] sm:$0xff]
        %v1078 = vld [vmem:[%s953 + $0x310] sm:$0xff]
        %v1079 = vld [vmem:[%s953 + $0x318] sm:$0xff]
        %v1080 = vld [vmem:[%s953 + $0x320] sm:$0xff]
        %v1081 = vld [vmem:[%s953 + $0x328] sm:$0xff]
        %v1082 = vld [vmem:[%s953 + $0x330] sm:$0xff]
        %v1083 = vld [vmem:[%s953 + $0x338] sm:$0xff]
        %v1084 = vld [vmem:[%s953 + $0x340] sm:$0xff]
        %v1085 = vld [vmem:[%s953 + $0x348] sm:$0xff]
        %v1086 = vld [vmem:[%s953 + $0x350] sm:$0xff]
        %v1087 = vld [vmem:[%s953 + $0x358] sm:$0xff]
        %v1088 = vld [vmem:[%s953 + $0x360] sm:$0xff]
        %v1089 = vld [vmem:[%s953 + $0x368] sm:$0xff]
        %v1090 = vld [vmem:[%s953 + $0x370] sm:$0xff]
        %v1091 = vld [vmem:[%s953 + $0x378] sm:$0xff]
        %v1092 = vld [vmem:[%s953 + $0x380] sm:$0xff]
        %v1093 = vld [vmem:[%s953 + $0x388] sm:$0xff]
        %v1094 = vld [vmem:[%s953 + $0x390] sm:$0xff]
        %v1095 = vld [vmem:[%s953 + $0x398] sm:$0xff]
        %v1096 = vld [vmem:[%s953 + $0x3a0] sm:$0xff]
        %v1097 = vld [vmem:[%s953 + $0x3a8] sm:$0xff]
        %v1098 = vld [vmem:[%s953 + $0x3b0] sm:$0xff]
        %v1099 = vld [vmem:[%s953 + $0x3b8] sm:$0xff]
        %v1100 = vld [vmem:[%s953 + $0x3c0] sm:$0xff]
        %v1101 = vld [vmem:[%s953 + $0x3c8] sm:$0xff]
        %v1102 = vld [vmem:[%s953 + $0x3d0] sm:$0xff]
        %v1103 = vld [vmem:[%s953 + $0x3d8] sm:$0xff]
        %v1104 = vld [vmem:[%s953 + $0x3e0] sm:$0xff]
        %v1105 = vld [vmem:[%s953 + $0x3e8] sm:$0xff]
        %v1106 = vld [vmem:[%s953 + $0x3f0] sm:$0xff]
        %v1107 = vld [vmem:[%s953 + $0x3f8] sm:$0xff]
        %v1108 = vld [vmem:[%s953 + $0x400] sm:$0xff]
        %v1109 = vld [vmem:[%s953 + $0x408] sm:$0xff]
        %v1110 = vld [vmem:[%s953 + $0x410] sm:$0xff]
        %v1111 = vld [vmem:[%s953 + $0x418] sm:$0xff]
        %v1112 = vld [vmem:[%s953 + $0x420] sm:$0xff]
        %v1113 = vld [vmem:[%s953 + $0x428] sm:$0xff]
        %v1114 = vld [vmem:[%s953 + $0x430] sm:$0xff]
        %v1115 = vld [vmem:[%s953 + $0x438] sm:$0xff]
        %v1116 = vld [vmem:[%s953 + $0x440] sm:$0xff]
        %v1117 = vld [vmem:[%s953 + $0x448] sm:$0xff]
        %v1118 = vld [vmem:[%s953 + $0x450] sm:$0xff]
        %v1119 = vld [vmem:[%s953 + $0x458] sm:$0xff]
        %v1120 = vld [vmem:[%s953 + $0x460] sm:$0xff]
        %v1121 = vld [vmem:[%s953 + $0x468] sm:$0xff]
        %v1122 = vld [vmem:[%s953 + $0x470] sm:$0xff]
        %v1123 = vld [vmem:[%s953 + $0x478] sm:$0xff]
        %v1124 = vld [vmem:[%s953 + $0x480] sm:$0xff]
        %v1125 = vld [vmem:[%s953 + $0x488] sm:$0xff]
        %v1126 = vld [vmem:[%s953 + $0x490] sm:$0xff]
        %v1127 = vld [vmem:[%s953 + $0x498] sm:$0xff]
        %v1128 = vld [vmem:[%s953 + $0x4a0] sm:$0xff]
        %v1129 = vld [vmem:[%s953 + $0x4a8] sm:$0xff]
        %v1130 = vld [vmem:[%s953 + $0x4b0] sm:$0xff]
        %v1131 = vld [vmem:[%s953 + $0x4b8] sm:$0xff]
        %v1132 = vld [vmem:[%s953 + $0x4c0] sm:$0xff]
        %v1133 = vld [vmem:[%s953 + $0x4c8] sm:$0xff]
        %v1134 = vld [vmem:[%s953 + $0x4d0] sm:$0xff]
        %v1135 = vld [vmem:[%s953 + $0x4d8] sm:$0xff]
        %v1136 = vld [vmem:[%s953 + $0x4e0] sm:$0xff]
        %v1137 = vld [vmem:[%s953 + $0x4e8] sm:$0xff]
        %v1138 = vld [vmem:[%s953 + $0x4f0] sm:$0xff]
        %v1139 = vld [vmem:[%s953 + $0x4f8] sm:$0xff]
        %v1140 = vld [vmem:[%s953 + $0x500] sm:$0xff]
        %v1141 = vld [vmem:[%s953 + $0x508] sm:$0xff]
        %v1142 = vld [vmem:[%s953 + $0x510] sm:$0xff]
        %v1143 = vld [vmem:[%s953 + $0x518] sm:$0xff]
        %v1144 = vld [vmem:[%s953 + $0x520] sm:$0xff]
        %v1145 = vld [vmem:[%s953 + $0x528] sm:$0xff]
        %v1146 = vld [vmem:[%s953 + $0x530] sm:$0xff]
        %v1147 = vld [vmem:[%s953 + $0x538] sm:$0xff]
        %v1148 = vld [vmem:[%s953 + $0x540] sm:$0xff]
        %v1149 = vld [vmem:[%s953 + $0x548] sm:$0xff]
        %v1150 = vld [vmem:[%s953 + $0x550] sm:$0xff]
        %v1151 = vld [vmem:[%s953 + $0x558] sm:$0xff]
        %v1152 = vld [vmem:[%s953 + $0x560] sm:$0xff]
        %v1153 = vld [vmem:[%s953 + $0x568] sm:$0xff]
        %v1154 = vld [vmem:[%s953 + $0x570] sm:$0xff]
        %v1155 = vld [vmem:[%s953 + $0x578] sm:$0xff]
        %v1156 = vld [vmem:[%s953 + $0x580] sm:$0xff]
        %v1157 = vld [vmem:[%s953 + $0x588] sm:$0xff]
        %v1158 = vld [vmem:[%s953 + $0x590] sm:$0xff]
        %v1159 = vld [vmem:[%s953 + $0x598] sm:$0xff]
        %v1160 = vld [vmem:[%s953 + $0x5a0] sm:$0xff]
        %v1161 = vld [vmem:[%s953 + $0x5a8] sm:$0xff]
        %v1162 = vld [vmem:[%s953 + $0x5b0] sm:$0xff]
        %v1163 = vld [vmem:[%s953 + $0x5b8] sm:$0xff]
        %v1164 = vld [vmem:[%s953 + $0x5c0] sm:$0xff]
        %v1165 = vld [vmem:[%s953 + $0x5c8] sm:$0xff]
        %v1166 = vld [vmem:[%s953 + $0x5d0] sm:$0xff]
        %v1167 = vld [vmem:[%s953 + $0x5d8] sm:$0xff]
        %v1168 = vld [vmem:[%s953 + $0x5e0] sm:$0xff]
        %v1169 = vld [vmem:[%s953 + $0x5e8] sm:$0xff]
        %v1170 = vld [vmem:[%s953 + $0x5f0] sm:$0xff]
        %v1171 = vld [vmem:[%s953 + $0x5f8] sm:$0xff]
        %v1172 = vld [vmem:[%s953 + $0x600] sm:$0xff]
        %v1173 = vld [vmem:[%s953 + $0x608] sm:$0xff]
        %v1174 = vld [vmem:[%s953 + $0x610] sm:$0xff]
        %v1175 = vld [vmem:[%s953 + $0x618] sm:$0xff]
        %v1176 = vld [vmem:[%s953 + $0x620] sm:$0xff]
        %v1177 = vld [vmem:[%s953 + $0x628] sm:$0xff]
        %v1178 = vld [vmem:[%s953 + $0x630] sm:$0xff]
        %v1179 = vld [vmem:[%s953 + $0x638] sm:$0xff]
        %v1180 = vld [vmem:[%s953 + $0x640] sm:$0xff]
        %v1181 = vld [vmem:[%s953 + $0x648] sm:$0xff]
        %v1182 = vld [vmem:[%s953 + $0x650] sm:$0xff]
        %v1183 = vld [vmem:[%s953 + $0x658] sm:$0xff]
        %v1184 = vld [vmem:[%s953 + $0x660] sm:$0xff]
        %v1185 = vld [vmem:[%s953 + $0x668] sm:$0xff]
        %v1186 = vld [vmem:[%s953 + $0x670] sm:$0xff]
        %v1187 = vld [vmem:[%s953 + $0x678] sm:$0xff]
        %v1188 = vld [vmem:[%s953 + $0x680] sm:$0xff]
        %v1189 = vld [vmem:[%s953 + $0x688] sm:$0xff]
        %v1190 = vld [vmem:[%s953 + $0x690] sm:$0xff]
        %v1191 = vld [vmem:[%s953 + $0x698] sm:$0xff]
        %v1192 = vld [vmem:[%s953 + $0x6a0] sm:$0xff]
        %v1193 = vld [vmem:[%s953 + $0x6a8] sm:$0xff]
        %v1194 = vld [vmem:[%s953 + $0x6b0] sm:$0xff]
        %v1195 = vld [vmem:[%s953 + $0x6b8] sm:$0xff]
        %v1196 = vld [vmem:[%s953 + $0x6c0] sm:$0xff]
        %v1197 = vld [vmem:[%s953 + $0x6c8] sm:$0xff]
        %v1198 = vld [vmem:[%s953 + $0x6d0] sm:$0xff]
        %v1199 = vld [vmem:[%s953 + $0x6d8] sm:$0xff]
        %v1200 = vld [vmem:[%s953 + $0x6e0] sm:$0xff]
        %v1201 = vld [vmem:[%s953 + $0x6e8] sm:$0xff]
        %v1202 = vld [vmem:[%s953 + $0x6f0] sm:$0xff]
        %v1203 = vld [vmem:[%s953 + $0x6f8] sm:$0xff]
        %v1204 = vld [vmem:[%s953 + $0x700] sm:$0xff]
        %v1205 = vld [vmem:[%s953 + $0x708] sm:$0xff]
        %v1206 = vld [vmem:[%s953 + $0x710] sm:$0xff]
        %v1207 = vld [vmem:[%s953 + $0x718] sm:$0xff]
        %v1208 = vld [vmem:[%s953 + $0x720] sm:$0xff]
        %v1209 = vld [vmem:[%s953 + $0x728] sm:$0xff]
        %v1210 = vld [vmem:[%s953 + $0x730] sm:$0xff]
        %v1211 = vld [vmem:[%s953 + $0x738] sm:$0xff]
        %v1212 = vld [vmem:[%s953 + $0x740] sm:$0xff]
        %v1213 = vld [vmem:[%s953 + $0x748] sm:$0xff]
        %v1214 = vld [vmem:[%s953 + $0x750] sm:$0xff]
        %v1215 = vld [vmem:[%s953 + $0x758] sm:$0xff]
        %v1216 = vld [vmem:[%s953 + $0x760] sm:$0xff]
        %v1217 = vld [vmem:[%s953 + $0x768] sm:$0xff]
        %v1218 = vld [vmem:[%s953 + $0x770] sm:$0xff]
        %v1219 = vld [vmem:[%s953 + $0x778] sm:$0xff]
        %v1220 = vld [vmem:[%s953 + $0x780] sm:$0xff]
        %v1221 = vld [vmem:[%s953 + $0x788] sm:$0xff]
        %v1222 = vld [vmem:[%s953 + $0x790] sm:$0xff]
        %v1223 = vld [vmem:[%s953 + $0x798] sm:$0xff]
        %v1224 = vld [vmem:[%s953 + $0x7a0] sm:$0xff]
        %v1225 = vld [vmem:[%s953 + $0x7a8] sm:$0xff]
        %v1226 = vld [vmem:[%s953 + $0x7b0] sm:$0xff]
        %v1227 = vld [vmem:[%s953 + $0x7b8] sm:$0xff]
        %v1228 = vld [vmem:[%s953 + $0x7c0] sm:$0xff]
        %v1229 = vld [vmem:[%s953 + $0x7c8] sm:$0xff]
        %v1230 = vld [vmem:[%s953 + $0x7d0] sm:$0xff]
        %v1231 = vld [vmem:[%s953 + $0x7d8] sm:$0xff]
        %v1232 = vld [vmem:[%s953 + $0x7e0] sm:$0xff]
        %v1233 = vld [vmem:[%s953 + $0x7e8] sm:$0xff]
        %v1234 = vld [vmem:[%s953 + $0x7f0] sm:$0xff]
        %v1235 = vld [vmem:[%s953 + $0x7f8] sm:$0xff]
        %v1236 = vld [vmem:[%s953 + $0x800] sm:$0xff]
        %v1237 = vld [vmem:[%s953 + $0x808] sm:$0xff]
        %v1238 = vld [vmem:[%s953 + $0x810] sm:$0xff]
        %v1239 = vld [vmem:[%s953 + $0x818] sm:$0xff]
        %v1240 = vld [vmem:[%s953 + $0x820] sm:$0xff]
        %v1241 = vld [vmem:[%s953 + $0x828] sm:$0xff]
        %v1242 = vld [vmem:[%s953 + $0x830] sm:$0xff]
        %v1243 = vld [vmem:[%s953 + $0x838] sm:$0xff]
        %v1244 = vld [vmem:[%s953 + $0x840] sm:$0xff]
        %v1245 = vld [vmem:[%s953 + $0x848] sm:$0xff]
        %v1246 = vld [vmem:[%s953 + $0x850] sm:$0xff]
        %v1247 = vld [vmem:[%s953 + $0x858] sm:$0xff]
        %v1248 = vld [vmem:[%s953 + $0x860] sm:$0xff]
        %v1249 = vld [vmem:[%s953 + $0x868] sm:$0xff]
        %v1250 = vld [vmem:[%s953 + $0x870] sm:$0xff]
        %v1251 = vld [vmem:[%s953 + $0x878] sm:$0xff]
        %v1252 = vld [vmem:[%s953 + $0x880] sm:$0xff]
        %v1253 = vld [vmem:[%s953 + $0x888] sm:$0xff]
        %v1254 = vld [vmem:[%s953 + $0x890] sm:$0xff]
        %v1255 = vld [vmem:[%s953 + $0x898] sm:$0xff]
        %v1256 = vld [vmem:[%s953 + $0x8a0] sm:$0xff]
        %v1257 = vld [vmem:[%s953 + $0x8a8] sm:$0xff]
        %v1258 = vld [vmem:[%s953 + $0x8b0] sm:$0xff]
        %v1259 = vld [vmem:[%s953 + $0x8b8] sm:$0xff]
        %v1260 = vld [vmem:[%s953 + $0x8c0] sm:$0xff]
        %v1261 = vld [vmem:[%s953 + $0x8c8] sm:$0xff]
        %v1262 = vld [vmem:[%s953 + $0x8d0] sm:$0xff]
        %v1263 = vld [vmem:[%s953 + $0x8d8] sm:$0xff]
        %v1264 = vld [vmem:[%s953 + $0x8e0] sm:$0xff]
        %v1265 = vld [vmem:[%s953 + $0x8e8] sm:$0xff]
        %v1266 = vld [vmem:[%s953 + $0x8f0] sm:$0xff]
        %v1267 = vld [vmem:[%s953 + $0x8f8] sm:$0xff]
        %v1268 = vld [vmem:[%s953 + $0x900] sm:$0xff]
        %v1269 = vld [vmem:[%s953 + $0x908] sm:$0xff]
        %v1270 = vld [vmem:[%s953 + $0x910] sm:$0xff]
        %v1271 = vld [vmem:[%s953 + $0x918] sm:$0xff]
        %v1272 = vld [vmem:[%s953 + $0x920] sm:$0xff]
        %v1273 = vld [vmem:[%s953 + $0x928] sm:$0xff]
        %v1274 = vld [vmem:[%s953 + $0x930] sm:$0xff]
        %v1275 = vld [vmem:[%s953 + $0x938] sm:$0xff]
        %v1276 = vld [vmem:[%s953 + $0x940] sm:$0xff]
        %v1277 = vld [vmem:[%s953 + $0x948] sm:$0xff]
        %v1278 = vld [vmem:[%s953 + $0x950] sm:$0xff]
        %v1279 = vld [vmem:[%s953 + $0x958] sm:$0xff]
        %v1280 = vld [vmem:[%s953 + $0x960] sm:$0xff]
        %v1281 = vld [vmem:[%s953 + $0x968] sm:$0xff]
        %v1282 = vld [vmem:[%s953 + $0x970] sm:$0xff]
        %v1283 = vld [vmem:[%s953 + $0x978] sm:$0xff]
        %v1284 = vld [vmem:[%s953 + $0x980] sm:$0xff]
        %v1285 = vld [vmem:[%s953 + $0x988] sm:$0xff]
        %v1286 = vld [vmem:[%s953 + $0x990] sm:$0xff]
        %v1287 = vld [vmem:[%s953 + $0x998] sm:$0xff]
        %v1288 = vld [vmem:[%s953 + $0x9a0] sm:$0xff]
        %v1289 = vld [vmem:[%s953 + $0x9a8] sm:$0xff]
        %v1290 = vld [vmem:[%s953 + $0x9b0] sm:$0xff]
        %v1291 = vld [vmem:[%s953 + $0x9b8] sm:$0xff]
        %v1292 = vld [vmem:[%s953 + $0x9c0] sm:$0xff]
        %v1293 = vld [vmem:[%s953 + $0x9c8] sm:$0xff]
        %v1294 = vld [vmem:[%s953 + $0x9d0] sm:$0xff]
        %v1295 = vld [vmem:[%s953 + $0x9d8] sm:$0xff]
        %v1296 = vld [vmem:[%s953 + $0x9e0] sm:$0xff]
        %v1297 = vld [vmem:[%s953 + $0x9e8] sm:$0xff]
        %v1298 = vld [vmem:[%s953 + $0x9f0] sm:$0xff]
        %v1299 = vld [vmem:[%s953 + $0x9f8] sm:$0xff]
        %v1300 = vpack.c.bf16 %v981, %v980
        %v1301 = vpack.c.bf16 %v983, %v982
        %v1302 = vpack.c.bf16 %v985, %v984
        %v1303 = vpack.c.bf16 %v987, %v986
        %v1304 = vpack.c.bf16 %v989, %v988
        %v1305 = vpack.c.bf16 %v991, %v990
        %v1306 = vpack.c.bf16 %v993, %v992
        %v1307 = vpack.c.bf16 %v995, %v994
        %v1308 = vpack.c.bf16 %v997, %v996
        %v1309 = vpack.c.bf16 %v999, %v998
        %v1310 = vpack.c.bf16 %v1001, %v1000
        %v1311 = vpack.c.bf16 %v1003, %v1002
        %v1312 = vpack.c.bf16 %v1005, %v1004
        %v1313 = vpack.c.bf16 %v1007, %v1006
        %v1314 = vpack.c.bf16 %v1009, %v1008
        %v1315 = vpack.c.bf16 %v1011, %v1010
        %v1316 = vpack.c.bf16 %v1013, %v1012
        %v1317 = vpack.c.bf16 %v1015, %v1014
        %v1318 = vpack.c.bf16 %v1017, %v1016
        %v1319 = vpack.c.bf16 %v1019, %v1018
        %v1320 = vpack.c.bf16 %v1021, %v1020
        %v1321 = vpack.c.bf16 %v1023, %v1022
        %v1322 = vpack.c.bf16 %v1025, %v1024
        %v1323 = vpack.c.bf16 %v1027, %v1026
        %v1324 = vpack.c.bf16 %v1029, %v1028
        %v1325 = vpack.c.bf16 %v1031, %v1030
        %v1326 = vpack.c.bf16 %v1033, %v1032
        %v1327 = vpack.c.bf16 %v1035, %v1034
        %v1328 = vpack.c.bf16 %v1037, %v1036
        %v1329 = vpack.c.bf16 %v1039, %v1038
        %v1330 = vpack.c.bf16 %v1041, %v1040
        %v1331 = vpack.c.bf16 %v1043, %v1042
        %v1332 = vpack.c.bf16 %v1045, %v1044
        %v1333 = vpack.c.bf16 %v1047, %v1046
        %v1334 = vpack.c.bf16 %v1049, %v1048
        %v1335 = vpack.c.bf16 %v1051, %v1050
        %v1336 = vpack.c.bf16 %v1053, %v1052
        %v1337 = vpack.c.bf16 %v1055, %v1054
        %v1338 = vpack.c.bf16 %v1057, %v1056
        %v1339 = vpack.c.bf16 %v1059, %v1058
        %v1340 = vpack.c.bf16 %v1061, %v1060
        %v1341 = vpack.c.bf16 %v1063, %v1062
        %v1342 = vpack.c.bf16 %v1065, %v1064
        %v1343 = vpack.c.bf16 %v1067, %v1066
        %v1344 = vpack.c.bf16 %v1069, %v1068
        %v1345 = vpack.c.bf16 %v1071, %v1070
        %v1346 = vpack.c.bf16 %v1073, %v1072
        %v1347 = vpack.c.bf16 %v1075, %v1074
        %v1348 = vpack.c.bf16 %v1077, %v1076
        %v1349 = vpack.c.bf16 %v1079, %v1078
        %v1350 = vpack.c.bf16 %v1081, %v1080
        %v1351 = vpack.c.bf16 %v1083, %v1082
        %v1352 = vpack.c.bf16 %v1085, %v1084
        %v1353 = vpack.c.bf16 %v1087, %v1086
        %v1354 = vpack.c.bf16 %v1089, %v1088
        %v1355 = vpack.c.bf16 %v1091, %v1090
        %v1356 = vpack.c.bf16 %v1093, %v1092
        %v1357 = vpack.c.bf16 %v1095, %v1094
        %v1358 = vpack.c.bf16 %v1097, %v1096
        %v1359 = vpack.c.bf16 %v1099, %v1098
        %v1360 = vpack.c.bf16 %v1101, %v1100
        %v1361 = vpack.c.bf16 %v1103, %v1102
        %v1362 = vpack.c.bf16 %v1105, %v1104
        %v1363 = vpack.c.bf16 %v1107, %v1106
        %v1364 = vpack.c.bf16 %v1109, %v1108
        %v1365 = vpack.c.bf16 %v1111, %v1110
        %v1366 = vpack.c.bf16 %v1113, %v1112
        %v1367 = vpack.c.bf16 %v1115, %v1114
        %v1368 = vpack.c.bf16 %v1117, %v1116
        %v1369 = vpack.c.bf16 %v1119, %v1118
        %v1370 = vpack.c.bf16 %v1121, %v1120
        %v1371 = vpack.c.bf16 %v1123, %v1122
        %v1372 = vpack.c.bf16 %v1125, %v1124
        %v1373 = vpack.c.bf16 %v1127, %v1126
        %v1374 = vpack.c.bf16 %v1129, %v1128
        %v1375 = vpack.c.bf16 %v1131, %v1130
        %v1376 = vpack.c.bf16 %v1133, %v1132
        %v1377 = vpack.c.bf16 %v1135, %v1134
        %v1378 = vpack.c.bf16 %v1137, %v1136
        %v1379 = vpack.c.bf16 %v1139, %v1138
        %v1380 = vpack.c.bf16 %v1141, %v1140
        %v1381 = vpack.c.bf16 %v1143, %v1142
        %v1382 = vpack.c.bf16 %v1145, %v1144
        %v1383 = vpack.c.bf16 %v1147, %v1146
        %v1384 = vpack.c.bf16 %v1149, %v1148
        %v1385 = vpack.c.bf16 %v1151, %v1150
        %v1386 = vpack.c.bf16 %v1153, %v1152
        %v1387 = vpack.c.bf16 %v1155, %v1154
        %v1388 = vpack.c.bf16 %v1157, %v1156
        %v1389 = vpack.c.bf16 %v1159, %v1158
        %v1390 = vpack.c.bf16 %v1161, %v1160
        %v1391 = vpack.c.bf16 %v1163, %v1162
        %v1392 = vpack.c.bf16 %v1165, %v1164
        %v1393 = vpack.c.bf16 %v1167, %v1166
        %v1394 = vpack.c.bf16 %v1169, %v1168
        %v1395 = vpack.c.bf16 %v1171, %v1170
        %v1396 = vpack.c.bf16 %v1173, %v1172
        %v1397 = vpack.c.bf16 %v1175, %v1174
        %v1398 = vpack.c.bf16 %v1177, %v1176
        %v1399 = vpack.c.bf16 %v1179, %v1178
        %v1400 = vpack.c.bf16 %v1181, %v1180
        %v1401 = vpack.c.bf16 %v1183, %v1182
        %v1402 = vpack.c.bf16 %v1185, %v1184
        %v1403 = vpack.c.bf16 %v1187, %v1186
        %v1404 = vpack.c.bf16 %v1189, %v1188
        %v1405 = vpack.c.bf16 %v1191, %v1190
        %v1406 = vpack.c.bf16 %v1193, %v1192
        %v1407 = vpack.c.bf16 %v1195, %v1194
        %v1408 = vpack.c.bf16 %v1197, %v1196
        %v1409 = vpack.c.bf16 %v1199, %v1198
        %v1410 = vpack.c.bf16 %v1201, %v1200
        %v1411 = vpack.c.bf16 %v1203, %v1202
        %v1412 = vpack.c.bf16 %v1205, %v1204
        %v1413 = vpack.c.bf16 %v1207, %v1206
        %v1414 = vpack.c.bf16 %v1209, %v1208
        %v1415 = vpack.c.bf16 %v1211, %v1210
        %v1416 = vpack.c.bf16 %v1213, %v1212
        %v1417 = vpack.c.bf16 %v1215, %v1214
        %v1418 = vpack.c.bf16 %v1217, %v1216
        %v1419 = vpack.c.bf16 %v1219, %v1218
        %v1420 = vpack.c.bf16 %v1221, %v1220
        %v1421 = vpack.c.bf16 %v1223, %v1222
        %v1422 = vpack.c.bf16 %v1225, %v1224
        %v1423 = vpack.c.bf16 %v1227, %v1226
        %v1424 = vpack.c.bf16 %v1229, %v1228
        %v1425 = vpack.c.bf16 %v1231, %v1230
        %v1426 = vpack.c.bf16 %v1233, %v1232
        %v1427 = vpack.c.bf16 %v1235, %v1234
        %v1428 = vpack.c.bf16 %v1237, %v1236
        %v1429 = vpack.c.bf16 %v1239, %v1238
        %v1430 = vpack.c.bf16 %v1241, %v1240
        %v1431 = vpack.c.bf16 %v1243, %v1242
        %v1432 = vpack.c.bf16 %v1245, %v1244
        %v1433 = vpack.c.bf16 %v1247, %v1246
        %v1434 = vpack.c.bf16 %v1249, %v1248
        %v1435 = vpack.c.bf16 %v1251, %v1250
        %v1436 = vpack.c.bf16 %v1253, %v1252
        %v1437 = vpack.c.bf16 %v1255, %v1254
        %v1438 = vpack.c.bf16 %v1257, %v1256
        %v1439 = vpack.c.bf16 %v1259, %v1258
        %v1440 = vpack.c.bf16 %v1261, %v1260
        %v1441 = vpack.c.bf16 %v1263, %v1262
        %v1442 = vpack.c.bf16 %v1265, %v1264
        %v1443 = vpack.c.bf16 %v1267, %v1266
        %v1444 = vpack.c.bf16 %v1269, %v1268
        %v1445 = vpack.c.bf16 %v1271, %v1270
        %v1446 = vpack.c.bf16 %v1273, %v1272
        %v1447 = vpack.c.bf16 %v1275, %v1274
        %v1448 = vpack.c.bf16 %v1277, %v1276
        %v1449 = vpack.c.bf16 %v1279, %v1278
        %v1450 = vpack.c.bf16 %v1281, %v1280
        %v1451 = vpack.c.bf16 %v1283, %v1282
        %v1452 = vpack.c.bf16 %v1285, %v1284
        %v1453 = vpack.c.bf16 %v1287, %v1286
        %v1454 = vpack.c.bf16 %v1289, %v1288
        %v1455 = vpack.c.bf16 %v1291, %v1290
        %v1456 = vpack.c.bf16 %v1293, %v1292
        %v1457 = vpack.c.bf16 %v1295, %v1294
        %v1458 = vpack.c.bf16 %v1297, %v1296
        %v1459 = vpack.c.bf16 %v1299, %v1298
        %v1460 = vld [vmem:[%s962] sm:$0xff]
        %v1461 = vld [vmem:[%s962 + $0x8] sm:$0xff]
        %v1462 = vld [vmem:[%s962 + $0x10] sm:$0xf]
        %v1466 = vlaneseq
        %v1467 = vshrl.u32 %v1466, 7
        %v1468 = vsub.s32 0, %v1467
        %v1469 = vrot.slane %v1460, %v1468
        %v1470 = vlaneseq
        %v1471 = vshrl.u32 %v1470, 7
        %v1472 = vsub.s32 1, %v1471
        %v1473 = vrot.slane %v1460, %v1472
        %v1474 = vlaneseq
        %v1475 = vshrl.u32 %v1474, 7
        %v1476 = vsub.s32 2, %v1475
        %v1477 = vrot.slane %v1460, %v1476
        %v1478 = vlaneseq
        %v1479 = vshrl.u32 %v1478, 7
        %v1480 = vsub.s32 3, %v1479
        %v1481 = vrot.slane %v1460, %v1480
        %v1482 = vlaneseq
        %v1483 = vshrl.u32 %v1482, 7
        %v1484 = vsub.s32 4, %v1483
        %v1485 = vrot.slane %v1460, %v1484
        %v1486 = vlaneseq
        %v1487 = vshrl.u32 %v1486, 7
        %v1488 = vsub.s32 5, %v1487
        %v1489 = vrot.slane %v1460, %v1488
        %v1490 = vlaneseq
        %v1491 = vshrl.u32 %v1490, 7
        %v1492 = vsub.s32 6, %v1491
        %v1493 = vrot.slane %v1460, %v1492
        %v1494 = vlaneseq
        %v1495 = vshrl.u32 %v1494, 7
        %v1496 = vsub.s32 7, %v1495
        %v1497 = vrot.slane %v1460, %v1496
        %v1498 = vlaneseq
        %v1499 = vshrl.u32 %v1498, 7
        %v1500 = vsub.s32 0, %v1499
        %v1501 = vrot.slane %v1461, %v1500
        %v1502 = vlaneseq
        %v1503 = vshrl.u32 %v1502, 7
        %v1504 = vsub.s32 1, %v1503
        %v1505 = vrot.slane %v1461, %v1504
        %v1506 = vlaneseq
        %v1507 = vshrl.u32 %v1506, 7
        %v1508 = vsub.s32 2, %v1507
        %v1509 = vrot.slane %v1461, %v1508
        %v1510 = vlaneseq
        %v1511 = vshrl.u32 %v1510, 7
        %v1512 = vsub.s32 3, %v1511
        %v1513 = vrot.slane %v1461, %v1512
        %v1514 = vlaneseq
        %v1515 = vshrl.u32 %v1514, 7
        %v1516 = vsub.s32 4, %v1515
        %v1517 = vrot.slane %v1461, %v1516
        %v1518 = vlaneseq
        %v1519 = vshrl.u32 %v1518, 7
        %v1520 = vsub.s32 5, %v1519
        %v1521 = vrot.slane %v1461, %v1520
        %v1522 = vlaneseq
        %v1523 = vshrl.u32 %v1522, 7
        %v1524 = vsub.s32 6, %v1523
        %v1525 = vrot.slane %v1461, %v1524
        %v1526 = vlaneseq
        %v1527 = vshrl.u32 %v1526, 7
        %v1528 = vsub.s32 7, %v1527
        %v1529 = vrot.slane %v1461, %v1528
        %v1530 = vlaneseq
        %v1531 = vshrl.u32 %v1530, 7
        %v1532 = vsub.s32 0, %v1531
        %v1533 = vrot.slane %v1462, %v1532
        %v1534 = vlaneseq
        %v1535 = vshrl.u32 %v1534, 7
        %v1536 = vsub.s32 1, %v1535
        %v1537 = vrot.slane %v1462, %v1536
        %v1538 = vlaneseq
        %v1539 = vshrl.u32 %v1538, 7
        %v1540 = vsub.s32 2, %v1539
        %v1541 = vrot.slane %v1462, %v1540
        %v1542 = vlaneseq
        %v1543 = vshrl.u32 %v1542, 7
        %v1544 = vsub.s32 3, %v1543
        %v1545 = vrot.slane %v1462, %v1544
        %vm1566 = vcmask 261120
        %v1568 = vsel %vm1566, %v979, 0
        %v1571 = vsel %vm1566, %v1300, 0
        %v1574 = vsel %vm1566, %v1301, 0
        %v1577 = vsel %vm1566, %v1302, 0
        %v1580 = vsel %vm1566, %v1303, 0
        %v1583 = vsel %vm1566, %v1304, 0
        %v1586 = vsel %vm1566, %v1305, 0
        %v1589 = vsel %vm1566, %v1306, 0
        %v1592 = vsel %vm1566, %v1307, 0
        %v1595 = vsel %vm1566, %v1308, 0
        %v1598 = vsel %vm1566, %v1309, 0
        %v1601 = vsel %vm1566, %v1310, 0
        %v1604 = vsel %vm1566, %v1311, 0
        %v1607 = vsel %vm1566, %v1312, 0
        %v1610 = vsel %vm1566, %v1313, 0
        %v1613 = vsel %vm1566, %v1314, 0
        %v1616 = vsel %vm1566, %v1315, 0
        %v1619 = vsel %vm1566, %v1316, 0
        %v1622 = vsel %vm1566, %v1317, 0
        %v1625 = vsel %vm1566, %v1318, 0
        %v1628 = vsel %vm1566, %v1319, 0
        %v1631 = vsel %vm1566, %v1320, 0
        %v1634 = vsel %vm1566, %v1321, 0
        %v1637 = vsel %vm1566, %v1322, 0
        %v1640 = vsel %vm1566, %v1323, 0
        %v1643 = vsel %vm1566, %v1324, 0
        %v1646 = vsel %vm1566, %v1325, 0
        %v1649 = vsel %vm1566, %v1326, 0
        %v1652 = vsel %vm1566, %v1327, 0
        %v1655 = vsel %vm1566, %v1328, 0
        %v1658 = vsel %vm1566, %v1329, 0
        %v1661 = vsel %vm1566, %v1330, 0
        %v1664 = vsel %vm1566, %v1331, 0
        %v1667 = vsel %vm1566, %v1332, 0
        %v1670 = vsel %vm1566, %v1333, 0
        %v1673 = vsel %vm1566, %v1334, 0
        %v1676 = vsel %vm1566, %v1335, 0
        %v1679 = vsel %vm1566, %v1336, 0
        %v1682 = vsel %vm1566, %v1337, 0
        %v1685 = vsel %vm1566, %v1338, 0
        %v1688 = vsel %vm1566, %v1339, 0
        %v1691 = vsel %vm1566, %v1340, 0
        %v1694 = vsel %vm1566, %v1341, 0
        %v1697 = vsel %vm1566, %v1342, 0
        %v1700 = vsel %vm1566, %v1343, 0
        %v1703 = vsel %vm1566, %v1344, 0
        %v1706 = vsel %vm1566, %v1345, 0
        %v1709 = vsel %vm1566, %v1346, 0
        %v1712 = vsel %vm1566, %v1347, 0
        %v1715 = vsel %vm1566, %v1348, 0
        %v1718 = vsel %vm1566, %v1349, 0
        %v1721 = vsel %vm1566, %v1350, 0
        %v1724 = vsel %vm1566, %v1351, 0
        %v1727 = vsel %vm1566, %v1352, 0
        %v1730 = vsel %vm1566, %v1353, 0
        %v1733 = vsel %vm1566, %v1354, 0
        %v1736 = vsel %vm1566, %v1355, 0
        %v1739 = vsel %vm1566, %v1356, 0
        %v1742 = vsel %vm1566, %v1357, 0
        %v1745 = vsel %vm1566, %v1358, 0
        %v1748 = vsel %vm1566, %v1359, 0
        %v1751 = vsel %vm1566, %v1360, 0
        %v1754 = vsel %vm1566, %v1361, 0
        %v1757 = vsel %vm1566, %v1362, 0
        %v1760 = vsel %vm1566, %v1363, 0
        %v1763 = vsel %vm1566, %v1364, 0
        %v1766 = vsel %vm1566, %v1365, 0
        %v1769 = vsel %vm1566, %v1366, 0
        %v1772 = vsel %vm1566, %v1367, 0
        %v1775 = vsel %vm1566, %v1368, 0
        %v1778 = vsel %vm1566, %v1369, 0
        %v1781 = vsel %vm1566, %v1370, 0
        %v1784 = vsel %vm1566, %v1371, 0
        %v1787 = vsel %vm1566, %v1372, 0
        %v1790 = vsel %vm1566, %v1373, 0
        %v1793 = vsel %vm1566, %v1374, 0
        %v1796 = vsel %vm1566, %v1375, 0
        %v1799 = vsel %vm1566, %v1376, 0
        %v1802 = vsel %vm1566, %v1377, 0
        %v1805 = vsel %vm1566, %v1378, 0
        %v1808 = vsel %vm1566, %v1379, 0
        %v1811 = vsel %vm1566, %v1380, 0
        %v1814 = vsel %vm1566, %v1381, 0
        %v1817 = vsel %vm1566, %v1382, 0
        %v1820 = vsel %vm1566, %v1383, 0
        %v1823 = vsel %vm1566, %v1384, 0
        %v1826 = vsel %vm1566, %v1385, 0
        %v1829 = vsel %vm1566, %v1386, 0
        %v1832 = vsel %vm1566, %v1387, 0
        %v1835 = vsel %vm1566, %v1388, 0
        %v1838 = vsel %vm1566, %v1389, 0
        %v1841 = vsel %vm1566, %v1390, 0
        %v1844 = vsel %vm1566, %v1391, 0
        %v1847 = vsel %vm1566, %v1392, 0
        %v1850 = vsel %vm1566, %v1393, 0
        %v1853 = vsel %vm1566, %v1394, 0
        %v1856 = vsel %vm1566, %v1395, 0
        %v1859 = vsel %vm1566, %v1396, 0
        %v1862 = vsel %vm1566, %v1397, 0
        %v1865 = vsel %vm1566, %v1398, 0
        %v1868 = vsel %vm1566, %v1399, 0
        %v1871 = vsel %vm1566, %v1400, 0
        %v1874 = vsel %vm1566, %v1401, 0
        %v1877 = vsel %vm1566, %v1402, 0
        %v1880 = vsel %vm1566, %v1403, 0
        %v1883 = vsel %vm1566, %v1404, 0
        %v1886 = vsel %vm1566, %v1405, 0
        %v1889 = vsel %vm1566, %v1406, 0
        %v1892 = vsel %vm1566, %v1407, 0
        %v1895 = vsel %vm1566, %v1408, 0
        %v1898 = vsel %vm1566, %v1409, 0
        %v1901 = vsel %vm1566, %v1410, 0
        %v1904 = vsel %vm1566, %v1411, 0
        %v1907 = vsel %vm1566, %v1412, 0
        %v1910 = vsel %vm1566, %v1413, 0
        %v1913 = vsel %vm1566, %v1414, 0
        %v1916 = vsel %vm1566, %v1415, 0
        %v1919 = vsel %vm1566, %v1416, 0
        %v1922 = vsel %vm1566, %v1417, 0
        %v1925 = vsel %vm1566, %v1418, 0
        %v1928 = vsel %vm1566, %v1419, 0
        %v1931 = vsel %vm1566, %v1420, 0
        %v1934 = vsel %vm1566, %v1421, 0
        %v1937 = vsel %vm1566, %v1422, 0
        %v1940 = vsel %vm1566, %v1423, 0
        %v1943 = vsel %vm1566, %v1424, 0
        %v1946 = vsel %vm1566, %v1425, 0
        %v1949 = vsel %vm1566, %v1426, 0
        %v1952 = vsel %vm1566, %v1427, 0
        %v1955 = vsel %vm1566, %v1428, 0
        %v1958 = vsel %vm1566, %v1429, 0
        %v1961 = vsel %vm1566, %v1430, 0
        %v1964 = vsel %vm1566, %v1431, 0
        %v1967 = vsel %vm1566, %v1432, 0
        %v1970 = vsel %vm1566, %v1433, 0
        %v1973 = vsel %vm1566, %v1434, 0
        %v1976 = vsel %vm1566, %v1435, 0
        %v1979 = vsel %vm1566, %v1436, 0
        %v1982 = vsel %vm1566, %v1437, 0
        %v1985 = vsel %vm1566, %v1438, 0
        %v1988 = vsel %vm1566, %v1439, 0
        %v1991 = vsel %vm1566, %v1440, 0
        %v1994 = vsel %vm1566, %v1441, 0
        %v1997 = vsel %vm1566, %v1442, 0
        %v2000 = vsel %vm1566, %v1443, 0
        %v2003 = vsel %vm1566, %v1444, 0
        %v2006 = vsel %vm1566, %v1445, 0
        %v2009 = vsel %vm1566, %v1446, 0
        %v2012 = vsel %vm1566, %v1447, 0
        %v2015 = vsel %vm1566, %v1448, 0
        %v2018 = vsel %vm1566, %v1449, 0
        %v2021 = vsel %vm1566, %v1450, 0
        %v2024 = vsel %vm1566, %v1451, 0
        %v2027 = vsel %vm1566, %v1452, 0
        %v2030 = vsel %vm1566, %v1453, 0
        %v2033 = vsel %vm1566, %v1454, 0
        %v2036 = vsel %vm1566, %v1455, 0
        %v2039 = vsel %vm1566, %v1456, 0
        %v2042 = vsel %vm1566, %v1457, 0
        %v2045 = vsel %vm1566, %v1458, 0
        %v2048 = vsel %vm1566, %v1459, 0
        %2050 = vmatprep.subr.bf16.mxu0 0
        %2051 = vmatpush1.bf16.xpose.msra.mxu0 %v1571
        %2052 = vmatprep.subr.bf16.mxu0 0
        %2053 = vmatpush1.bf16.xpose.msra.mxu0 %v1574
        %2054 = vmatprep.subr.bf16.mxu0 0
        %2055 = vmatpush1.bf16.xpose.msra.mxu0 %v1577
        %2056 = vmatprep.subr.bf16.mxu0 0
        %2057 = vmatpush1.bf16.xpose.msra.mxu0 %v1580
        %2058 = vmatprep.subr.bf16.mxu0 0
        %2059 = vmatpush1.bf16.xpose.msra.mxu0 %v1583
        %2060 = vmatprep.subr.bf16.mxu0 0
        %2061 = vmatpush1.bf16.xpose.msra.mxu0 %v1586
        %2062 = vmatprep.subr.bf16.mxu0 0
        %2063 = vmatpush1.bf16.xpose.msra.mxu0 %v1589
        %2064 = vmatprep.subr.bf16.mxu0 0
        %2065 = vmatpush1.bf16.xpose.msra.mxu0 %v1592
        %2066 = vmatprep.subr.bf16.mxu0 0
        %2067 = vmatpush1.bf16.xpose.msra.mxu0 %v1595
        %2068 = vmatprep.subr.bf16.mxu0 0
        %2069 = vmatpush1.bf16.xpose.msra.mxu0 %v1598
        %2070 = vmatprep.subr.bf16.mxu0 0
        %2071 = vmatpush1.bf16.xpose.msra.mxu0 %v1601
        %2072 = vmatprep.subr.bf16.mxu0 0
        %2073 = vmatpush1.bf16.xpose.msra.mxu0 %v1604
        %2074 = vmatprep.subr.bf16.mxu0 0
        %2075 = vmatpush1.bf16.xpose.msra.mxu0 %v1607
        %2076 = vmatprep.subr.bf16.mxu0 0
        %2077 = vmatpush1.bf16.xpose.msra.mxu0 %v1610
        %2078 = vmatprep.subr.bf16.mxu0 0
        %2079 = vmatpush1.bf16.xpose.msra.mxu0 %v1613
        %2080 = vmatprep.subr.bf16.mxu0 0
        %2081 = vmatpush1.bf16.xpose.msra.mxu0 %v1616
        %2082 = vmatprep.mubr.bf16.mxu0 0
        %2083 = vmatmul.mubr.bf16.gmra.mrb[0].mxu0 %v1568
        %v2084 = vpop.f32.mrb[0].mxu0
        %v2085 = vadd.f32 %v1469, %v2084
        %v2086 = vpop.f32.mrb[0].mxu0
        %v2087 = vadd.f32 %v1473, %v2086
        %v2088 = vpop.f32.mrb[0].mxu0
        %v2089 = vpop.f32.mrb[0].mxu0
        %2090 = vdwg.mxu0
        %2091 = vmatprep.subr.bf16.mxu0 0
        %2092 = vmatpush1.bf16.xpose.msra.mxu0 %v1619
        %2093 = vmatprep.subr.bf16.mxu0 0
        %2094 = vmatpush1.bf16.xpose.msra.mxu0 %v1622
        %2095 = vmatprep.subr.bf16.mxu0 0
        %2096 = vmatpush1.bf16.xpose.msra.mxu0 %v1625
        %2097 = vmatprep.subr.bf16.mxu0 0
        %2098 = vmatpush1.bf16.xpose.msra.mxu0 %v1628
        %2099 = vmatprep.subr.bf16.mxu0 0
        %2100 = vmatpush1.bf16.xpose.msra.mxu0 %v1631
        %2101 = vmatprep.subr.bf16.mxu0 0
        %2102 = vmatpush1.bf16.xpose.msra.mxu0 %v1634
        %2103 = vmatprep.subr.bf16.mxu0 0
        %2104 = vmatpush1.bf16.xpose.msra.mxu0 %v1637
        %2105 = vmatprep.subr.bf16.mxu0 0
        %2106 = vmatpush1.bf16.xpose.msra.mxu0 %v1640
        %2107 = vmatprep.subr.bf16.mxu0 0
        %2108 = vmatpush1.bf16.xpose.msra.mxu0 %v1643
        %2109 = vmatprep.subr.bf16.mxu0 0
        %2110 = vmatpush1.bf16.xpose.msra.mxu0 %v1646
        %2111 = vmatprep.subr.bf16.mxu0 0
        %2112 = vmatpush1.bf16.xpose.msra.mxu0 %v1649
        %2113 = vmatprep.subr.bf16.mxu0 0
        %2114 = vmatpush1.bf16.xpose.msra.mxu0 %v1652
        %2115 = vmatprep.subr.bf16.mxu0 0
        %2116 = vmatpush1.bf16.xpose.msra.mxu0 %v1655
        %2117 = vmatprep.subr.bf16.mxu0 0
        %2118 = vmatpush1.bf16.xpose.msra.mxu0 %v1658
        %2119 = vmatprep.subr.bf16.mxu0 0
        %2120 = vmatpush1.bf16.xpose.msra.mxu0 %v1661
        %2121 = vmatprep.subr.bf16.mxu0 0
        %2122 = vmatpush1.bf16.xpose.msra.mxu0 %v1664
        %2123 = vmatprep.mubr.bf16.mxu0 0
        %2124 = vmatmul.mubr.bf16.gmra.mrb[0].mxu0 %v1568
        %v2125 = vpop.f32.mrb[0].mxu0
        %v2126 = vadd.f32 %v1477, %v2125
        %v2127 = vpop.f32.mrb[0].mxu0
        %v2128 = vadd.f32 %v1481, %v2127
        %v2129 = vpop.f32.mrb[0].mxu0
        %v2130 = vpop.f32.mrb[0].mxu0
        %2131 = vdwg.mxu0
        %2132 = vmatprep.subr.bf16.mxu0 0
        %2133 = vmatpush1.bf16.xpose.msra.mxu0 %v1667
        %2134 = vmatprep.subr.bf16.mxu0 0
        %2135 = vmatpush1.bf16.xpose.msra.mxu0 %v1670
        %2136 = vmatprep.subr.bf16.mxu0 0
        %2137 = vmatpush1.bf16.xpose.msra.mxu0 %v1673
        %2138 = vmatprep.subr.bf16.mxu0 0
        %2139 = vmatpush1.bf16.xpose.msra.mxu0 %v1676
        %2140 = vmatprep.subr.bf16.mxu0 0
        %2141 = vmatpush1.bf16.xpose.msra.mxu0 %v1679
        %2142 = vmatprep.subr.bf16.mxu0 0
        %2143 = vmatpush1.bf16.xpose.msra.mxu0 %v1682
        %2144 = vmatprep.subr.bf16.mxu0 0
        %2145 = vmatpush1.bf16.xpose.msra.mxu0 %v1685
        %2146 = vmatprep.subr.bf16.mxu0 0
        %2147 = vmatpush1.bf16.xpose.msra.mxu0 %v1688
        %2148 = vmatprep.subr.bf16.mxu0 0
        %2149 = vmatpush1.bf16.xpose.msra.mxu0 %v1691
        %2150 = vmatprep.subr.bf16.mxu0 0
        %2151 = vmatpush1.bf16.xpose.msra.mxu0 %v1694
        %2152 = vmatprep.subr.bf16.mxu0 0
        %2153 = vmatpush1.bf16.xpose.msra.mxu0 %v1697
        %2154 = vmatprep.subr.bf16.mxu0 0
        %2155 = vmatpush1.bf16.xpose.msra.mxu0 %v1700
        %2156 = vmatprep.subr.bf16.mxu0 0
        %2157 = vmatpush1.bf16.xpose.msra.mxu0 %v1703
        %2158 = vmatprep.subr.bf16.mxu0 0
        %2159 = vmatpush1.bf16.xpose.msra.mxu0 %v1706
        %2160 = vmatprep.subr.bf16.mxu0 0
        %2161 = vmatpush1.bf16.xpose.msra.mxu0 %v1709
        %2162 = vmatprep.subr.bf16.mxu0 0
        %2163 = vmatpush1.bf16.xpose.msra.mxu0 %v1712
        %2164 = vmatprep.mubr.bf16.mxu0 0
        %2165 = vmatmul.mubr.bf16.gmra.mrb[0].mxu0 %v1568
        %v2166 = vpop.f32.mrb[0].mxu0
        %v2167 = vadd.f32 %v1485, %v2166
        %v2168 = vpop.f32.mrb[0].mxu0
        %v2169 = vadd.f32 %v1489, %v2168
        %v2170 = vpop.f32.mrb[0].mxu0
        %v2171 = vpop.f32.mrb[0].mxu0
        %2172 = vdwg.mxu0
        %2173 = vmatprep.subr.bf16.mxu0 0
        %2174 = vmatpush1.bf16.xpose.msra.mxu0 %v1715
        %2175 = vmatprep.subr.bf16.mxu0 0
        %2176 = vmatpush1.bf16.xpose.msra.mxu0 %v1718
        %2177 = vmatprep.subr.bf16.mxu0 0
        %2178 = vmatpush1.bf16.xpose.msra.mxu0 %v1721
        %2179 = vmatprep.subr.bf16.mxu0 0
        %2180 = vmatpush1.bf16.xpose.msra.mxu0 %v1724
        %2181 = vmatprep.subr.bf16.mxu0 0
        %2182 = vmatpush1.bf16.xpose.msra.mxu0 %v1727
        %2183 = vmatprep.subr.bf16.mxu0 0
        %2184 = vmatpush1.bf16.xpose.msra.mxu0 %v1730
        %2185 = vmatprep.subr.bf16.mxu0 0
        %2186 = vmatpush1.bf16.xpose.msra.mxu0 %v1733
        %2187 = vmatprep.subr.bf16.mxu0 0
        %2188 = vmatpush1.bf16.xpose.msra.mxu0 %v1736
        %2189 = vmatprep.subr.bf16.mxu0 0
        %2190 = vmatpush1.bf16.xpose.msra.mxu0 %v1739
        %2191 = vmatprep.subr.bf16.mxu0 0
        %2192 = vmatpush1.bf16.xpose.msra.mxu0 %v1742
        %2193 = vmatprep.subr.bf16.mxu0 0
        %2194 = vmatpush1.bf16.xpose.msra.mxu0 %v1745
        %2195 = vmatprep.subr.bf16.mxu0 0
        %2196 = vmatpush1.bf16.xpose.msra.mxu0 %v1748
        %2197 = vmatprep.subr.bf16.mxu0 0
        %2198 = vmatpush1.bf16.xpose.msra.mxu0 %v1751
        %2199 = vmatprep.subr.bf16.mxu0 0
        %2200 = vmatpush1.bf16.xpose.msra.mxu0 %v1754
        %2201 = vmatprep.subr.bf16.mxu0 0
        %2202 = vmatpush1.bf16.xpose.msra.mxu0 %v1757
        %2203 = vmatprep.subr.bf16.mxu0 0
        %2204 = vmatpush1.bf16.xpose.msra.mxu0 %v1760
        %2205 = vmatprep.mubr.bf16.mxu0 0
        %2206 = vmatmul.mubr.bf16.gmra.mrb[0].mxu0 %v1568
        %v2207 = vpop.f32.mrb[0].mxu0
        %v2208 = vadd.f32 %v1493, %v2207
        %v2209 = vpop.f32.mrb[0].mxu0
        %v2210 = vadd.f32 %v1497, %v2209
        %v2211 = vpop.f32.mrb[0].mxu0
        %v2212 = vpop.f32.mrb[0].mxu0
        %2213 = vdwg.mxu0
        %2214 = vmatprep.subr.bf16.mxu0 0
        %2215 = vmatpush1.bf16.xpose.msra.mxu0 %v1763
        %2216 = vmatprep.subr.bf16.mxu0 0
        %2217 = vmatpush1.bf16.xpose.msra.mxu0 %v1766
        %2218 = vmatprep.subr.bf16.mxu0 0
        %2219 = vmatpush1.bf16.xpose.msra.mxu0 %v1769
        %2220 = vmatprep.subr.bf16.mxu0 0
        %2221 = vmatpush1.bf16.xpose.msra.mxu0 %v1772
        %2222 = vmatprep.subr.bf16.mxu0 0
        %2223 = vmatpush1.bf16.xpose.msra.mxu0 %v1775
        %2224 = vmatprep.subr.bf16.mxu0 0
        %2225 = vmatpush1.bf16.xpose.msra.mxu0 %v1778
        %2226 = vmatprep.subr.bf16.mxu0 0
        %2227 = vmatpush1.bf16.xpose.msra.mxu0 %v1781
        %2228 = vmatprep.subr.bf16.mxu0 0
        %2229 = vmatpush1.bf16.xpose.msra.mxu0 %v1784
        %2230 = vmatprep.subr.bf16.mxu0 0
        %2231 = vmatpush1.bf16.xpose.msra.mxu0 %v1787
        %2232 = vmatprep.subr.bf16.mxu0 0
        %2233 = vmatpush1.bf16.xpose.msra.mxu0 %v1790
        %2234 = vmatprep.subr.bf16.mxu0 0
        %2235 = vmatpush1.bf16.xpose.msra.mxu0 %v1793
        %2236 = vmatprep.subr.bf16.mxu0 0
        %2237 = vmatpush1.bf16.xpose.msra.mxu0 %v1796
        %2238 = vmatprep.subr.bf16.mxu0 0
        %2239 = vmatpush1.bf16.xpose.msra.mxu0 %v1799
        %2240 = vmatprep.subr.bf16.mxu0 0
        %2241 = vmatpush1.bf16.xpose.msra.mxu0 %v1802
        %2242 = vmatprep.subr.bf16.mxu0 0
        %2243 = vmatpush1.bf16.xpose.msra.mxu0 %v1805
        %2244 = vmatprep.subr.bf16.mxu0 0
        %2245 = vmatpush1.bf16.xpose.msra.mxu0 %v1808
        %2246 = vmatprep.mubr.bf16.mxu0 0
        %2247 = vmatmul.mubr.bf16.gmra.mrb[0].mxu0 %v1568
        %v2248 = vpop.f32.mrb[0].mxu0
        %v2249 = vadd.f32 %v1501, %v2248
        %v2250 = vpop.f32.mrb[0].mxu0
        %v2251 = vadd.f32 %v1505, %v2250
        %v2252 = vpop.f32.mrb[0].mxu0
        %v2253 = vpop.f32.mrb[0].mxu0
        %2254 = vdwg.mxu0
        %2255 = vmatprep.subr.bf16.mxu0 0
        %2256 = vmatpush1.bf16.xpose.msra.mxu0 %v1811
        %2257 = vmatprep.subr.bf16.mxu0 0
        %2258 = vmatpush1.bf16.xpose.msra.mxu0 %v1814
        %2259 = vmatprep.subr.bf16.mxu0 0
        %2260 = vmatpush1.bf16.xpose.msra.mxu0 %v1817
        %2261 = vmatprep.subr.bf16.mxu0 0
        %2262 = vmatpush1.bf16.xpose.msra.mxu0 %v1820
        %2263 = vmatprep.subr.bf16.mxu0 0
        %2264 = vmatpush1.bf16.xpose.msra.mxu0 %v1823
        %2265 = vmatprep.subr.bf16.mxu0 0
        %2266 = vmatpush1.bf16.xpose.msra.mxu0 %v1826
        %2267 = vmatprep.subr.bf16.mxu0 0
        %2268 = vmatpush1.bf16.xpose.msra.mxu0 %v1829
        %2269 = vmatprep.subr.bf16.mxu0 0
        %2270 = vmatpush1.bf16.xpose.msra.mxu0 %v1832
        %2271 = vmatprep.subr.bf16.mxu0 0
        %2272 = vmatpush1.bf16.xpose.msra.mxu0 %v1835
        %2273 = vmatprep.subr.bf16.mxu0 0
        %2274 = vmatpush1.bf16.xpose.msra.mxu0 %v1838
        %2275 = vmatprep.subr.bf16.mxu0 0
        %2276 = vmatpush1.bf16.xpose.msra.mxu0 %v1841
        %2277 = vmatprep.subr.bf16.mxu0 0
        %2278 = vmatpush1.bf16.xpose.msra.mxu0 %v1844
        %2279 = vmatprep.subr.bf16.mxu0 0
        %2280 = vmatpush1.bf16.xpose.msra.mxu0 %v1847
        %2281 = vmatprep.subr.bf16.mxu0 0
        %2282 = vmatpush1.bf16.xpose.msra.mxu0 %v1850
        %2283 = vmatprep.subr.bf16.mxu0 0
        %2284 = vmatpush1.bf16.xpose.msra.mxu0 %v1853
        %2285 = vmatprep.subr.bf16.mxu0 0
        %2286 = vmatpush1.bf16.xpose.msra.mxu0 %v1856
        %2287 = vmatprep.mubr.bf16.mxu0 0
        %2288 = vmatmul.mubr.bf16.gmra.mrb[0].mxu0 %v1568
        %v2289 = vpop.f32.mrb[0].mxu0
        %v2290 = vadd.f32 %v1509, %v2289
        %v2291 = vpop.f32.mrb[0].mxu0
        %v2292 = vadd.f32 %v1513, %v2291
        %v2293 = vpop.f32.mrb[0].mxu0
        %v2294 = vpop.f32.mrb[0].mxu0
        %2295 = vdwg.mxu0
        %2296 = vmatprep.subr.bf16.mxu0 0
        %2297 = vmatpush1.bf16.xpose.msra.mxu0 %v1859
        %2298 = vmatprep.subr.bf16.mxu0 0
        %2299 = vmatpush1.bf16.xpose.msra.mxu0 %v1862
        %2300 = vmatprep.subr.bf16.mxu0 0
        %2301 = vmatpush1.bf16.xpose.msra.mxu0 %v1865
        %2302 = vmatprep.subr.bf16.mxu0 0
        %2303 = vmatpush1.bf16.xpose.msra.mxu0 %v1868
        %2304 = vmatprep.subr.bf16.mxu0 0
        %2305 = vmatpush1.bf16.xpose.msra.mxu0 %v1871
        %2306 = vmatprep.subr.bf16.mxu0 0
        %2307 = vmatpush1.bf16.xpose.msra.mxu0 %v1874
        %2308 = vmatprep.subr.bf16.mxu0 0
        %2309 = vmatpush1.bf16.xpose.msra.mxu0 %v1877
        %2310 = vmatprep.subr.bf16.mxu0 0
        %2311 = vmatpush1.bf16.xpose.msra.mxu0 %v1880
        %2312 = vmatprep.subr.bf16.mxu0 0
        %2313 = vmatpush1.bf16.xpose.msra.mxu0 %v1883
        %2314 = vmatprep.subr.bf16.mxu0 0
        %2315 = vmatpush1.bf16.xpose.msra.mxu0 %v1886
        %2316 = vmatprep.subr.bf16.mxu0 0
        %2317 = vmatpush1.bf16.xpose.msra.mxu0 %v1889
        %2318 = vmatprep.subr.bf16.mxu0 0
        %2319 = vmatpush1.bf16.xpose.msra.mxu0 %v1892
        %2320 = vmatprep.subr.bf16.mxu0 0
        %2321 = vmatpush1.bf16.xpose.msra.mxu0 %v1895
        %2322 = vmatprep.subr.bf16.mxu0 0
        %2323 = vmatpush1.bf16.xpose.msra.mxu0 %v1898
        %2324 = vmatprep.subr.bf16.mxu0 0
        %2325 = vmatpush1.bf16.xpose.msra.mxu0 %v1901
        %2326 = vmatprep.subr.bf16.mxu0 0
        %2327 = vmatpush1.bf16.xpose.msra.mxu0 %v1904
        %2328 = vmatprep.mubr.bf16.mxu0 0
        %2329 = vmatmul.mubr.bf16.gmra.mrb[0].mxu0 %v1568
        %v2330 = vpop.f32.mrb[0].mxu0
        %v2331 = vadd.f32 %v1517, %v2330
        %v2332 = vpop.f32.mrb[0].mxu0
        %v2333 = vadd.f32 %v1521, %v2332
        %v2334 = vpop.f32.mrb[0].mxu0
        %v2335 = vpop.f32.mrb[0].mxu0
        %2336 = vdwg.mxu0
        %2337 = vmatprep.subr.bf16.mxu0 0
        %2338 = vmatpush1.bf16.xpose.msra.mxu0 %v1907
        %2339 = vmatprep.subr.bf16.mxu0 0
        %2340 = vmatpush1.bf16.xpose.msra.mxu0 %v1910
        %2341 = vmatprep.subr.bf16.mxu0 0
        %2342 = vmatpush1.bf16.xpose.msra.mxu0 %v1913
        %2343 = vmatprep.subr.bf16.mxu0 0
        %2344 = vmatpush1.bf16.xpose.msra.mxu0 %v1916
        %2345 = vmatprep.subr.bf16.mxu0 0
        %2346 = vmatpush1.bf16.xpose.msra.mxu0 %v1919
        %2347 = vmatprep.subr.bf16.mxu0 0
        %2348 = vmatpush1.bf16.xpose.msra.mxu0 %v1922
        %2349 = vmatprep.subr.bf16.mxu0 0
        %2350 = vmatpush1.bf16.xpose.msra.mxu0 %v1925
        %2351 = vmatprep.subr.bf16.mxu0 0
        %2352 = vmatpush1.bf16.xpose.msra.mxu0 %v1928
        %2353 = vmatprep.subr.bf16.mxu0 0
        %2354 = vmatpush1.bf16.xpose.msra.mxu0 %v1931
        %2355 = vmatprep.subr.bf16.mxu0 0
        %2356 = vmatpush1.bf16.xpose.msra.mxu0 %v1934
        %2357 = vmatprep.subr.bf16.mxu0 0
        %2358 = vmatpush1.bf16.xpose.msra.mxu0 %v1937
        %2359 = vmatprep.subr.bf16.mxu0 0
        %2360 = vmatpush1.bf16.xpose.msra.mxu0 %v1940
        %2361 = vmatprep.subr.bf16.mxu0 0
        %2362 = vmatpush1.bf16.xpose.msra.mxu0 %v1943
        %2363 = vmatprep.subr.bf16.mxu0 0
        %2364 = vmatpush1.bf16.xpose.msra.mxu0 %v1946
        %2365 = vmatprep.subr.bf16.mxu0 0
        %2366 = vmatpush1.bf16.xpose.msra.mxu0 %v1949
        %2367 = vmatprep.subr.bf16.mxu0 0
        %2368 = vmatpush1.bf16.xpose.msra.mxu0 %v1952
        %2369 = vmatprep.mubr.bf16.mxu0 0
        %2370 = vmatmul.mubr.bf16.gmra.mrb[0].mxu0 %v1568
        %v2371 = vpop.f32.mrb[0].mxu0
        %v2372 = vadd.f32 %v1525, %v2371
        %v2373 = vpop.f32.mrb[0].mxu0
        %v2374 = vadd.f32 %v1529, %v2373
        %v2375 = vpop.f32.mrb[0].mxu0
        %v2376 = vpop.f32.mrb[0].mxu0
        %2377 = vdwg.mxu0
        %2378 = vmatprep.subr.bf16.mxu0 0
        %2379 = vmatpush1.bf16.xpose.msra.mxu0 %v1955
        %2380 = vmatprep.subr.bf16.mxu0 0
        %2381 = vmatpush1.bf16.xpose.msra.mxu0 %v1958
        %2382 = vmatprep.subr.bf16.mxu0 0
        %2383 = vmatpush1.bf16.xpose.msra.mxu0 %v1961
        %2384 = vmatprep.subr.bf16.mxu0 0
        %2385 = vmatpush1.bf16.xpose.msra.mxu0 %v1964
        %2386 = vmatprep.subr.bf16.mxu0 0
        %2387 = vmatpush1.bf16.xpose.msra.mxu0 %v1967
        %2388 = vmatprep.subr.bf16.mxu0 0
        %2389 = vmatpush1.bf16.xpose.msra.mxu0 %v1970
        %2390 = vmatprep.subr.bf16.mxu0 0
        %2391 = vmatpush1.bf16.xpose.msra.mxu0 %v1973
        %2392 = vmatprep.subr.bf16.mxu0 0
        %2393 = vmatpush1.bf16.xpose.msra.mxu0 %v1976
        %2394 = vmatprep.subr.bf16.mxu0 0
        %2395 = vmatpush1.bf16.xpose.msra.mxu0 %v1979
        %2396 = vmatprep.subr.bf16.mxu0 0
        %2397 = vmatpush1.bf16.xpose.msra.mxu0 %v1982
        %2398 = vmatprep.subr.bf16.mxu0 0
        %2399 = vmatpush1.bf16.xpose.msra.mxu0 %v1985
        %2400 = vmatprep.subr.bf16.mxu0 0
        %2401 = vmatpush1.bf16.xpose.msra.mxu0 %v1988
        %2402 = vmatprep.subr.bf16.mxu0 0
        %2403 = vmatpush1.bf16.xpose.msra.mxu0 %v1991
        %2404 = vmatprep.subr.bf16.mxu0 0
        %2405 = vmatpush1.bf16.xpose.msra.mxu0 %v1994
        %2406 = vmatprep.subr.bf16.mxu0 0
        %2407 = vmatpush1.bf16.xpose.msra.mxu0 %v1997
        %2408 = vmatprep.subr.bf16.mxu0 0
        %2409 = vmatpush1.bf16.xpose.msra.mxu0 %v2000
        %2410 = vmatprep.mubr.bf16.mxu0 0
        %2411 = vmatmul.mubr.bf16.gmra.mrb[0].mxu0 %v1568
        %v2412 = vpop.f32.mrb[0].mxu0
        %v2413 = vadd.f32 %v1533, %v2412
        %v2414 = vpop.f32.mrb[0].mxu0
        %v2415 = vadd.f32 %v1537, %v2414
        %v2416 = vpop.f32.mrb[0].mxu0
        %v2417 = vpop.f32.mrb[0].mxu0
        %2418 = vdwg.mxu0
        %2419 = vmatprep.subr.bf16.mxu0 0
        %2420 = vmatpush1.bf16.xpose.msra.mxu0 %v2003
        %2421 = vmatprep.subr.bf16.mxu0 0
        %2422 = vmatpush1.bf16.xpose.msra.mxu0 %v2006
        %2423 = vmatprep.subr.bf16.mxu0 0
        %2424 = vmatpush1.bf16.xpose.msra.mxu0 %v2009
        %2425 = vmatprep.subr.bf16.mxu0 0
        %2426 = vmatpush1.bf16.xpose.msra.mxu0 %v2012
        %2427 = vmatprep.subr.bf16.mxu0 0
        %2428 = vmatpush1.bf16.xpose.msra.mxu0 %v2015
        %2429 = vmatprep.subr.bf16.mxu0 0
        %2430 = vmatpush1.bf16.xpose.msra.mxu0 %v2018
        %2431 = vmatprep.subr.bf16.mxu0 0
        %2432 = vmatpush1.bf16.xpose.msra.mxu0 %v2021
        %2433 = vmatprep.subr.bf16.mxu0 0
        %2434 = vmatpush1.bf16.xpose.msra.mxu0 %v2024
        %2435 = vmatprep.subr.bf16.mxu0 0
        %2436 = vmatpush1.bf16.xpose.msra.mxu0 %v2027
        %2437 = vmatprep.subr.bf16.mxu0 0
        %2438 = vmatpush1.bf16.xpose.msra.mxu0 %v2030
        %2439 = vmatprep.subr.bf16.mxu0 0
        %2440 = vmatpush1.bf16.xpose.msra.mxu0 %v2033
        %2441 = vmatprep.subr.bf16.mxu0 0
        %2442 = vmatpush1.bf16.xpose.msra.mxu0 %v2036
        %2443 = vmatprep.subr.bf16.mxu0 0
        %2444 = vmatpush1.bf16.xpose.msra.mxu0 %v2039
        %2445 = vmatprep.subr.bf16.mxu0 0
        %2446 = vmatpush1.bf16.xpose.msra.mxu0 %v2042
        %2447 = vmatprep.subr.bf16.mxu0 0
        %2448 = vmatpush1.bf16.xpose.msra.mxu0 %v2045
        %2449 = vmatprep.subr.bf16.mxu0 0
        %2450 = vmatpush1.bf16.xpose.msra.mxu0 %v2048
        %2451 = vmatprep.mubr.bf16.mxu0 0
        %2452 = vmatmul.mubr.bf16.gmra.mrb[0].mxu0 %v1568
        %v2453 = vpop.f32.mrb[0].mxu0
        %v2454 = vadd.f32 %v1541, %v2453
        %v2455 = vpop.f32.mrb[0].mxu0
        %v2456 = vadd.f32 %v1545, %v2455
        %v2457 = vpop.f32.mrb[0].mxu0
        %v2458 = vpop.f32.mrb[0].mxu0
        %2459 = vdwg.mxu0
        %v2460 = vmax.f32 %v2085, 0.0
        %v2461 = vmax.f32 %v2087, 0.0
        %v2462 = vmax.f32 %v2126, 0.0
        %v2463 = vmax.f32 %v2128, 0.0
        %v2464 = vmax.f32 %v2167, 0.0
        %v2465 = vmax.f32 %v2169, 0.0
        %v2466 = vmax.f32 %v2208, 0.0
        %v2467 = vmax.f32 %v2210, 0.0
        %v2468 = vmax.f32 %v2249, 0.0
        %v2469 = vmax.f32 %v2251, 0.0
        %v2470 = vmax.f32 %v2290, 0.0
        %v2471 = vmax.f32 %v2292, 0.0
        %v2472 = vmax.f32 %v2331, 0.0
        %v2473 = vmax.f32 %v2333, 0.0
        %v2474 = vmax.f32 %v2372, 0.0
        %v2475 = vmax.f32 %v2374, 0.0
        %v2476 = vmax.f32 %v2413, 0.0
        %v2477 = vmax.f32 %v2415, 0.0
        %v2478 = vmax.f32 %v2454, 0.0
        %v2479 = vmax.f32 %v2456, 0.0
        %s2480 = smul.u32 %s22, 2560
        %v2481 = vlaneseq
        %v2482 = vand.u32 %v2481, 127
        %v2483 = vadd.s32 %v2482, 128
        %v2484 = vadd.s32 %v2482, 256
        %v2485 = vadd.s32 %v2482, 384
        %v2486 = vadd.s32 %v2482, 512
        %v2487 = vadd.s32 %v2482, 640
        %v2488 = vadd.s32 %v2482, 768
        %v2489 = vadd.s32 %v2482, 896
        %v2490 = vadd.s32 %v2482, 1024
        %v2491 = vadd.s32 %v2482, 1152
        %v2492 = vadd.s32 %v2482, 1280
        %v2493 = vadd.s32 %v2482, 1408
        %v2494 = vadd.s32 %v2482, 1536
        %v2495 = vadd.s32 %v2482, 1664
        %v2496 = vadd.s32 %v2482, 1792
        %v2497 = vadd.s32 %v2482, 1920
        %v2498 = vadd.s32 %v2482, 2048
        %v2499 = vadd.s32 %v2482, 2176
        %v2500 = vadd.s32 %v2482, 2304
        %v2501 = vadd.s32 %v2482, 2432
        %v2502 = vstv %s2480
        %v2503 = vadd.s32 %v2502, %v2482
        %v2504 = vadd.s32 %v2502, %v2483
        %v2505 = vadd.s32 %v2502, %v2484
        %v2506 = vadd.s32 %v2502, %v2485
        %v2507 = vadd.s32 %v2502, %v2486
        %v2508 = vadd.s32 %v2502, %v2487
        %v2509 = vadd.s32 %v2502, %v2488
        %v2510 = vadd.s32 %v2502, %v2489
        %v2511 = vadd.s32 %v2502, %v2490
        %v2512 = vadd.s32 %v2502, %v2491
        %v2513 = vadd.s32 %v2502, %v2492
        %v2514 = vadd.s32 %v2502, %v2493
        %v2515 = vadd.s32 %v2502, %v2494
        %v2516 = vadd.s32 %v2502, %v2495
        %v2517 = vadd.s32 %v2502, %v2496
        %v2518 = vadd.s32 %v2502, %v2497
        %v2519 = vadd.s32 %v2502, %v2498
        %v2520 = vadd.s32 %v2502, %v2499
        %v2521 = vadd.s32 %v2502, %v2500
        %v2522 = vadd.s32 %v2502, %v2501
        %vm2523 = vcmp.lt.s32.totalorder %v2503, 5000
        %vm2524 = vcmp.lt.s32.totalorder %v2504, 5000
        %vm2525 = vcmp.lt.s32.totalorder %v2505, 5000
        %vm2526 = vcmp.lt.s32.totalorder %v2506, 5000
        %vm2527 = vcmp.lt.s32.totalorder %v2507, 5000
        %vm2528 = vcmp.lt.s32.totalorder %v2508, 5000
        %vm2529 = vcmp.lt.s32.totalorder %v2509, 5000
        %vm2530 = vcmp.lt.s32.totalorder %v2510, 5000
        %vm2531 = vcmp.lt.s32.totalorder %v2511, 5000
        %vm2532 = vcmp.lt.s32.totalorder %v2512, 5000
        %vm2533 = vcmp.lt.s32.totalorder %v2513, 5000
        %vm2534 = vcmp.lt.s32.totalorder %v2514, 5000
        %vm2535 = vcmp.lt.s32.totalorder %v2515, 5000
        %vm2536 = vcmp.lt.s32.totalorder %v2516, 5000
        %vm2537 = vcmp.lt.s32.totalorder %v2517, 5000
        %vm2538 = vcmp.lt.s32.totalorder %v2518, 5000
        %vm2539 = vcmp.lt.s32.totalorder %v2519, 5000
        %vm2540 = vcmp.lt.s32.totalorder %v2520, 5000
        %vm2541 = vcmp.lt.s32.totalorder %v2521, 5000
        %vm2542 = vcmp.lt.s32.totalorder %v2522, 5000
        %v2543 = vsel %vm2523, 1, 0
        %v2544 = vsel %vm2524, 1, 0
        %v2545 = vsel %vm2525, 1, 0
        %v2546 = vsel %vm2526, 1, 0
        %v2547 = vsel %vm2527, 1, 0
        %v2548 = vsel %vm2528, 1, 0
        %v2549 = vsel %vm2529, 1, 0
        %v2550 = vsel %vm2530, 1, 0
        %v2551 = vsel %vm2531, 1, 0
        %v2552 = vsel %vm2532, 1, 0
        %v2553 = vsel %vm2533, 1, 0
        %v2554 = vsel %vm2534, 1, 0
        %v2555 = vsel %vm2535, 1, 0
        %v2556 = vsel %vm2536, 1, 0
        %v2557 = vsel %vm2537, 1, 0
        %v2558 = vsel %vm2538, 1, 0
        %v2559 = vsel %vm2539, 1, 0
        %v2560 = vsel %vm2540, 1, 0
        %v2561 = vsel %vm2541, 1, 0
        %v2562 = vsel %vm2542, 1, 0
        %vm2563 = vcmp.eq.s32.totalorder %v2543, 1
        %vm2564 = vcmp.eq.s32.totalorder %v2544, 1
        %vm2565 = vcmp.eq.s32.totalorder %v2545, 1
        %vm2566 = vcmp.eq.s32.totalorder %v2546, 1
        %vm2567 = vcmp.eq.s32.totalorder %v2547, 1
        %vm2568 = vcmp.eq.s32.totalorder %v2548, 1
        %vm2569 = vcmp.eq.s32.totalorder %v2549, 1
        %vm2570 = vcmp.eq.s32.totalorder %v2550, 1
        %vm2571 = vcmp.eq.s32.totalorder %v2551, 1
        %vm2572 = vcmp.eq.s32.totalorder %v2552, 1
        %vm2573 = vcmp.eq.s32.totalorder %v2553, 1
        %vm2574 = vcmp.eq.s32.totalorder %v2554, 1
        %vm2575 = vcmp.eq.s32.totalorder %v2555, 1
        %vm2576 = vcmp.eq.s32.totalorder %v2556, 1
        %vm2577 = vcmp.eq.s32.totalorder %v2557, 1
        %vm2578 = vcmp.eq.s32.totalorder %v2558, 1
        %vm2579 = vcmp.eq.s32.totalorder %v2559, 1
        %vm2580 = vcmp.eq.s32.totalorder %v2560, 1
        %vm2581 = vcmp.eq.s32.totalorder %v2561, 1
        %vm2582 = vcmp.eq.s32.totalorder %v2562, 1
        %v2583 = vsel %vm2563, %v2460, 0.0
        %v2584 = vsel %vm2564, %v2461, 0.0
        %v2585 = vsel %vm2565, %v2462, 0.0
        %v2586 = vsel %vm2566, %v2463, 0.0
        %v2587 = vsel %vm2567, %v2464, 0.0
        %v2588 = vsel %vm2568, %v2465, 0.0
        %v2589 = vsel %vm2569, %v2466, 0.0
        %v2590 = vsel %vm2570, %v2467, 0.0
        %v2591 = vsel %vm2571, %v2468, 0.0
        %v2592 = vsel %vm2572, %v2469, 0.0
        %v2593 = vsel %vm2573, %v2470, 0.0
        %v2594 = vsel %vm2574, %v2471, 0.0
        %v2595 = vsel %vm2575, %v2472, 0.0
        %v2596 = vsel %vm2576, %v2473, 0.0
        %v2597 = vsel %vm2577, %v2474, 0.0
        %v2598 = vsel %vm2578, %v2475, 0.0
        %v2599 = vsel %vm2579, %v2476, 0.0
        %v2600 = vsel %vm2580, %v2477, 0.0
        %v2601 = vsel %vm2581, %v2478, 0.0
        %v2602 = vsel %vm2582, %v2479, 0.0
        %v2603 = vld [vmem:[%s904] sm:$0xff]
        %v2604 = vld [vmem:[%s904 + $0x8] sm:$0xff]
        %v2605 = vld [vmem:[%s904 + $0x10] sm:$0xff]
        %v2606 = vld [vmem:[%s904 + $0x18] sm:$0xff]
        %v2607 = vld [vmem:[%s904 + $0x20] sm:$0xff]
        %v2608 = vld [vmem:[%s904 + $0x28] sm:$0xff]
        %v2609 = vld [vmem:[%s904 + $0x30] sm:$0xff]
        %v2610 = vld [vmem:[%s904 + $0x38] sm:$0xff]
        %v2611 = vld [vmem:[%s904 + $0x40] sm:$0xff]
        %v2612 = vld [vmem:[%s904 + $0x48] sm:$0xff]
        %v2613 = vld [vmem:[%s904 + $0x50] sm:$0xff]
        %v2614 = vld [vmem:[%s904 + $0x58] sm:$0xff]
        %v2615 = vld [vmem:[%s904 + $0x60] sm:$0xff]
        %v2616 = vld [vmem:[%s904 + $0x68] sm:$0xff]
        %v2617 = vld [vmem:[%s904 + $0x70] sm:$0xff]
        %v2618 = vld [vmem:[%s904 + $0x78] sm:$0xff]
        %v2619 = vld [vmem:[%s904 + $0x80] sm:$0xff]
        %v2620 = vld [vmem:[%s904 + $0x88] sm:$0xff]
        %v2621 = vld [vmem:[%s904 + $0x90] sm:$0xff]
        %v2622 = vld [vmem:[%s904 + $0x98] sm:$0xff]
        %v2623 = vld [vmem:[%s904 + $0xa0] sm:$0xff]
        %v2624 = vld [vmem:[%s904 + $0xa8] sm:$0xff]
        %v2625 = vld [vmem:[%s904 + $0xb0] sm:$0xff]
        %v2626 = vld [vmem:[%s904 + $0xb8] sm:$0xff]
        %v2627 = vld [vmem:[%s904 + $0xc0] sm:$0xff]
        %v2628 = vld [vmem:[%s904 + $0xc8] sm:$0xff]
        %v2629 = vld [vmem:[%s904 + $0xd0] sm:$0xff]
        %v2630 = vld [vmem:[%s904 + $0xd8] sm:$0xff]
        %v2631 = vld [vmem:[%s904 + $0xe0] sm:$0xff]
        %v2632 = vld [vmem:[%s904 + $0xe8] sm:$0xff]
        %v2633 = vld [vmem:[%s904 + $0xf0] sm:$0xff]
        %v2634 = vld [vmem:[%s904 + $0xf8] sm:$0xff]
        %v2635 = vld [vmem:[%s904 + $0x100] sm:$0xff]
        %v2636 = vld [vmem:[%s904 + $0x108] sm:$0xff]
        %v2637 = vld [vmem:[%s904 + $0x110] sm:$0xff]
        %v2638 = vld [vmem:[%s904 + $0x118] sm:$0xff]
        %v2639 = vld [vmem:[%s904 + $0x120] sm:$0xff]
        %v2640 = vld [vmem:[%s904 + $0x128] sm:$0xff]
        %v2641 = vld [vmem:[%s904 + $0x130] sm:$0xff]
        %v2642 = vld [vmem:[%s904 + $0x138] sm:$0xff]
        %v2643 = vld [vmem:[%s904 + $0x140] sm:$0xff]
        %v2644 = vld [vmem:[%s904 + $0x148] sm:$0xff]
        %v2645 = vld [vmem:[%s904 + $0x150] sm:$0xff]
        %v2646 = vld [vmem:[%s904 + $0x158] sm:$0xff]
        %v2647 = vld [vmem:[%s904 + $0x160] sm:$0xff]
        %v2648 = vld [vmem:[%s904 + $0x168] sm:$0xff]
        %v2649 = vld [vmem:[%s904 + $0x170] sm:$0xff]
        %v2650 = vld [vmem:[%s904 + $0x178] sm:$0xff]
        %v2651 = vld [vmem:[%s904 + $0x180] sm:$0xff]
        %v2652 = vld [vmem:[%s904 + $0x188] sm:$0xff]
        %v2653 = vld [vmem:[%s904 + $0x190] sm:$0xff]
        %v2654 = vld [vmem:[%s904 + $0x198] sm:$0xff]
        %v2655 = vld [vmem:[%s904 + $0x1a0] sm:$0xff]
        %v2656 = vld [vmem:[%s904 + $0x1a8] sm:$0xff]
        %v2657 = vld [vmem:[%s904 + $0x1b0] sm:$0xff]
        %v2658 = vld [vmem:[%s904 + $0x1b8] sm:$0xff]
        %v2659 = vld [vmem:[%s904 + $0x1c0] sm:$0xff]
        %v2660 = vld [vmem:[%s904 + $0x1c8] sm:$0xff]
        %v2661 = vld [vmem:[%s904 + $0x1d0] sm:$0xff]
        %v2662 = vld [vmem:[%s904 + $0x1d8] sm:$0xff]
        %v2663 = vld [vmem:[%s904 + $0x1e0] sm:$0xff]
        %v2664 = vld [vmem:[%s904 + $0x1e8] sm:$0xff]
        %v2665 = vld [vmem:[%s904 + $0x1f0] sm:$0xff]
        %v2666 = vld [vmem:[%s904 + $0x1f8] sm:$0xff]
        %v2667 = vld [vmem:[%s904 + $0x200] sm:$0xff]
        %v2668 = vld [vmem:[%s904 + $0x208] sm:$0xff]
        %v2669 = vld [vmem:[%s904 + $0x210] sm:$0xff]
        %v2670 = vld [vmem:[%s904 + $0x218] sm:$0xff]
        %v2671 = vld [vmem:[%s904 + $0x220] sm:$0xff]
        %v2672 = vld [vmem:[%s904 + $0x228] sm:$0xff]
        %v2673 = vld [vmem:[%s904 + $0x230] sm:$0xff]
        %v2674 = vld [vmem:[%s904 + $0x238] sm:$0xff]
        %v2675 = vld [vmem:[%s904 + $0x240] sm:$0xff]
        %v2676 = vld [vmem:[%s904 + $0x248] sm:$0xff]
        %v2677 = vld [vmem:[%s904 + $0x250] sm:$0xff]
        %v2678 = vld [vmem:[%s904 + $0x258] sm:$0xff]
        %v2679 = vld [vmem:[%s904 + $0x260] sm:$0xff]
        %v2680 = vld [vmem:[%s904 + $0x268] sm:$0xff]
        %v2681 = vld [vmem:[%s904 + $0x270] sm:$0xff]
        %v2682 = vld [vmem:[%s904 + $0x278] sm:$0xff]
        %v2683 = vld [vmem:[%s904 + $0x280] sm:$0xff]
        %v2684 = vld [vmem:[%s904 + $0x288] sm:$0xff]
        %v2685 = vld [vmem:[%s904 + $0x290] sm:$0xff]
        %v2686 = vld [vmem:[%s904 + $0x298] sm:$0xff]
        %v2687 = vld [vmem:[%s904 + $0x2a0] sm:$0xff]
        %v2688 = vld [vmem:[%s904 + $0x2a8] sm:$0xff]
        %v2689 = vld [vmem:[%s904 + $0x2b0] sm:$0xff]
        %v2690 = vld [vmem:[%s904 + $0x2b8] sm:$0xff]
        %v2691 = vld [vmem:[%s904 + $0x2c0] sm:$0xff]
        %v2692 = vld [vmem:[%s904 + $0x2c8] sm:$0xff]
        %v2693 = vld [vmem:[%s904 + $0x2d0] sm:$0xff]
        %v2694 = vld [vmem:[%s904 + $0x2d8] sm:$0xff]
        %v2695 = vld [vmem:[%s904 + $0x2e0] sm:$0xff]
        %v2696 = vld [vmem:[%s904 + $0x2e8] sm:$0xff]
        %v2697 = vld [vmem:[%s904 + $0x2f0] sm:$0xff]
        %v2698 = vld [vmem:[%s904 + $0x2f8] sm:$0xff]
        %v2699 = vld [vmem:[%s904 + $0x300] sm:$0xff]
        %v2700 = vld [vmem:[%s904 + $0x308] sm:$0xff]
        %v2701 = vld [vmem:[%s904 + $0x310] sm:$0xff]
        %v2702 = vld [vmem:[%s904 + $0x318] sm:$0xff]
        %v2703 = vld [vmem:[%s904 + $0x320] sm:$0xff]
        %v2704 = vld [vmem:[%s904 + $0x328] sm:$0xff]
        %v2705 = vld [vmem:[%s904 + $0x330] sm:$0xff]
        %v2706 = vld [vmem:[%s904 + $0x338] sm:$0xff]
        %v2707 = vld [vmem:[%s904 + $0x340] sm:$0xff]
        %v2708 = vld [vmem:[%s904 + $0x348] sm:$0xff]
        %v2709 = vld [vmem:[%s904 + $0x350] sm:$0xff]
        %v2710 = vld [vmem:[%s904 + $0x358] sm:$0xff]
        %v2711 = vld [vmem:[%s904 + $0x360] sm:$0xff]
        %v2712 = vld [vmem:[%s904 + $0x368] sm:$0xff]
        %v2713 = vld [vmem:[%s904 + $0x370] sm:$0xff]
        %v2714 = vld [vmem:[%s904 + $0x378] sm:$0xff]
        %v2715 = vld [vmem:[%s904 + $0x380] sm:$0xff]
        %v2716 = vld [vmem:[%s904 + $0x388] sm:$0xff]
        %v2717 = vld [vmem:[%s904 + $0x390] sm:$0xff]
        %v2718 = vld [vmem:[%s904 + $0x398] sm:$0xff]
        %v2719 = vld [vmem:[%s904 + $0x3a0] sm:$0xff]
        %v2720 = vld [vmem:[%s904 + $0x3a8] sm:$0xff]
        %v2721 = vld [vmem:[%s904 + $0x3b0] sm:$0xff]
        %v2722 = vld [vmem:[%s904 + $0x3b8] sm:$0xff]
        %v2723 = vld [vmem:[%s904 + $0x3c0] sm:$0xff]
        %v2724 = vld [vmem:[%s904 + $0x3c8] sm:$0xff]
        %v2725 = vld [vmem:[%s904 + $0x3d0] sm:$0xff]
        %v2726 = vld [vmem:[%s904 + $0x3d8] sm:$0xff]
        %v2727 = vld [vmem:[%s904 + $0x3e0] sm:$0xff]
        %v2728 = vld [vmem:[%s904 + $0x3e8] sm:$0xff]
        %v2729 = vld [vmem:[%s904 + $0x3f0] sm:$0xff]
        %v2730 = vld [vmem:[%s904 + $0x3f8] sm:$0xff]
        %v2731 = vld [vmem:[%s904 + $0x400] sm:$0xff]
        %v2732 = vld [vmem:[%s904 + $0x408] sm:$0xff]
        %v2733 = vld [vmem:[%s904 + $0x410] sm:$0xff]
        %v2734 = vld [vmem:[%s904 + $0x418] sm:$0xff]
        %v2735 = vld [vmem:[%s904 + $0x420] sm:$0xff]
        %v2736 = vld [vmem:[%s904 + $0x428] sm:$0xff]
        %v2737 = vld [vmem:[%s904 + $0x430] sm:$0xff]
        %v2738 = vld [vmem:[%s904 + $0x438] sm:$0xff]
        %v2739 = vld [vmem:[%s904 + $0x440] sm:$0xff]
        %v2740 = vld [vmem:[%s904 + $0x448] sm:$0xff]
        %v2741 = vld [vmem:[%s904 + $0x450] sm:$0xff]
        %v2742 = vld [vmem:[%s904 + $0x458] sm:$0xff]
        %v2743 = vld [vmem:[%s904 + $0x460] sm:$0xff]
        %v2744 = vld [vmem:[%s904 + $0x468] sm:$0xff]
        %v2745 = vld [vmem:[%s904 + $0x470] sm:$0xff]
        %v2746 = vld [vmem:[%s904 + $0x478] sm:$0xff]
        %v2747 = vld [vmem:[%s904 + $0x480] sm:$0xff]
        %v2748 = vld [vmem:[%s904 + $0x488] sm:$0xff]
        %v2749 = vld [vmem:[%s904 + $0x490] sm:$0xff]
        %v2750 = vld [vmem:[%s904 + $0x498] sm:$0xff]
        %v2751 = vld [vmem:[%s904 + $0x4a0] sm:$0xff]
        %v2752 = vld [vmem:[%s904 + $0x4a8] sm:$0xff]
        %v2753 = vld [vmem:[%s904 + $0x4b0] sm:$0xff]
        %v2754 = vld [vmem:[%s904 + $0x4b8] sm:$0xff]
        %v2755 = vld [vmem:[%s904 + $0x4c0] sm:$0xff]
        %v2756 = vld [vmem:[%s904 + $0x4c8] sm:$0xff]
        %v2757 = vld [vmem:[%s904 + $0x4d0] sm:$0xff]
        %v2758 = vld [vmem:[%s904 + $0x4d8] sm:$0xff]
        %v2759 = vld [vmem:[%s904 + $0x4e0] sm:$0xff]
        %v2760 = vld [vmem:[%s904 + $0x4e8] sm:$0xff]
        %v2761 = vld [vmem:[%s904 + $0x4f0] sm:$0xff]
        %v2762 = vld [vmem:[%s904 + $0x4f8] sm:$0xff]
        %v2763 = vld [vmem:[%s904 + $0x500] sm:$0xff]
        %v2764 = vld [vmem:[%s904 + $0x508] sm:$0xff]
        %v2765 = vld [vmem:[%s904 + $0x510] sm:$0xff]
        %v2766 = vld [vmem:[%s904 + $0x518] sm:$0xff]
        %v2767 = vld [vmem:[%s904 + $0x520] sm:$0xff]
        %v2768 = vld [vmem:[%s904 + $0x528] sm:$0xff]
        %v2769 = vld [vmem:[%s904 + $0x530] sm:$0xff]
        %v2770 = vld [vmem:[%s904 + $0x538] sm:$0xff]
        %v2771 = vld [vmem:[%s904 + $0x540] sm:$0xff]
        %v2772 = vld [vmem:[%s904 + $0x548] sm:$0xff]
        %v2773 = vld [vmem:[%s904 + $0x550] sm:$0xff]
        %v2774 = vld [vmem:[%s904 + $0x558] sm:$0xff]
        %v2775 = vld [vmem:[%s904 + $0x560] sm:$0xff]
        %v2776 = vld [vmem:[%s904 + $0x568] sm:$0xff]
        %v2777 = vld [vmem:[%s904 + $0x570] sm:$0xff]
        %v2778 = vld [vmem:[%s904 + $0x578] sm:$0xff]
        %v2779 = vld [vmem:[%s904 + $0x580] sm:$0xff]
        %v2780 = vld [vmem:[%s904 + $0x588] sm:$0xff]
        %v2781 = vld [vmem:[%s904 + $0x590] sm:$0xff]
        %v2782 = vld [vmem:[%s904 + $0x598] sm:$0xff]
        %v2783 = vld [vmem:[%s904 + $0x5a0] sm:$0xff]
        %v2784 = vld [vmem:[%s904 + $0x5a8] sm:$0xff]
        %v2785 = vld [vmem:[%s904 + $0x5b0] sm:$0xff]
        %v2786 = vld [vmem:[%s904 + $0x5b8] sm:$0xff]
        %v2787 = vld [vmem:[%s904 + $0x5c0] sm:$0xff]
        %v2788 = vld [vmem:[%s904 + $0x5c8] sm:$0xff]
        %v2789 = vld [vmem:[%s904 + $0x5d0] sm:$0xff]
        %v2790 = vld [vmem:[%s904 + $0x5d8] sm:$0xff]
        %v2791 = vld [vmem:[%s904 + $0x5e0] sm:$0xff]
        %v2792 = vld [vmem:[%s904 + $0x5e8] sm:$0xff]
        %v2793 = vld [vmem:[%s904 + $0x5f0] sm:$0xff]
        %v2794 = vld [vmem:[%s904 + $0x5f8] sm:$0xff]
        %v2795 = vld [vmem:[%s904 + $0x600] sm:$0xff]
        %v2796 = vld [vmem:[%s904 + $0x608] sm:$0xff]
        %v2797 = vld [vmem:[%s904 + $0x610] sm:$0xff]
        %v2798 = vld [vmem:[%s904 + $0x618] sm:$0xff]
        %v2799 = vld [vmem:[%s904 + $0x620] sm:$0xff]
        %v2800 = vld [vmem:[%s904 + $0x628] sm:$0xff]
        %v2801 = vld [vmem:[%s904 + $0x630] sm:$0xff]
        %v2802 = vld [vmem:[%s904 + $0x638] sm:$0xff]
        %v2803 = vld [vmem:[%s904 + $0x640] sm:$0xff]
        %v2804 = vld [vmem:[%s904 + $0x648] sm:$0xff]
        %v2805 = vld [vmem:[%s904 + $0x650] sm:$0xff]
        %v2806 = vld [vmem:[%s904 + $0x658] sm:$0xff]
        %v2807 = vld [vmem:[%s904 + $0x660] sm:$0xff]
        %v2808 = vld [vmem:[%s904 + $0x668] sm:$0xff]
        %v2809 = vld [vmem:[%s904 + $0x670] sm:$0xff]
        %v2810 = vld [vmem:[%s904 + $0x678] sm:$0xff]
        %v2811 = vld [vmem:[%s904 + $0x680] sm:$0xff]
        %v2812 = vld [vmem:[%s904 + $0x688] sm:$0xff]
        %v2813 = vld [vmem:[%s904 + $0x690] sm:$0xff]
        %v2814 = vld [vmem:[%s904 + $0x698] sm:$0xff]
        %v2815 = vld [vmem:[%s904 + $0x6a0] sm:$0xff]
        %v2816 = vld [vmem:[%s904 + $0x6a8] sm:$0xff]
        %v2817 = vld [vmem:[%s904 + $0x6b0] sm:$0xff]
        %v2818 = vld [vmem:[%s904 + $0x6b8] sm:$0xff]
        %v2819 = vld [vmem:[%s904 + $0x6c0] sm:$0xff]
        %v2820 = vld [vmem:[%s904 + $0x6c8] sm:$0xff]
        %v2821 = vld [vmem:[%s904 + $0x6d0] sm:$0xff]
        %v2822 = vld [vmem:[%s904 + $0x6d8] sm:$0xff]
        %v2823 = vld [vmem:[%s904 + $0x6e0] sm:$0xff]
        %v2824 = vld [vmem:[%s904 + $0x6e8] sm:$0xff]
        %v2825 = vld [vmem:[%s904 + $0x6f0] sm:$0xff]
        %v2826 = vld [vmem:[%s904 + $0x6f8] sm:$0xff]
        %v2827 = vld [vmem:[%s904 + $0x700] sm:$0xff]
        %v2828 = vld [vmem:[%s904 + $0x708] sm:$0xff]
        %v2829 = vld [vmem:[%s904 + $0x710] sm:$0xff]
        %v2830 = vld [vmem:[%s904 + $0x718] sm:$0xff]
        %v2831 = vld [vmem:[%s904 + $0x720] sm:$0xff]
        %v2832 = vld [vmem:[%s904 + $0x728] sm:$0xff]
        %v2833 = vld [vmem:[%s904 + $0x730] sm:$0xff]
        %v2834 = vld [vmem:[%s904 + $0x738] sm:$0xff]
        %v2835 = vld [vmem:[%s904 + $0x740] sm:$0xff]
        %v2836 = vld [vmem:[%s904 + $0x748] sm:$0xff]
        %v2837 = vld [vmem:[%s904 + $0x750] sm:$0xff]
        %v2838 = vld [vmem:[%s904 + $0x758] sm:$0xff]
        %v2839 = vld [vmem:[%s904 + $0x760] sm:$0xff]
        %v2840 = vld [vmem:[%s904 + $0x768] sm:$0xff]
        %v2841 = vld [vmem:[%s904 + $0x770] sm:$0xff]
        %v2842 = vld [vmem:[%s904 + $0x778] sm:$0xff]
        %v2843 = vld [vmem:[%s904 + $0x780] sm:$0xff]
        %v2844 = vld [vmem:[%s904 + $0x788] sm:$0xff]
        %v2845 = vld [vmem:[%s904 + $0x790] sm:$0xff]
        %v2846 = vld [vmem:[%s904 + $0x798] sm:$0xff]
        %v2847 = vld [vmem:[%s904 + $0x7a0] sm:$0xff]
        %v2848 = vld [vmem:[%s904 + $0x7a8] sm:$0xff]
        %v2849 = vld [vmem:[%s904 + $0x7b0] sm:$0xff]
        %v2850 = vld [vmem:[%s904 + $0x7b8] sm:$0xff]
        %v2851 = vld [vmem:[%s904 + $0x7c0] sm:$0xff]
        %v2852 = vld [vmem:[%s904 + $0x7c8] sm:$0xff]
        %v2853 = vld [vmem:[%s904 + $0x7d0] sm:$0xff]
        %v2854 = vld [vmem:[%s904 + $0x7d8] sm:$0xff]
        %v2855 = vld [vmem:[%s904 + $0x7e0] sm:$0xff]
        %v2856 = vld [vmem:[%s904 + $0x7e8] sm:$0xff]
        %v2857 = vld [vmem:[%s904 + $0x7f0] sm:$0xff]
        %v2858 = vld [vmem:[%s904 + $0x7f8] sm:$0xff]
        %v2859 = vld [vmem:[%s904 + $0x800] sm:$0xff]
        %v2860 = vld [vmem:[%s904 + $0x808] sm:$0xff]
        %v2861 = vld [vmem:[%s904 + $0x810] sm:$0xff]
        %v2862 = vld [vmem:[%s904 + $0x818] sm:$0xff]
        %v2863 = vld [vmem:[%s904 + $0x820] sm:$0xff]
        %v2864 = vld [vmem:[%s904 + $0x828] sm:$0xff]
        %v2865 = vld [vmem:[%s904 + $0x830] sm:$0xff]
        %v2866 = vld [vmem:[%s904 + $0x838] sm:$0xff]
        %v2867 = vld [vmem:[%s904 + $0x840] sm:$0xff]
        %v2868 = vld [vmem:[%s904 + $0x848] sm:$0xff]
        %v2869 = vld [vmem:[%s904 + $0x850] sm:$0xff]
        %v2870 = vld [vmem:[%s904 + $0x858] sm:$0xff]
        %v2871 = vld [vmem:[%s904 + $0x860] sm:$0xff]
        %v2872 = vld [vmem:[%s904 + $0x868] sm:$0xff]
        %v2873 = vld [vmem:[%s904 + $0x870] sm:$0xff]
        %v2874 = vld [vmem:[%s904 + $0x878] sm:$0xff]
        %v2875 = vld [vmem:[%s904 + $0x880] sm:$0xff]
        %v2876 = vld [vmem:[%s904 + $0x888] sm:$0xff]
        %v2877 = vld [vmem:[%s904 + $0x890] sm:$0xff]
        %v2878 = vld [vmem:[%s904 + $0x898] sm:$0xff]
        %v2879 = vld [vmem:[%s904 + $0x8a0] sm:$0xff]
        %v2880 = vld [vmem:[%s904 + $0x8a8] sm:$0xff]
        %v2881 = vld [vmem:[%s904 + $0x8b0] sm:$0xff]
        %v2882 = vld [vmem:[%s904 + $0x8b8] sm:$0xff]
        %v2883 = vld [vmem:[%s904 + $0x8c0] sm:$0xff]
        %v2884 = vld [vmem:[%s904 + $0x8c8] sm:$0xff]
        %v2885 = vld [vmem:[%s904 + $0x8d0] sm:$0xff]
        %v2886 = vld [vmem:[%s904 + $0x8d8] sm:$0xff]
        %v2887 = vld [vmem:[%s904 + $0x8e0] sm:$0xff]
        %v2888 = vld [vmem:[%s904 + $0x8e8] sm:$0xff]
        %v2889 = vld [vmem:[%s904 + $0x8f0] sm:$0xff]
        %v2890 = vld [vmem:[%s904 + $0x8f8] sm:$0xff]
        %v2891 = vld [vmem:[%s904 + $0x900] sm:$0xff]
        %v2892 = vld [vmem:[%s904 + $0x908] sm:$0xff]
        %v2893 = vld [vmem:[%s904 + $0x910] sm:$0xff]
        %v2894 = vld [vmem:[%s904 + $0x918] sm:$0xff]
        %v2895 = vld [vmem:[%s904 + $0x920] sm:$0xff]
        %v2896 = vld [vmem:[%s904 + $0x928] sm:$0xff]
        %v2897 = vld [vmem:[%s904 + $0x930] sm:$0xff]
        %v2898 = vld [vmem:[%s904 + $0x938] sm:$0xff]
        %v2899 = vld [vmem:[%s904 + $0x940] sm:$0xff]
        %v2900 = vld [vmem:[%s904 + $0x948] sm:$0xff]
        %v2901 = vld [vmem:[%s904 + $0x950] sm:$0xff]
        %v2902 = vld [vmem:[%s904 + $0x958] sm:$0xff]
        %v2903 = vld [vmem:[%s904 + $0x960] sm:$0xff]
        %v2904 = vld [vmem:[%s904 + $0x968] sm:$0xff]
        %v2905 = vld [vmem:[%s904 + $0x970] sm:$0xff]
        %v2906 = vld [vmem:[%s904 + $0x978] sm:$0xff]
        %v2907 = vld [vmem:[%s904 + $0x980] sm:$0xff]
        %v2908 = vld [vmem:[%s904 + $0x988] sm:$0xff]
        %v2909 = vld [vmem:[%s904 + $0x990] sm:$0xff]
        %v2910 = vld [vmem:[%s904 + $0x998] sm:$0xff]
        %v2911 = vld [vmem:[%s904 + $0x9a0] sm:$0xff]
        %v2912 = vld [vmem:[%s904 + $0x9a8] sm:$0xff]
        %v2913 = vld [vmem:[%s904 + $0x9b0] sm:$0xff]
        %v2914 = vld [vmem:[%s904 + $0x9b8] sm:$0xff]
        %v2915 = vld [vmem:[%s904 + $0x9c0] sm:$0xff]
        %v2916 = vld [vmem:[%s904 + $0x9c8] sm:$0xff]
        %v2917 = vld [vmem:[%s904 + $0x9d0] sm:$0xff]
        %v2918 = vld [vmem:[%s904 + $0x9d8] sm:$0xff]
        %v2919 = vld [vmem:[%s904 + $0x9e0] sm:$0xff]
        %v2920 = vld [vmem:[%s904 + $0x9e8] sm:$0xff]
        %v2921 = vld [vmem:[%s904 + $0x9f0] sm:$0xff]
        %v2922 = vld [vmem:[%s904 + $0x9f8] sm:$0xff]
        %v2923 = vsel %vm2563, %v2603, 0.0
        %v2924 = vsel %vm2564, %v2604, 0.0
        %v2925 = vsel %vm2565, %v2605, 0.0
        %v2926 = vsel %vm2566, %v2606, 0.0
        %v2927 = vsel %vm2567, %v2607, 0.0
        %v2928 = vsel %vm2568, %v2608, 0.0
        %v2929 = vsel %vm2569, %v2609, 0.0
        %v2930 = vsel %vm2570, %v2610, 0.0
        %v2931 = vsel %vm2571, %v2611, 0.0
        %v2932 = vsel %vm2572, %v2612, 0.0
        %v2933 = vsel %vm2573, %v2613, 0.0
        %v2934 = vsel %vm2574, %v2614, 0.0
        %v2935 = vsel %vm2575, %v2615, 0.0
        %v2936 = vsel %vm2576, %v2616, 0.0
        %v2937 = vsel %vm2577, %v2617, 0.0
        %v2938 = vsel %vm2578, %v2618, 0.0
        %v2939 = vsel %vm2579, %v2619, 0.0
        %v2940 = vsel %vm2580, %v2620, 0.0
        %v2941 = vsel %vm2581, %v2621, 0.0
        %v2942 = vsel %vm2582, %v2622, 0.0
        %v2943 = vsel %vm2563, %v2623, 0.0
        %v2944 = vsel %vm2564, %v2624, 0.0
        %v2945 = vsel %vm2565, %v2625, 0.0
        %v2946 = vsel %vm2566, %v2626, 0.0
        %v2947 = vsel %vm2567, %v2627, 0.0
        %v2948 = vsel %vm2568, %v2628, 0.0
        %v2949 = vsel %vm2569, %v2629, 0.0
        %v2950 = vsel %vm2570, %v2630, 0.0
        %v2951 = vsel %vm2571, %v2631, 0.0
        %v2952 = vsel %vm2572, %v2632, 0.0
        %v2953 = vsel %vm2573, %v2633, 0.0
        %v2954 = vsel %vm2574, %v2634, 0.0
        %v2955 = vsel %vm2575, %v2635, 0.0
        %v2956 = vsel %vm2576, %v2636, 0.0
        %v2957 = vsel %vm2577, %v2637, 0.0
        %v2958 = vsel %vm2578, %v2638, 0.0
        %v2959 = vsel %vm2579, %v2639, 0.0
        %v2960 = vsel %vm2580, %v2640, 0.0
        %v2961 = vsel %vm2581, %v2641, 0.0
        %v2962 = vsel %vm2582, %v2642, 0.0
        %v2963 = vsel %vm2563, %v2643, 0.0
        %v2964 = vsel %vm2564, %v2644, 0.0
        %v2965 = vsel %vm2565, %v2645, 0.0
        %v2966 = vsel %vm2566, %v2646, 0.0
        %v2967 = vsel %vm2567, %v2647, 0.0
        %v2968 = vsel %vm2568, %v2648, 0.0
        %v2969 = vsel %vm2569, %v2649, 0.0
        %v2970 = vsel %vm2570, %v2650, 0.0
        %v2971 = vsel %vm2571, %v2651, 0.0
        %v2972 = vsel %vm2572, %v2652, 0.0
        %v2973 = vsel %vm2573, %v2653, 0.0
        %v2974 = vsel %vm2574, %v2654, 0.0
        %v2975 = vsel %vm2575, %v2655, 0.0
        %v2976 = vsel %vm2576, %v2656, 0.0
        %v2977 = vsel %vm2577, %v2657, 0.0
        %v2978 = vsel %vm2578, %v2658, 0.0
        %v2979 = vsel %vm2579, %v2659, 0.0
        %v2980 = vsel %vm2580, %v2660, 0.0
        %v2981 = vsel %vm2581, %v2661, 0.0
        %v2982 = vsel %vm2582, %v2662, 0.0
        %v2983 = vsel %vm2563, %v2663, 0.0
        %v2984 = vsel %vm2564, %v2664, 0.0
        %v2985 = vsel %vm2565, %v2665, 0.0
        %v2986 = vsel %vm2566, %v2666, 0.0
        %v2987 = vsel %vm2567, %v2667, 0.0
        %v2988 = vsel %vm2568, %v2668, 0.0
        %v2989 = vsel %vm2569, %v2669, 0.0
        %v2990 = vsel %vm2570, %v2670, 0.0
        %v2991 = vsel %vm2571, %v2671, 0.0
        %v2992 = vsel %vm2572, %v2672, 0.0
        %v2993 = vsel %vm2573, %v2673, 0.0
        %v2994 = vsel %vm2574, %v2674, 0.0
        %v2995 = vsel %vm2575, %v2675, 0.0
        %v2996 = vsel %vm2576, %v2676, 0.0
        %v2997 = vsel %vm2577, %v2677, 0.0
        %v2998 = vsel %vm2578, %v2678, 0.0
        %v2999 = vsel %vm2579, %v2679, 0.0
        %v3000 = vsel %vm2580, %v2680, 0.0
        %v3001 = vsel %vm2581, %v2681, 0.0
        %v3002 = vsel %vm2582, %v2682, 0.0
        %v3003 = vsel %vm2563, %v2683, 0.0
        %v3004 = vsel %vm2564, %v2684, 0.0
        %v3005 = vsel %vm2565, %v2685, 0.0
        %v3006 = vsel %vm2566, %v2686, 0.0
        %v3007 = vsel %vm2567, %v2687, 0.0
        %v3008 = vsel %vm2568, %v2688, 0.0
        %v3009 = vsel %vm2569, %v2689, 0.0
        %v3010 = vsel %vm2570, %v2690, 0.0
        %v3011 = vsel %vm2571, %v2691, 0.0
        %v3012 = vsel %vm2572, %v2692, 0.0
        %v3013 = vsel %vm2573, %v2693, 0.0
        %v3014 = vsel %vm2574, %v2694, 0.0
        %v3015 = vsel %vm2575, %v2695, 0.0
        %v3016 = vsel %vm2576, %v2696, 0.0
        %v3017 = vsel %vm2577, %v2697, 0.0
        %v3018 = vsel %vm2578, %v2698, 0.0
        %v3019 = vsel %vm2579, %v2699, 0.0
        %v3020 = vsel %vm2580, %v2700, 0.0
        %v3021 = vsel %vm2581, %v2701, 0.0
        %v3022 = vsel %vm2582, %v2702, 0.0
        %v3023 = vsel %vm2563, %v2703, 0.0
        %v3024 = vsel %vm2564, %v2704, 0.0
        %v3025 = vsel %vm2565, %v2705, 0.0
        %v3026 = vsel %vm2566, %v2706, 0.0
        %v3027 = vsel %vm2567, %v2707, 0.0
        %v3028 = vsel %vm2568, %v2708, 0.0
        %v3029 = vsel %vm2569, %v2709, 0.0
        %v3030 = vsel %vm2570, %v2710, 0.0
        %v3031 = vsel %vm2571, %v2711, 0.0
        %v3032 = vsel %vm2572, %v2712, 0.0
        %v3033 = vsel %vm2573, %v2713, 0.0
        %v3034 = vsel %vm2574, %v2714, 0.0
        %v3035 = vsel %vm2575, %v2715, 0.0
        %v3036 = vsel %vm2576, %v2716, 0.0
        %v3037 = vsel %vm2577, %v2717, 0.0
        %v3038 = vsel %vm2578, %v2718, 0.0
        %v3039 = vsel %vm2579, %v2719, 0.0
        %v3040 = vsel %vm2580, %v2720, 0.0
        %v3041 = vsel %vm2581, %v2721, 0.0
        %v3042 = vsel %vm2582, %v2722, 0.0
        %v3043 = vsel %vm2563, %v2723, 0.0
        %v3044 = vsel %vm2564, %v2724, 0.0
        %v3045 = vsel %vm2565, %v2725, 0.0
        %v3046 = vsel %vm2566, %v2726, 0.0
        %v3047 = vsel %vm2567, %v2727, 0.0
        %v3048 = vsel %vm2568, %v2728, 0.0
        %v3049 = vsel %vm2569, %v2729, 0.0
        %v3050 = vsel %vm2570, %v2730, 0.0
        %v3051 = vsel %vm2571, %v2731, 0.0
        %v3052 = vsel %vm2572, %v2732, 0.0
        %v3053 = vsel %vm2573, %v2733, 0.0
        %v3054 = vsel %vm2574, %v2734, 0.0
        %v3055 = vsel %vm2575, %v2735, 0.0
        %v3056 = vsel %vm2576, %v2736, 0.0
        %v3057 = vsel %vm2577, %v2737, 0.0
        %v3058 = vsel %vm2578, %v2738, 0.0
        %v3059 = vsel %vm2579, %v2739, 0.0
        %v3060 = vsel %vm2580, %v2740, 0.0
        %v3061 = vsel %vm2581, %v2741, 0.0
        %v3062 = vsel %vm2582, %v2742, 0.0
        %v3063 = vsel %vm2563, %v2743, 0.0
        %v3064 = vsel %vm2564, %v2744, 0.0
        %v3065 = vsel %vm2565, %v2745, 0.0
        %v3066 = vsel %vm2566, %v2746, 0.0
        %v3067 = vsel %vm2567, %v2747, 0.0
        %v3068 = vsel %vm2568, %v2748, 0.0
        %v3069 = vsel %vm2569, %v2749, 0.0
        %v3070 = vsel %vm2570, %v2750, 0.0
        %v3071 = vsel %vm2571, %v2751, 0.0
        %v3072 = vsel %vm2572, %v2752, 0.0
        %v3073 = vsel %vm2573, %v2753, 0.0
        %v3074 = vsel %vm2574, %v2754, 0.0
        %v3075 = vsel %vm2575, %v2755, 0.0
        %v3076 = vsel %vm2576, %v2756, 0.0
        %v3077 = vsel %vm2577, %v2757, 0.0
        %v3078 = vsel %vm2578, %v2758, 0.0
        %v3079 = vsel %vm2579, %v2759, 0.0
        %v3080 = vsel %vm2580, %v2760, 0.0
        %v3081 = vsel %vm2581, %v2761, 0.0
        %v3082 = vsel %vm2582, %v2762, 0.0
        %v3083 = vsel %vm2563, %v2763, 0.0
        %v3084 = vsel %vm2564, %v2764, 0.0
        %v3085 = vsel %vm2565, %v2765, 0.0
        %v3086 = vsel %vm2566, %v2766, 0.0
        %v3087 = vsel %vm2567, %v2767, 0.0
        %v3088 = vsel %vm2568, %v2768, 0.0
        %v3089 = vsel %vm2569, %v2769, 0.0
        %v3090 = vsel %vm2570, %v2770, 0.0
        %v3091 = vsel %vm2571, %v2771, 0.0
        %v3092 = vsel %vm2572, %v2772, 0.0
        %v3093 = vsel %vm2573, %v2773, 0.0
        %v3094 = vsel %vm2574, %v2774, 0.0
        %v3095 = vsel %vm2575, %v2775, 0.0
        %v3096 = vsel %vm2576, %v2776, 0.0
        %v3097 = vsel %vm2577, %v2777, 0.0
        %v3098 = vsel %vm2578, %v2778, 0.0
        %v3099 = vsel %vm2579, %v2779, 0.0
        %v3100 = vsel %vm2580, %v2780, 0.0
        %v3101 = vsel %vm2581, %v2781, 0.0
        %v3102 = vsel %vm2582, %v2782, 0.0
        %v3103 = vsel %vm2563, %v2783, 0.0
        %v3104 = vsel %vm2564, %v2784, 0.0
        %v3105 = vsel %vm2565, %v2785, 0.0
        %v3106 = vsel %vm2566, %v2786, 0.0
        %v3107 = vsel %vm2567, %v2787, 0.0
        %v3108 = vsel %vm2568, %v2788, 0.0
        %v3109 = vsel %vm2569, %v2789, 0.0
        %v3110 = vsel %vm2570, %v2790, 0.0
        %v3111 = vsel %vm2571, %v2791, 0.0
        %v3112 = vsel %vm2572, %v2792, 0.0
        %v3113 = vsel %vm2573, %v2793, 0.0
        %v3114 = vsel %vm2574, %v2794, 0.0
        %v3115 = vsel %vm2575, %v2795, 0.0
        %v3116 = vsel %vm2576, %v2796, 0.0
        %v3117 = vsel %vm2577, %v2797, 0.0
        %v3118 = vsel %vm2578, %v2798, 0.0
        %v3119 = vsel %vm2579, %v2799, 0.0
        %v3120 = vsel %vm2580, %v2800, 0.0
        %v3121 = vsel %vm2581, %v2801, 0.0
        %v3122 = vsel %vm2582, %v2802, 0.0
        %v3123 = vsel %vm2563, %v2803, 0.0
        %v3124 = vsel %vm2564, %v2804, 0.0
        %v3125 = vsel %vm2565, %v2805, 0.0
        %v3126 = vsel %vm2566, %v2806, 0.0
        %v3127 = vsel %vm2567, %v2807, 0.0
        %v3128 = vsel %vm2568, %v2808, 0.0
        %v3129 = vsel %vm2569, %v2809, 0.0
        %v3130 = vsel %vm2570, %v2810, 0.0
        %v3131 = vsel %vm2571, %v2811, 0.0
        %v3132 = vsel %vm2572, %v2812, 0.0
        %v3133 = vsel %vm2573, %v2813, 0.0
        %v3134 = vsel %vm2574, %v2814, 0.0
        %v3135 = vsel %vm2575, %v2815, 0.0
        %v3136 = vsel %vm2576, %v2816, 0.0
        %v3137 = vsel %vm2577, %v2817, 0.0
        %v3138 = vsel %vm2578, %v2818, 0.0
        %v3139 = vsel %vm2579, %v2819, 0.0
        %v3140 = vsel %vm2580, %v2820, 0.0
        %v3141 = vsel %vm2581, %v2821, 0.0
        %v3142 = vsel %vm2582, %v2822, 0.0
        %v3143 = vsel %vm2563, %v2823, 0.0
        %v3144 = vsel %vm2564, %v2824, 0.0
        %v3145 = vsel %vm2565, %v2825, 0.0
        %v3146 = vsel %vm2566, %v2826, 0.0
        %v3147 = vsel %vm2567, %v2827, 0.0
        %v3148 = vsel %vm2568, %v2828, 0.0
        %v3149 = vsel %vm2569, %v2829, 0.0
        %v3150 = vsel %vm2570, %v2830, 0.0
        %v3151 = vsel %vm2571, %v2831, 0.0
        %v3152 = vsel %vm2572, %v2832, 0.0
        %v3153 = vsel %vm2573, %v2833, 0.0
        %v3154 = vsel %vm2574, %v2834, 0.0
        %v3155 = vsel %vm2575, %v2835, 0.0
        %v3156 = vsel %vm2576, %v2836, 0.0
        %v3157 = vsel %vm2577, %v2837, 0.0
        %v3158 = vsel %vm2578, %v2838, 0.0
        %v3159 = vsel %vm2579, %v2839, 0.0
        %v3160 = vsel %vm2580, %v2840, 0.0
        %v3161 = vsel %vm2581, %v2841, 0.0
        %v3162 = vsel %vm2582, %v2842, 0.0
        %v3163 = vsel %vm2563, %v2843, 0.0
        %v3164 = vsel %vm2564, %v2844, 0.0
        %v3165 = vsel %vm2565, %v2845, 0.0
        %v3166 = vsel %vm2566, %v2846, 0.0
        %v3167 = vsel %vm2567, %v2847, 0.0
        %v3168 = vsel %vm2568, %v2848, 0.0
        %v3169 = vsel %vm2569, %v2849, 0.0
        %v3170 = vsel %vm2570, %v2850, 0.0
        %v3171 = vsel %vm2571, %v2851, 0.0
        %v3172 = vsel %vm2572, %v2852, 0.0
        %v3173 = vsel %vm2573, %v2853, 0.0
        %v3174 = vsel %vm2574, %v2854, 0.0
        %v3175 = vsel %vm2575, %v2855, 0.0
        %v3176 = vsel %vm2576, %v2856, 0.0
        %v3177 = vsel %vm2577, %v2857, 0.0
        %v3178 = vsel %vm2578, %v2858, 0.0
        %v3179 = vsel %vm2579, %v2859, 0.0
        %v3180 = vsel %vm2580, %v2860, 0.0
        %v3181 = vsel %vm2581, %v2861, 0.0
        %v3182 = vsel %vm2582, %v2862, 0.0
        %v3183 = vsel %vm2563, %v2863, 0.0
        %v3184 = vsel %vm2564, %v2864, 0.0
        %v3185 = vsel %vm2565, %v2865, 0.0
        %v3186 = vsel %vm2566, %v2866, 0.0
        %v3187 = vsel %vm2567, %v2867, 0.0
        %v3188 = vsel %vm2568, %v2868, 0.0
        %v3189 = vsel %vm2569, %v2869, 0.0
        %v3190 = vsel %vm2570, %v2870, 0.0
        %v3191 = vsel %vm2571, %v2871, 0.0
        %v3192 = vsel %vm2572, %v2872, 0.0
        %v3193 = vsel %vm2573, %v2873, 0.0
        %v3194 = vsel %vm2574, %v2874, 0.0
        %v3195 = vsel %vm2575, %v2875, 0.0
        %v3196 = vsel %vm2576, %v2876, 0.0
        %v3197 = vsel %vm2577, %v2877, 0.0
        %v3198 = vsel %vm2578, %v2878, 0.0
        %v3199 = vsel %vm2579, %v2879, 0.0
        %v3200 = vsel %vm2580, %v2880, 0.0
        %v3201 = vsel %vm2581, %v2881, 0.0
        %v3202 = vsel %vm2582, %v2882, 0.0
        %v3203 = vsel %vm2563, %v2883, 0.0
        %v3204 = vsel %vm2564, %v2884, 0.0
        %v3205 = vsel %vm2565, %v2885, 0.0
        %v3206 = vsel %vm2566, %v2886, 0.0
        %v3207 = vsel %vm2567, %v2887, 0.0
        %v3208 = vsel %vm2568, %v2888, 0.0
        %v3209 = vsel %vm2569, %v2889, 0.0
        %v3210 = vsel %vm2570, %v2890, 0.0
        %v3211 = vsel %vm2571, %v2891, 0.0
        %v3212 = vsel %vm2572, %v2892, 0.0
        %v3213 = vsel %vm2573, %v2893, 0.0
        %v3214 = vsel %vm2574, %v2894, 0.0
        %v3215 = vsel %vm2575, %v2895, 0.0
        %v3216 = vsel %vm2576, %v2896, 0.0
        %v3217 = vsel %vm2577, %v2897, 0.0
        %v3218 = vsel %vm2578, %v2898, 0.0
        %v3219 = vsel %vm2579, %v2899, 0.0
        %v3220 = vsel %vm2580, %v2900, 0.0
        %v3221 = vsel %vm2581, %v2901, 0.0
        %v3222 = vsel %vm2582, %v2902, 0.0
        %v3223 = vsel %vm2563, %v2903, 0.0
        %v3224 = vsel %vm2564, %v2904, 0.0
        %v3225 = vsel %vm2565, %v2905, 0.0
        %v3226 = vsel %vm2566, %v2906, 0.0
        %v3227 = vsel %vm2567, %v2907, 0.0
        %v3228 = vsel %vm2568, %v2908, 0.0
        %v3229 = vsel %vm2569, %v2909, 0.0
        %v3230 = vsel %vm2570, %v2910, 0.0
        %v3231 = vsel %vm2571, %v2911, 0.0
        %v3232 = vsel %vm2572, %v2912, 0.0
        %v3233 = vsel %vm2573, %v2913, 0.0
        %v3234 = vsel %vm2574, %v2914, 0.0
        %v3235 = vsel %vm2575, %v2915, 0.0
        %v3236 = vsel %vm2576, %v2916, 0.0
        %v3237 = vsel %vm2577, %v2917, 0.0
        %v3238 = vsel %vm2578, %v2918, 0.0
        %v3239 = vsel %vm2579, %v2919, 0.0
        %v3240 = vsel %vm2580, %v2920, 0.0
        %v3241 = vsel %vm2581, %v2921, 0.0
        %v3242 = vsel %vm2582, %v2922, 0.0
        %v3243 = vld [vmem:[#allocation2] sm:$0xff]
        %v3244 = vpack.c.bf16 %v2583, %v2583
        %v3245 = vpack.c.bf16 %v2584, %v2584
        %v3246 = vpack.c.bf16 %v2585, %v2585
        %v3247 = vpack.c.bf16 %v2586, %v2586
        %v3248 = vpack.c.bf16 %v2587, %v2587
        %v3249 = vpack.c.bf16 %v2588, %v2588
        %v3250 = vpack.c.bf16 %v2589, %v2589
        %v3251 = vpack.c.bf16 %v2590, %v2590
        %v3252 = vpack.c.bf16 %v2591, %v2591
        %v3253 = vpack.c.bf16 %v2592, %v2592
        %v3254 = vpack.c.bf16 %v2593, %v2593
        %v3255 = vpack.c.bf16 %v2594, %v2594
        %v3256 = vpack.c.bf16 %v2595, %v2595
        %v3257 = vpack.c.bf16 %v2596, %v2596
        %v3258 = vpack.c.bf16 %v2597, %v2597
        %v3259 = vpack.c.bf16 %v2598, %v2598
        %v3260 = vpack.c.bf16 %v2599, %v2599
        %v3261 = vpack.c.bf16 %v2600, %v2600
        %v3262 = vpack.c.bf16 %v2601, %v2601
        %v3263 = vpack.c.bf16 %v2602, %v2602
        %v3264 = vpack.c.bf16 %v2943, %v2923
        %v3265 = vpack.c.bf16 %v2944, %v2924
        %v3266 = vpack.c.bf16 %v2945, %v2925
        %v3267 = vpack.c.bf16 %v2946, %v2926
        %v3268 = vpack.c.bf16 %v2947, %v2927
        %v3269 = vpack.c.bf16 %v2948, %v2928
        %v3270 = vpack.c.bf16 %v2949, %v2929
        %v3271 = vpack.c.bf16 %v2950, %v2930
        %v3272 = vpack.c.bf16 %v2951, %v2931
        %v3273 = vpack.c.bf16 %v2952, %v2932
        %v3274 = vpack.c.bf16 %v2953, %v2933
        %v3275 = vpack.c.bf16 %v2954, %v2934
        %v3276 = vpack.c.bf16 %v2955, %v2935
        %v3277 = vpack.c.bf16 %v2956, %v2936
        %v3278 = vpack.c.bf16 %v2957, %v2937
        %v3279 = vpack.c.bf16 %v2958, %v2938
        %v3280 = vpack.c.bf16 %v2959, %v2939
        %v3281 = vpack.c.bf16 %v2960, %v2940
        %v3282 = vpack.c.bf16 %v2961, %v2941
        %v3283 = vpack.c.bf16 %v2962, %v2942
        %v3284 = vpack.c.bf16 %v2983, %v2963
        %v3285 = vpack.c.bf16 %v2984, %v2964
        %v3286 = vpack.c.bf16 %v2985, %v2965
        %v3287 = vpack.c.bf16 %v2986, %v2966
        %v3288 = vpack.c.bf16 %v2987, %v2967
        %v3289 = vpack.c.bf16 %v2988, %v2968
        %v3290 = vpack.c.bf16 %v2989, %v2969
        %v3291 = vpack.c.bf16 %v2990, %v2970
        %v3292 = vpack.c.bf16 %v2991, %v2971
        %v3293 = vpack.c.bf16 %v2992, %v2972
        %v3294 = vpack.c.bf16 %v2993, %v2973
        %v3295 = vpack.c.bf16 %v2994, %v2974
        %v3296 = vpack.c.bf16 %v2995, %v2975
        %v3297 = vpack.c.bf16 %v2996, %v2976
        %v3298 = vpack.c.bf16 %v2997, %v2977
        %v3299 = vpack.c.bf16 %v2998, %v2978
        %v3300 = vpack.c.bf16 %v2999, %v2979
        %v3301 = vpack.c.bf16 %v3000, %v2980
        %v3302 = vpack.c.bf16 %v3001, %v2981
        %v3303 = vpack.c.bf16 %v3002, %v2982
        %v3304 = vpack.c.bf16 %v3023, %v3003
        %v3305 = vpack.c.bf16 %v3024, %v3004
        %v3306 = vpack.c.bf16 %v3025, %v3005
        %v3307 = vpack.c.bf16 %v3026, %v3006
        %v3308 = vpack.c.bf16 %v3027, %v3007
        %v3309 = vpack.c.bf16 %v3028, %v3008
        %v3310 = vpack.c.bf16 %v3029, %v3009
        %v3311 = vpack.c.bf16 %v3030, %v3010
        %v3312 = vpack.c.bf16 %v3031, %v3011
        %v3313 = vpack.c.bf16 %v3032, %v3012
        %v3314 = vpack.c.bf16 %v3033, %v3013
        %v3315 = vpack.c.bf16 %v3034, %v3014
        %v3316 = vpack.c.bf16 %v3035, %v3015
        %v3317 = vpack.c.bf16 %v3036, %v3016
        %v3318 = vpack.c.bf16 %v3037, %v3017
        %v3319 = vpack.c.bf16 %v3038, %v3018
        %v3320 = vpack.c.bf16 %v3039, %v3019
        %v3321 = vpack.c.bf16 %v3040, %v3020
        %v3322 = vpack.c.bf16 %v3041, %v3021
        %v3323 = vpack.c.bf16 %v3042, %v3022
        %v3324 = vpack.c.bf16 %v3063, %v3043
        %v3325 = vpack.c.bf16 %v3064, %v3044
        %v3326 = vpack.c.bf16 %v3065, %v3045
        %v3327 = vpack.c.bf16 %v3066, %v3046
        %v3328 = vpack.c.bf16 %v3067, %v3047
        %v3329 = vpack.c.bf16 %v3068, %v3048
        %v3330 = vpack.c.bf16 %v3069, %v3049
        %v3331 = vpack.c.bf16 %v3070, %v3050
        %v3332 = vpack.c.bf16 %v3071, %v3051
        %v3333 = vpack.c.bf16 %v3072, %v3052
        %v3334 = vpack.c.bf16 %v3073, %v3053
        %v3335 = vpack.c.bf16 %v3074, %v3054
        %v3336 = vpack.c.bf16 %v3075, %v3055
        %v3337 = vpack.c.bf16 %v3076, %v3056
        %v3338 = vpack.c.bf16 %v3077, %v3057
        %v3339 = vpack.c.bf16 %v3078, %v3058
        %v3340 = vpack.c.bf16 %v3079, %v3059
        %v3341 = vpack.c.bf16 %v3080, %v3060
        %v3342 = vpack.c.bf16 %v3081, %v3061
        %v3343 = vpack.c.bf16 %v3082, %v3062
        %v3344 = vpack.c.bf16 %v3103, %v3083
        %v3345 = vpack.c.bf16 %v3104, %v3084
        %v3346 = vpack.c.bf16 %v3105, %v3085
        %v3347 = vpack.c.bf16 %v3106, %v3086
        %v3348 = vpack.c.bf16 %v3107, %v3087
        %v3349 = vpack.c.bf16 %v3108, %v3088
        %v3350 = vpack.c.bf16 %v3109, %v3089
        %v3351 = vpack.c.bf16 %v3110, %v3090
        %v3352 = vpack.c.bf16 %v3111, %v3091
        %v3353 = vpack.c.bf16 %v3112, %v3092
        %v3354 = vpack.c.bf16 %v3113, %v3093
        %v3355 = vpack.c.bf16 %v3114, %v3094
        %v3356 = vpack.c.bf16 %v3115, %v3095
        %v3357 = vpack.c.bf16 %v3116, %v3096
        %v3358 = vpack.c.bf16 %v3117, %v3097
        %v3359 = vpack.c.bf16 %v3118, %v3098
        %v3360 = vpack.c.bf16 %v3119, %v3099
        %v3361 = vpack.c.bf16 %v3120, %v3100
        %v3362 = vpack.c.bf16 %v3121, %v3101
        %v3363 = vpack.c.bf16 %v3122, %v3102
        %v3364 = vpack.c.bf16 %v3143, %v3123
        %v3365 = vpack.c.bf16 %v3144, %v3124
        %v3366 = vpack.c.bf16 %v3145, %v3125
        %v3367 = vpack.c.bf16 %v3146, %v3126
        %v3368 = vpack.c.bf16 %v3147, %v3127
        %v3369 = vpack.c.bf16 %v3148, %v3128
        %v3370 = vpack.c.bf16 %v3149, %v3129
        %v3371 = vpack.c.bf16 %v3150, %v3130
        %v3372 = vpack.c.bf16 %v3151, %v3131
        %v3373 = vpack.c.bf16 %v3152, %v3132
        %v3374 = vpack.c.bf16 %v3153, %v3133
        %v3375 = vpack.c.bf16 %v3154, %v3134
        %v3376 = vpack.c.bf16 %v3155, %v3135
        %v3377 = vpack.c.bf16 %v3156, %v3136
        %v3378 = vpack.c.bf16 %v3157, %v3137
        %v3379 = vpack.c.bf16 %v3158, %v3138
        %v3380 = vpack.c.bf16 %v3159, %v3139
        %v3381 = vpack.c.bf16 %v3160, %v3140
        %v3382 = vpack.c.bf16 %v3161, %v3141
        %v3383 = vpack.c.bf16 %v3162, %v3142
        %v3384 = vpack.c.bf16 %v3183, %v3163
        %v3385 = vpack.c.bf16 %v3184, %v3164
        %v3386 = vpack.c.bf16 %v3185, %v3165
        %v3387 = vpack.c.bf16 %v3186, %v3166
        %v3388 = vpack.c.bf16 %v3187, %v3167
        %v3389 = vpack.c.bf16 %v3188, %v3168
        %v3390 = vpack.c.bf16 %v3189, %v3169
        %v3391 = vpack.c.bf16 %v3190, %v3170
        %v3392 = vpack.c.bf16 %v3191, %v3171
        %v3393 = vpack.c.bf16 %v3192, %v3172
        %v3394 = vpack.c.bf16 %v3193, %v3173
        %v3395 = vpack.c.bf16 %v3194, %v3174
        %v3396 = vpack.c.bf16 %v3195, %v3175
        %v3397 = vpack.c.bf16 %v3196, %v3176
        %v3398 = vpack.c.bf16 %v3197, %v3177
        %v3399 = vpack.c.bf16 %v3198, %v3178
        %v3400 = vpack.c.bf16 %v3199, %v3179
        %v3401 = vpack.c.bf16 %v3200, %v3180
        %v3402 = vpack.c.bf16 %v3201, %v3181
        %v3403 = vpack.c.bf16 %v3202, %v3182
        %v3404 = vpack.c.bf16 %v3223, %v3203
        %v3405 = vpack.c.bf16 %v3224, %v3204
        %v3406 = vpack.c.bf16 %v3225, %v3205
        %v3407 = vpack.c.bf16 %v3226, %v3206
        %v3408 = vpack.c.bf16 %v3227, %v3207
        %v3409 = vpack.c.bf16 %v3228, %v3208
        %v3410 = vpack.c.bf16 %v3229, %v3209
        %v3411 = vpack.c.bf16 %v3230, %v3210
        %v3412 = vpack.c.bf16 %v3231, %v3211
        %v3413 = vpack.c.bf16 %v3232, %v3212
        %v3414 = vpack.c.bf16 %v3233, %v3213
        %v3415 = vpack.c.bf16 %v3234, %v3214
        %v3416 = vpack.c.bf16 %v3235, %v3215
        %v3417 = vpack.c.bf16 %v3236, %v3216
        %v3418 = vpack.c.bf16 %v3237, %v3217
        %v3419 = vpack.c.bf16 %v3238, %v3218
        %v3420 = vpack.c.bf16 %v3239, %v3219
        %v3421 = vpack.c.bf16 %v3240, %v3220
        %v3422 = vpack.c.bf16 %v3241, %v3221
        %v3423 = vpack.c.bf16 %v3242, %v3222
        %3424 = vmatprep.subr.bf16.mxu0 %v3265
        %3425 = vmatpush1.bf16.xpose.msra.mxu0 %v3264
        %3426 = vmatprep.subr.bf16.mxu0 %v3285
        %3427 = vmatpush1.bf16.xpose.msra.mxu0 %v3284
        %3428 = vmatprep.subr.bf16.mxu0 %v3305
        %3429 = vmatpush1.bf16.xpose.msra.mxu0 %v3304
        %3430 = vmatprep.subr.bf16.mxu0 %v3325
        %3431 = vmatpush1.bf16.xpose.msra.mxu0 %v3324
        %3432 = vmatprep.subr.bf16.mxu0 %v3345
        %3433 = vmatpush1.bf16.xpose.msra.mxu0 %v3344
        %3434 = vmatprep.subr.bf16.mxu0 %v3365
        %3435 = vmatpush1.bf16.xpose.msra.mxu0 %v3364
        %3436 = vmatprep.subr.bf16.mxu0 %v3385
        %3437 = vmatpush1.bf16.xpose.msra.mxu0 %v3384
        %3438 = vmatprep.subr.bf16.mxu0 %v3405
        %3439 = vmatpush1.bf16.xpose.msra.mxu0 %v3404
        %3440 = vmatprep.subr.bf16.mxu0 0
        %3441 = vmatpush1.bf16.xpose.msra.mxu0 0
        %3442 = vmatprep.subr.bf16.mxu0 0
        %3443 = vmatpush1.bf16.xpose.msra.mxu0 0
        %3444 = vmatprep.subr.bf16.mxu0 0
        %3445 = vmatpush1.bf16.xpose.msra.mxu0 0
        %3446 = vmatprep.subr.bf16.mxu0 0
        %3447 = vmatpush1.bf16.xpose.msra.mxu0 0
        %3448 = vmatprep.subr.bf16.mxu0 0
        %3449 = vmatpush1.bf16.xpose.msra.mxu0 0
        %3450 = vmatprep.subr.bf16.mxu0 0
        %3451 = vmatpush1.bf16.xpose.msra.mxu0 0
        %3452 = vmatprep.subr.bf16.mxu0 0
        %3453 = vmatpush1.bf16.xpose.msra.mxu0 0
        %3454 = vmatprep.subr.bf16.mxu0 0
        %3455 = vmatpush1.bf16.xpose.msra.mxu0 0
        %3456 = vmatprep.mubr.bf16.mxu0 %v3245
        %3457 = vmatmul.mubr.bf16.gmra.mrb[0].mxu0 %v3244
        %v3458 = vpop.f32.mrb[0].mxu0
        %v3459 = vadd.f32 0.0, %v3458
        %v3460 = vpop.f32.mrb[0].mxu0
        %v3461 = vpop.f32.mrb[0].mxu0
        %v3462 = vpop.f32.mrb[0].mxu0
        %3463 = vdwg.mxu0
        %3464 = vmatprep.subr.bf16.mxu0 %v3267
        %3465 = vmatpush1.bf16.xpose.msra.mxu0 %v3266
        %3466 = vmatprep.subr.bf16.mxu0 %v3287
        %3467 = vmatpush1.bf16.xpose.msra.mxu0 %v3286
        %3468 = vmatprep.subr.bf16.mxu0 %v3307
        %3469 = vmatpush1.bf16.xpose.msra.mxu0 %v3306
        %3470 = vmatprep.subr.bf16.mxu0 %v3327
        %3471 = vmatpush1.bf16.xpose.msra.mxu0 %v3326
        %3472 = vmatprep.subr.bf16.mxu0 %v3347
        %3473 = vmatpush1.bf16.xpose.msra.mxu0 %v3346
        %3474 = vmatprep.subr.bf16.mxu0 %v3367
        %3475 = vmatpush1.bf16.xpose.msra.mxu0 %v3366
        %3476 = vmatprep.subr.bf16.mxu0 %v3387
        %3477 = vmatpush1.bf16.xpose.msra.mxu0 %v3386
        %3478 = vmatprep.subr.bf16.mxu0 %v3407
        %3479 = vmatpush1.bf16.xpose.msra.mxu0 %v3406
        %3480 = vmatprep.subr.bf16.mxu0 0
        %3481 = vmatpush1.bf16.xpose.msra.mxu0 0
        %3482 = vmatprep.subr.bf16.mxu0 0
        %3483 = vmatpush1.bf16.xpose.msra.mxu0 0
        %3484 = vmatprep.subr.bf16.mxu0 0
        %3485 = vmatpush1.bf16.xpose.msra.mxu0 0
        %3486 = vmatprep.subr.bf16.mxu0 0
        %3487 = vmatpush1.bf16.xpose.msra.mxu0 0
        %3488 = vmatprep.subr.bf16.mxu0 0
        %3489 = vmatpush1.bf16.xpose.msra.mxu0 0
        %3490 = vmatprep.subr.bf16.mxu0 0
        %3491 = vmatpush1.bf16.xpose.msra.mxu0 0
        %3492 = vmatprep.subr.bf16.mxu0 0
        %3493 = vmatpush1.bf16.xpose.msra.mxu0 0
        %3494 = vmatprep.subr.bf16.mxu0 0
        %3495 = vmatpush1.bf16.xpose.msra.mxu0 0
        %3496 = vmatprep.mubr.bf16.mxu0 %v3247
        %3497 = vmatmul.mubr.bf16.gmra.mrb[0].mxu0 %v3246
        %v3498 = vpop.f32.mrb[0].mxu0
        %v3499 = vadd.f32 %v3459, %v3498
        %v3500 = vpop.f32.mrb[0].mxu0
        %v3501 = vpop.f32.mrb[0].mxu0
        %v3502 = vpop.f32.mrb[0].mxu0
        %3503 = vdwg.mxu0
        %3504 = vmatprep.subr.bf16.mxu0 %v3269
        %3505 = vmatpush1.bf16.xpose.msra.mxu0 %v3268
        %3506 = vmatprep.subr.bf16.mxu0 %v3289
        %3507 = vmatpush1.bf16.xpose.msra.mxu0 %v3288
        %3508 = vmatprep.subr.bf16.mxu0 %v3309
        %3509 = vmatpush1.bf16.xpose.msra.mxu0 %v3308
        %3510 = vmatprep.subr.bf16.mxu0 %v3329
        %3511 = vmatpush1.bf16.xpose.msra.mxu0 %v3328
        %3512 = vmatprep.subr.bf16.mxu0 %v3349
        %3513 = vmatpush1.bf16.xpose.msra.mxu0 %v3348
        %3514 = vmatprep.subr.bf16.mxu0 %v3369
        %3515 = vmatpush1.bf16.xpose.msra.mxu0 %v3368
        %3516 = vmatprep.subr.bf16.mxu0 %v3389
        %3517 = vmatpush1.bf16.xpose.msra.mxu0 %v3388
        %3518 = vmatprep.subr.bf16.mxu0 %v3409
        %3519 = vmatpush1.bf16.xpose.msra.mxu0 %v3408
        %3520 = vmatprep.subr.bf16.mxu0 0
        %3521 = vmatpush1.bf16.xpose.msra.mxu0 0
        %3522 = vmatprep.subr.bf16.mxu0 0
        %3523 = vmatpush1.bf16.xpose.msra.mxu0 0
        %3524 = vmatprep.subr.bf16.mxu0 0
        %3525 = vmatpush1.bf16.xpose.msra.mxu0 0
        %3526 = vmatprep.subr.bf16.mxu0 0
        %3527 = vmatpush1.bf16.xpose.msra.mxu0 0
        %3528 = vmatprep.subr.bf16.mxu0 0
        %3529 = vmatpush1.bf16.xpose.msra.mxu0 0
        %3530 = vmatprep.subr.bf16.mxu0 0
        %3531 = vmatpush1.bf16.xpose.msra.mxu0 0
        %3532 = vmatprep.subr.bf16.mxu0 0
        %3533 = vmatpush1.bf16.xpose.msra.mxu0 0
        %3534 = vmatprep.subr.bf16.mxu0 0
        %3535 = vmatpush1.bf16.xpose.msra.mxu0 0
        %3536 = vmatprep.mubr.bf16.mxu0 %v3249
        %3537 = vmatmul.mubr.bf16.gmra.mrb[0].mxu0 %v3248
        %v3538 = vpop.f32.mrb[0].mxu0
        %v3539 = vadd.f32 %v3499, %v3538
        %v3540 = vpop.f32.mrb[0].mxu0
        %v3541 = vpop.f32.mrb[0].mxu0
        %v3542 = vpop.f32.mrb[0].mxu0
        %3543 = vdwg.mxu0
        %3544 = vmatprep.subr.bf16.mxu0 %v3271
        %3545 = vmatpush1.bf16.xpose.msra.mxu0 %v3270
        %3546 = vmatprep.subr.bf16.mxu0 %v3291
        %3547 = vmatpush1.bf16.xpose.msra.mxu0 %v3290
        %3548 = vmatprep.subr.bf16.mxu0 %v3311
        %3549 = vmatpush1.bf16.xpose.msra.mxu0 %v3310
        %3550 = vmatprep.subr.bf16.mxu0 %v3331
        %3551 = vmatpush1.bf16.xpose.msra.mxu0 %v3330
        %3552 = vmatprep.subr.bf16.mxu0 %v3351
        %3553 = vmatpush1.bf16.xpose.msra.mxu0 %v3350
        %3554 = vmatprep.subr.bf16.mxu0 %v3371
        %3555 = vmatpush1.bf16.xpose.msra.mxu0 %v3370
        %3556 = vmatprep.subr.bf16.mxu0 %v3391
        %3557 = vmatpush1.bf16.xpose.msra.mxu0 %v3390
        %3558 = vmatprep.subr.bf16.mxu0 %v3411
        %3559 = vmatpush1.bf16.xpose.msra.mxu0 %v3410
        %3560 = vmatprep.subr.bf16.mxu0 0
        %3561 = vmatpush1.bf16.xpose.msra.mxu0 0
        %3562 = vmatprep.subr.bf16.mxu0 0
        %3563 = vmatpush1.bf16.xpose.msra.mxu0 0
        %3564 = vmatprep.subr.bf16.mxu0 0
        %3565 = vmatpush1.bf16.xpose.msra.mxu0 0
        %3566 = vmatprep.subr.bf16.mxu0 0
        %3567 = vmatpush1.bf16.xpose.msra.mxu0 0
        %3568 = vmatprep.subr.bf16.mxu0 0
        %3569 = vmatpush1.bf16.xpose.msra.mxu0 0
        %3570 = vmatprep.subr.bf16.mxu0 0
        %3571 = vmatpush1.bf16.xpose.msra.mxu0 0
        %3572 = vmatprep.subr.bf16.mxu0 0
        %3573 = vmatpush1.bf16.xpose.msra.mxu0 0
        %3574 = vmatprep.subr.bf16.mxu0 0
        %3575 = vmatpush1.bf16.xpose.msra.mxu0 0
        %3576 = vmatprep.mubr.bf16.mxu0 %v3251
        %3577 = vmatmul.mubr.bf16.gmra.mrb[0].mxu0 %v3250
        %v3578 = vpop.f32.mrb[0].mxu0
        %v3579 = vadd.f32 %v3539, %v3578
        %v3580 = vpop.f32.mrb[0].mxu0
        %v3581 = vpop.f32.mrb[0].mxu0
        %v3582 = vpop.f32.mrb[0].mxu0
        %3583 = vdwg.mxu0
        %3584 = vmatprep.subr.bf16.mxu0 %v3273
        %3585 = vmatpush1.bf16.xpose.msra.mxu0 %v3272
        %3586 = vmatprep.subr.bf16.mxu0 %v3293
        %3587 = vmatpush1.bf16.xpose.msra.mxu0 %v3292
        %3588 = vmatprep.subr.bf16.mxu0 %v3313
        %3589 = vmatpush1.bf16.xpose.msra.mxu0 %v3312
        %3590 = vmatprep.subr.bf16.mxu0 %v3333
        %3591 = vmatpush1.bf16.xpose.msra.mxu0 %v3332
        %3592 = vmatprep.subr.bf16.mxu0 %v3353
        %3593 = vmatpush1.bf16.xpose.msra.mxu0 %v3352
        %3594 = vmatprep.subr.bf16.mxu0 %v3373
        %3595 = vmatpush1.bf16.xpose.msra.mxu0 %v3372
        %3596 = vmatprep.subr.bf16.mxu0 %v3393
        %3597 = vmatpush1.bf16.xpose.msra.mxu0 %v3392
        %3598 = vmatprep.subr.bf16.mxu0 %v3413
        %3599 = vmatpush1.bf16.xpose.msra.mxu0 %v3412
        %3600 = vmatprep.subr.bf16.mxu0 0
        %3601 = vmatpush1.bf16.xpose.msra.mxu0 0
        %3602 = vmatprep.subr.bf16.mxu0 0
        %3603 = vmatpush1.bf16.xpose.msra.mxu0 0
        %3604 = vmatprep.subr.bf16.mxu0 0
        %3605 = vmatpush1.bf16.xpose.msra.mxu0 0
        %3606 = vmatprep.subr.bf16.mxu0 0
        %3607 = vmatpush1.bf16.xpose.msra.mxu0 0
        %3608 = vmatprep.subr.bf16.mxu0 0
        %3609 = vmatpush1.bf16.xpose.msra.mxu0 0
        %3610 = vmatprep.subr.bf16.mxu0 0
        %3611 = vmatpush1.bf16.xpose.msra.mxu0 0
        %3612 = vmatprep.subr.bf16.mxu0 0
        %3613 = vmatpush1.bf16.xpose.msra.mxu0 0
        %3614 = vmatprep.subr.bf16.mxu0 0
        %3615 = vmatpush1.bf16.xpose.msra.mxu0 0
        %3616 = vmatprep.mubr.bf16.mxu0 %v3253
        %3617 = vmatmul.mubr.bf16.gmra.mrb[0].mxu0 %v3252
        %v3618 = vpop.f32.mrb[0].mxu0
        %v3619 = vadd.f32 %v3579, %v3618
        %v3620 = vpop.f32.mrb[0].mxu0
        %v3621 = vpop.f32.mrb[0].mxu0
        %v3622 = vpop.f32.mrb[0].mxu0
        %3623 = vdwg.mxu0
        %3624 = vmatprep.subr.bf16.mxu0 %v3275
        %3625 = vmatpush1.bf16.xpose.msra.mxu0 %v3274
        %3626 = vmatprep.subr.bf16.mxu0 %v3295
        %3627 = vmatpush1.bf16.xpose.msra.mxu0 %v3294
        %3628 = vmatprep.subr.bf16.mxu0 %v3315
        %3629 = vmatpush1.bf16.xpose.msra.mxu0 %v3314
        %3630 = vmatprep.subr.bf16.mxu0 %v3335
        %3631 = vmatpush1.bf16.xpose.msra.mxu0 %v3334
        %3632 = vmatprep.subr.bf16.mxu0 %v3355
        %3633 = vmatpush1.bf16.xpose.msra.mxu0 %v3354
        %3634 = vmatprep.subr.bf16.mxu0 %v3375
        %3635 = vmatpush1.bf16.xpose.msra.mxu0 %v3374
        %3636 = vmatprep.subr.bf16.mxu0 %v3395
        %3637 = vmatpush1.bf16.xpose.msra.mxu0 %v3394
        %3638 = vmatprep.subr.bf16.mxu0 %v3415
        %3639 = vmatpush1.bf16.xpose.msra.mxu0 %v3414
        %3640 = vmatprep.subr.bf16.mxu0 0
        %3641 = vmatpush1.bf16.xpose.msra.mxu0 0
        %3642 = vmatprep.subr.bf16.mxu0 0
        %3643 = vmatpush1.bf16.xpose.msra.mxu0 0
        %3644 = vmatprep.subr.bf16.mxu0 0
        %3645 = vmatpush1.bf16.xpose.msra.mxu0 0
        %3646 = vmatprep.subr.bf16.mxu0 0
        %3647 = vmatpush1.bf16.xpose.msra.mxu0 0
        %3648 = vmatprep.subr.bf16.mxu0 0
        %3649 = vmatpush1.bf16.xpose.msra.mxu0 0
        %3650 = vmatprep.subr.bf16.mxu0 0
        %3651 = vmatpush1.bf16.xpose.msra.mxu0 0
        %3652 = vmatprep.subr.bf16.mxu0 0
        %3653 = vmatpush1.bf16.xpose.msra.mxu0 0
        %3654 = vmatprep.subr.bf16.mxu0 0
        %3655 = vmatpush1.bf16.xpose.msra.mxu0 0
        %3656 = vmatprep.mubr.bf16.mxu0 %v3255
        %3657 = vmatmul.mubr.bf16.gmra.mrb[0].mxu0 %v3254
        %v3658 = vpop.f32.mrb[0].mxu0
        %v3659 = vadd.f32 %v3619, %v3658
        %v3660 = vpop.f32.mrb[0].mxu0
        %v3661 = vpop.f32.mrb[0].mxu0
        %v3662 = vpop.f32.mrb[0].mxu0
        %3663 = vdwg.mxu0
        %3664 = vmatprep.subr.bf16.mxu0 %v3277
        %3665 = vmatpush1.bf16.xpose.msra.mxu0 %v3276
        %3666 = vmatprep.subr.bf16.mxu0 %v3297
        %3667 = vmatpush1.bf16.xpose.msra.mxu0 %v3296
        %3668 = vmatprep.subr.bf16.mxu0 %v3317
        %3669 = vmatpush1.bf16.xpose.msra.mxu0 %v3316
        %3670 = vmatprep.subr.bf16.mxu0 %v3337
        %3671 = vmatpush1.bf16.xpose.msra.mxu0 %v3336
        %3672 = vmatprep.subr.bf16.mxu0 %v3357
        %3673 = vmatpush1.bf16.xpose.msra.mxu0 %v3356
        %3674 = vmatprep.subr.bf16.mxu0 %v3377
        %3675 = vmatpush1.bf16.xpose.msra.mxu0 %v3376
        %3676 = vmatprep.subr.bf16.mxu0 %v3397
        %3677 = vmatpush1.bf16.xpose.msra.mxu0 %v3396
        %3678 = vmatprep.subr.bf16.mxu0 %v3417
        %3679 = vmatpush1.bf16.xpose.msra.mxu0 %v3416
        %3680 = vmatprep.subr.bf16.mxu0 0
        %3681 = vmatpush1.bf16.xpose.msra.mxu0 0
        %3682 = vmatprep.subr.bf16.mxu0 0
        %3683 = vmatpush1.bf16.xpose.msra.mxu0 0
        %3684 = vmatprep.subr.bf16.mxu0 0
        %3685 = vmatpush1.bf16.xpose.msra.mxu0 0
        %3686 = vmatprep.subr.bf16.mxu0 0
        %3687 = vmatpush1.bf16.xpose.msra.mxu0 0
        %3688 = vmatprep.subr.bf16.mxu0 0
        %3689 = vmatpush1.bf16.xpose.msra.mxu0 0
        %3690 = vmatprep.subr.bf16.mxu0 0
        %3691 = vmatpush1.bf16.xpose.msra.mxu0 0
        %3692 = vmatprep.subr.bf16.mxu0 0
        %3693 = vmatpush1.bf16.xpose.msra.mxu0 0
        %3694 = vmatprep.subr.bf16.mxu0 0
        %3695 = vmatpush1.bf16.xpose.msra.mxu0 0
        %3696 = vmatprep.mubr.bf16.mxu0 %v3257
        %3697 = vmatmul.mubr.bf16.gmra.mrb[0].mxu0 %v3256
        %v3698 = vpop.f32.mrb[0].mxu0
        %v3699 = vadd.f32 %v3659, %v3698
        %v3700 = vpop.f32.mrb[0].mxu0
        %v3701 = vpop.f32.mrb[0].mxu0
        %v3702 = vpop.f32.mrb[0].mxu0
        %3703 = vdwg.mxu0
        %3704 = vmatprep.subr.bf16.mxu0 %v3279
        %3705 = vmatpush1.bf16.xpose.msra.mxu0 %v3278
        %3706 = vmatprep.subr.bf16.mxu0 %v3299
        %3707 = vmatpush1.bf16.xpose.msra.mxu0 %v3298
        %3708 = vmatprep.subr.bf16.mxu0 %v3319
        %3709 = vmatpush1.bf16.xpose.msra.mxu0 %v3318
        %3710 = vmatprep.subr.bf16.mxu0 %v3339
        %3711 = vmatpush1.bf16.xpose.msra.mxu0 %v3338
        %3712 = vmatprep.subr.bf16.mxu0 %v3359
        %3713 = vmatpush1.bf16.xpose.msra.mxu0 %v3358
        %3714 = vmatprep.subr.bf16.mxu0 %v3379
        %3715 = vmatpush1.bf16.xpose.msra.mxu0 %v3378
        %3716 = vmatprep.subr.bf16.mxu0 %v3399
        %3717 = vmatpush1.bf16.xpose.msra.mxu0 %v3398
        %3718 = vmatprep.subr.bf16.mxu0 %v3419
        %3719 = vmatpush1.bf16.xpose.msra.mxu0 %v3418
        %3720 = vmatprep.subr.bf16.mxu0 0
        %3721 = vmatpush1.bf16.xpose.msra.mxu0 0
        %3722 = vmatprep.subr.bf16.mxu0 0
        %3723 = vmatpush1.bf16.xpose.msra.mxu0 0
        %3724 = vmatprep.subr.bf16.mxu0 0
        %3725 = vmatpush1.bf16.xpose.msra.mxu0 0
        %3726 = vmatprep.subr.bf16.mxu0 0
        %3727 = vmatpush1.bf16.xpose.msra.mxu0 0
        %3728 = vmatprep.subr.bf16.mxu0 0
        %3729 = vmatpush1.bf16.xpose.msra.mxu0 0
        %3730 = vmatprep.subr.bf16.mxu0 0
        %3731 = vmatpush1.bf16.xpose.msra.mxu0 0
        %3732 = vmatprep.subr.bf16.mxu0 0
        %3733 = vmatpush1.bf16.xpose.msra.mxu0 0
        %3734 = vmatprep.subr.bf16.mxu0 0
        %3735 = vmatpush1.bf16.xpose.msra.mxu0 0
        %3736 = vmatprep.mubr.bf16.mxu0 %v3259
        %3737 = vmatmul.mubr.bf16.gmra.mrb[0].mxu0 %v3258
        %v3738 = vpop.f32.mrb[0].mxu0
        %v3739 = vadd.f32 %v3699, %v3738
        %v3740 = vpop.f32.mrb[0].mxu0
        %v3741 = vpop.f32.mrb[0].mxu0
        %v3742 = vpop.f32.mrb[0].mxu0
        %3743 = vdwg.mxu0
        %3744 = vmatprep.subr.bf16.mxu0 %v3281
        %3745 = vmatpush1.bf16.xpose.msra.mxu0 %v3280
        %3746 = vmatprep.subr.bf16.mxu0 %v3301
        %3747 = vmatpush1.bf16.xpose.msra.mxu0 %v3300
        %3748 = vmatprep.subr.bf16.mxu0 %v3321
        %3749 = vmatpush1.bf16.xpose.msra.mxu0 %v3320
        %3750 = vmatprep.subr.bf16.mxu0 %v3341
        %3751 = vmatpush1.bf16.xpose.msra.mxu0 %v3340
        %3752 = vmatprep.subr.bf16.mxu0 %v3361
        %3753 = vmatpush1.bf16.xpose.msra.mxu0 %v3360
        %3754 = vmatprep.subr.bf16.mxu0 %v3381
        %3755 = vmatpush1.bf16.xpose.msra.mxu0 %v3380
        %3756 = vmatprep.subr.bf16.mxu0 %v3401
        %3757 = vmatpush1.bf16.xpose.msra.mxu0 %v3400
        %3758 = vmatprep.subr.bf16.mxu0 %v3421
        %3759 = vmatpush1.bf16.xpose.msra.mxu0 %v3420
        %3760 = vmatprep.subr.bf16.mxu0 0
        %3761 = vmatpush1.bf16.xpose.msra.mxu0 0
        %3762 = vmatprep.subr.bf16.mxu0 0
        %3763 = vmatpush1.bf16.xpose.msra.mxu0 0
        %3764 = vmatprep.subr.bf16.mxu0 0
        %3765 = vmatpush1.bf16.xpose.msra.mxu0 0
        %3766 = vmatprep.subr.bf16.mxu0 0
        %3767 = vmatpush1.bf16.xpose.msra.mxu0 0
        %3768 = vmatprep.subr.bf16.mxu0 0
        %3769 = vmatpush1.bf16.xpose.msra.mxu0 0
        %3770 = vmatprep.subr.bf16.mxu0 0
        %3771 = vmatpush1.bf16.xpose.msra.mxu0 0
        %3772 = vmatprep.subr.bf16.mxu0 0
        %3773 = vmatpush1.bf16.xpose.msra.mxu0 0
        %3774 = vmatprep.subr.bf16.mxu0 0
        %3775 = vmatpush1.bf16.xpose.msra.mxu0 0
        %3776 = vmatprep.mubr.bf16.mxu0 %v3261
        %3777 = vmatmul.mubr.bf16.gmra.mrb[0].mxu0 %v3260
        %v3778 = vpop.f32.mrb[0].mxu0
        %v3779 = vadd.f32 %v3739, %v3778
        %v3780 = vpop.f32.mrb[0].mxu0
        %v3781 = vpop.f32.mrb[0].mxu0
        %v3782 = vpop.f32.mrb[0].mxu0
        %3783 = vdwg.mxu0
        %3784 = vmatprep.subr.bf16.mxu0 %v3283
        %3785 = vmatpush1.bf16.xpose.msra.mxu0 %v3282
        %3786 = vmatprep.subr.bf16.mxu0 %v3303
        %3787 = vmatpush1.bf16.xpose.msra.mxu0 %v3302
        %3788 = vmatprep.subr.bf16.mxu0 %v3323
        %3789 = vmatpush1.bf16.xpose.msra.mxu0 %v3322
        %3790 = vmatprep.subr.bf16.mxu0 %v3343
        %3791 = vmatpush1.bf16.xpose.msra.mxu0 %v3342
        %3792 = vmatprep.subr.bf16.mxu0 %v3363
        %3793 = vmatpush1.bf16.xpose.msra.mxu0 %v3362
        %3794 = vmatprep.subr.bf16.mxu0 %v3383
        %3795 = vmatpush1.bf16.xpose.msra.mxu0 %v3382
        %3796 = vmatprep.subr.bf16.mxu0 %v3403
        %3797 = vmatpush1.bf16.xpose.msra.mxu0 %v3402
        %3798 = vmatprep.subr.bf16.mxu0 %v3423
        %3799 = vmatpush1.bf16.xpose.msra.mxu0 %v3422
        %3800 = vmatprep.subr.bf16.mxu0 0
        %3801 = vmatpush1.bf16.xpose.msra.mxu0 0
        %3802 = vmatprep.subr.bf16.mxu0 0
        %3803 = vmatpush1.bf16.xpose.msra.mxu0 0
        %3804 = vmatprep.subr.bf16.mxu0 0
        %3805 = vmatpush1.bf16.xpose.msra.mxu0 0
        %3806 = vmatprep.subr.bf16.mxu0 0
        %3807 = vmatpush1.bf16.xpose.msra.mxu0 0
        %3808 = vmatprep.subr.bf16.mxu0 0
        %3809 = vmatpush1.bf16.xpose.msra.mxu0 0
        %3810 = vmatprep.subr.bf16.mxu0 0
        %3811 = vmatpush1.bf16.xpose.msra.mxu0 0
        %3812 = vmatprep.subr.bf16.mxu0 0
        %3813 = vmatpush1.bf16.xpose.msra.mxu0 0
        %3814 = vmatprep.subr.bf16.mxu0 0
        %3815 = vmatpush1.bf16.xpose.msra.mxu0 0
        %3816 = vmatprep.mubr.bf16.mxu0 %v3263
        %3817 = vmatmul.mubr.bf16.gmra.mrb[0].mxu0 %v3262
        %v3818 = vpop.f32.mrb[0].mxu0
        %v3819 = vadd.f32 %v3779, %v3818
        %v3820 = vpop.f32.mrb[0].mxu0
        %v3821 = vpop.f32.mrb[0].mxu0
        %v3822 = vpop.f32.mrb[0].mxu0
        %3823 = vdwg.mxu0
        %v3824 = vadd.f32 %v3243, %v3819
        %3825 = vst [vmem:[#allocation2] sm:$0xff] %v3824
        %p3826 = scmp.eq.s32.totalorder %s22, 1
        // Predicated region
        $region68: #{base_model_forward.1} parent=58 // pred_check
          %p3827 = pneg %p3826
        $region69: #{base_model_forward.1} parent=58 // pred_check_branch
          %3829 = sbr.rel (%p3827) target = $region71
        $region70: #{base_model_forward.1} parent=58 // pred_region
          %v3830 = vld [vmem:[#allocation2] sm:$0xff]
          %3831 = vst [vmem:[#allocation4] sm:$0xff] %v3830
        $region71: #{base_model_forward.1} parent=58 // pred_fallthru
          _
        // Predicated region
        $region72: #{base_model_forward.1} parent=58 // pred_check
          %p3832 = pneg %p172
        $region73: #{base_model_forward.1} parent=58 // pred_check_branch
          %3834 = sbr.rel (%p3832) target = $region75
        $region74: #{base_model_forward.1} parent=58 // pred_region
          %s3836 = ssub.s32 128, 128
          %3837 = vsyncadd [#allocation5], %s3836
          %s3838 = smul.addr %s21, 128
          %s3839 = scalar_lea.hbm %s5, %s3838
          %s3841 = sshll.u32 [#allocation4], 4
          %s3842 = int_to_ptr.vmem [resolvable:$true] %s3841
          %3844 = dma.vmem_to_hbm [thread:$0]  %s3842, 128, %s3839, [#allocation5]
        $region75: #{base_model_forward.1} parent=58 // pred_fallthru
          _
        // Predicated region
        $region76: #{base_model_forward.1} parent=58 // pred_check
          %p3845 = pneg %p172
        $region77: #{base_model_forward.1} parent=58 // pred_check_branch
          %3847 = sbr.rel (%p3845) target = $region79
        $region78: #{base_model_forward.1} parent=58 // pred_region
          %3848 = dma.done [#allocation5], 128
        $region79: #{base_model_forward.1} parent=58 // pred_fallthru
          _
      $region59: #{base_model_forward.1} parent=5 // pred_fallthru
        _
      %p3849 = scmp.le.s32.totalorder 2, %s12
      // Predicated region
      $region80: #{base_model_forward.1} parent=5 // pred_check
        %p3850 = pneg %p3849
      $region81: #{base_model_forward.1} parent=5 // pred_check_branch
        %3852 = sbr.rel (%p3850) target = $region83
      $region82: #{base_model_forward.1} parent=5 // pred_region
        %s3853 = ssub.s32 %s12, 2
      $region83: #{base_model_forward.1} parent=5 // pred_fallthru
        _
    $region6: #{base_model_forward.1} parent=1 // loop_footer
      %s16 = sadd.s32 1, %s12
    $region7: #{base_model_forward.1} parent=1 // loop_footer_branch
      %11 = sbr.rel target = $region3
    $region8: #{base_model_forward.1} parent=1 // loop_exit
      _
    %3854 = vsyncpa [#allocation5], 1
    %s3855 = scalar_lea.sflag [#allocation5], 1
    %3856 = vsyncpa %s3855, 1

</llo_original>
